<compile_context>
chip_gen: v6e
topology: v6e:2x2x1
jax: 0.10.0
libtpu: 0.0.40
codegen_flags: <defaults>
</compile_context>

<pallas_src>
import functools

import numpy as np
import jax
import jax.numpy as jnp
from jax.experimental import pallas as pl
from jax.experimental.pallas import tpu as pltpu


# ----------------------------- glue (plain JAX / numpy) ------------------------------

def window_partition(x, ws):
    B, H, W, C = x.shape
    x = x.reshape(B, H // ws, ws, W // ws, ws, C)
    return x.transpose(0, 1, 3, 2, 4, 5).reshape(-1, ws, ws, C)


def window_reverse(windows, ws, H, W):
    B = windows.shape[0] // (H * W // ws // ws)
    x = windows.reshape(B, H // ws, W // ws, ws, ws, -1)
    return x.transpose(0, 1, 3, 2, 4, 5).reshape(B, H, W, -1)


def make_relative_position_bias(table, win_size, num_heads):
    """table: ((2*ws-1)^2, num_heads) -> (num_heads, N, N)."""
    ws = win_size
    coords = np.stack(np.meshgrid(np.arange(ws), np.arange(ws), indexing="ij"))
    coords_flat = coords.reshape(2, -1)                                   # (2, N)
    rel = coords_flat[:, :, None] - coords_flat[:, None, :]               # (2, N, N)
    rel = rel.transpose(1, 2, 0).astype(np.int64)                         # (N, N, 2)
    rel[..., 0] += ws - 1
    rel[..., 1] += ws - 1
    rel[..., 0] *= 2 * ws - 1
    idx = rel.sum(-1)                                                     # (N, N)
    N = ws * ws
    bias = jnp.asarray(table)[idx.reshape(-1)].reshape(N, N, num_heads)
    return jnp.transpose(bias, (2, 0, 1)).astype(jnp.float32)             # (nh, N, N)


def make_attn_mask(H, W, win_size, shift_size):
    """(num_windows, N, N) additive mask; None when shift_size == 0."""
    if shift_size == 0:
        return None
    N = win_size * win_size
    img_mask = np.zeros((1, H, W, 1), np.float32)
    slices = (slice(0, -win_size),
              slice(-win_size, -shift_size),
              slice(-shift_size, None))
    cnt = 0
    for h in slices:
        for w in slices:
            img_mask[:, h, w, :] = cnt
            cnt += 1
    mask_windows = np.asarray(window_partition(img_mask, win_size)).reshape(-1, N)
    attn_mask = mask_windows[:, None, :] - mask_windows[:, :, None]
    attn_mask = np.where(attn_mask != 0, -100.0, 0.0).astype(np.float32)
    return jnp.asarray(attn_mask)


# ------------------------------ Pallas kernel --------------------------------

def _window_attn_kernel(x_ref, w3_ref, b3_ref, hmask_ref, bias_ref, o_ref, *,
                        num_heads, win_size, win_cols, batch):
    NH, ws, WW, B = num_heads, win_size, win_cols, batch
    N = ws * ws
    C = x_ref.shape[-1]
    W = x_ref.shape[2]
    D = w3_ref.shape[-1]

    # --- QKV projection on the whole window-row: M = B*ws*W rows, three
    # lane-0-aligned (C, D) matmuls (scale baked into w3[0] / b3[0]).
    x2 = x_ref[...].reshape(B * ws * W, C).astype(jnp.bfloat16)

    def proj(i):
        return (jnp.dot(x2, w3_ref[i], preferred_element_type=jnp.float32)
                + b3_ref[i]).reshape(B, ws, W, D)

    q = proj(0)
    k = proj(1)
    v = proj(2)

    hmask = hmask_ref[...]            # (NH, 1, D): 1.0 on head h's lanes, else 0.0
    n_bias_cols = bias_ref.shape[2]   # WW when shifted, 1 otherwise

    # --- per-window attention: windows along W are tile-aligned sublane slices,
    # so no transposes / concats / lane slicing are needed.
    for ww in range(WW):
        cols = slice(ww * ws, (ww + 1) * ws)
        qw = q[:, :, cols, :].reshape(B, N, D)                             # f32
        kb = k[:, :, cols, :].reshape(B, N, D).astype(jnp.bfloat16)
        vb = v[:, :, cols, :].reshape(B, N, D).astype(jnp.bfloat16)

        acc = jnp.zeros((B, N, D), jnp.float32)
        for h in range(NH):
            mh = hmask[h]                                                  # (1, D)
            qh = (qw * mh).astype(jnp.bfloat16)          # other heads' lanes -> 0
            s = jnp.einsum("bid,bjd->bij", qh, kb,
                           preferred_element_type=jnp.float32)             # (B, N, N)
            bias = bias_ref[0, h, ww if n_bias_cols > 1 else 0]
            s = s + bias.astype(jnp.float32)             # (N, N) broadcast over B
            # manual softmax: max/sum on XLU, exp + approx reciprocal on EUP.
            s = s - jnp.max(s, axis=-1, keepdims=True)
            e = jnp.exp(s)
            p = e * pl.reciprocal(jnp.sum(e, axis=-1, keepdims=True), approx=True)
            # TODO(synk): attention dropout omitted (attn_drop=0.0 / eval-mode identity).
            o_h = jnp.einsum("bij,bjd->bid", p.astype(jnp.bfloat16), vb,
                             preferred_element_type=jnp.float32)           # (B, N, D)
            acc = acc + o_h * mh                          # keep only head h's lanes
        o_ref[:, :, cols, :] = acc.reshape(B, ws, ws, D).astype(o_ref.dtype)


def window_attention(x, params, *, win_size, shift_size, num_heads):
    """x: (B, C, H, W) float32, NCHW.  Returns (B, dim_out, H, W)."""
    B, C, H, W = x.shape
    D = params["wqkv"].shape[1] // 3
    head_dim = D // num_heads
    scale = head_dim ** (-0.5)
    ws = win_size
    N = ws * ws
    WW = W // ws
    NWH = H // ws
    assert H % ws == 0 and W % ws == 0 and ws % 8 == 0, (
        "kernel assumes window edges aligned to the 8-sublane tiling")
    assert D % num_heads == 0

    # --- one-time parameter prep (tiny; precomputed once in a real model) ---
    wqkv = params["wqkv"].astype(jnp.float32)                              # (C, 3D)
    w3 = jnp.stack([wqkv[:, :D] * scale, wqkv[:, D:2 * D], wqkv[:, 2 * D:]],
                   axis=0).astype(jnp.bfloat16)                            # (3, C, D)
    b = params["bqkv"].reshape(3, 1, D).astype(jnp.float32)
    b3 = jnp.concatenate([b[:1] * scale, b[1:]], axis=0)                   # (3, 1, D)
    hmask = jnp.asarray(
        np.repeat(np.eye(num_heads, dtype=np.float32), head_dim, axis=1)
    ).reshape(num_heads, 1, D)                                             # (NH, 1, D)

    rel_bias = params["rel_bias"]                                          # (NH, N, N)
    if shift_size > 0:
        am = params["attn_mask"].reshape(NWH, WW, N, N)                    # shift mask
        bias_tab = (rel_bias[None, :, None] + am[:, None]).astype(jnp.bfloat16)
    else:
        bias_tab = rel_bias[None, :, None].astype(jnp.bfloat16)            # (1,NH,1,N,N)
    n_bias_rows = bias_tab.shape[0]
    n_bias_cols = bias_tab.shape[2]

    # --- activation path: only NCHW<->NHWC + the shift rolls remain outside the kernel.
    xp = jnp.transpose(x, (0, 2, 3, 1))                                    # (B, H, W, C)
    if shift_size > 0:
        xp = jnp.roll(xp, shift=(-shift_size, -shift_size), axis=(1, 2))

    kernel = functools.partial(
        _window_attn_kernel, num_heads=num_heads, win_size=ws, win_cols=WW, batch=B)

    bias_idx = ((lambda i: (i, 0, 0, 0, 0)) if n_bias_rows > 1
                else (lambda i: (0, 0, 0, 0, 0)))

    out = pl.pallas_call(
        kernel,
        out_shape=jax.ShapeDtypeStruct((B, H, W, D), jnp.float32),
        grid_spec=pltpu.PrefetchScalarGridSpec(
            num_scalar_prefetch=0,
            grid=(NWH,),                       # one window-row of all batches per step
            in_specs=[
                pl.BlockSpec((B, ws, W, C), lambda i: (0, i, 0, 0)),        # tokens
                pl.BlockSpec((3, C, D), lambda i: (0, 0, 0)),               # Wq|Wk|Wv bf16
                pl.BlockSpec((3, 1, D), lambda i: (0, 0, 0)),               # bq|bk|bv
                pl.BlockSpec((num_heads, 1, D), lambda i: (0, 0, 0)),       # head lane masks
                pl.BlockSpec((1, num_heads, n_bias_cols, N, N), bias_idx),  # bias(+mask) bf16
            ],
            out_specs=pl.BlockSpec((B, ws, W, D), lambda i: (0, i, 0, 0)),
        ),
        compiler_params=pltpu.CompilerParams(
            dimension_semantics=("parallel",),
        ),
    )(xp, w3, b3, hmask, bias_tab)

    if shift_size > 0:
        out = jnp.roll(out, shift=(shift_size, shift_size), axis=(1, 2))
    out = jnp.transpose(out, (0, 3, 1, 2))                                 # NCHW
    # stride == 1 -> nn.Identity() pool.
    # TODO(synk): AvgPool2d(2, 2) for stride=2 not implemented (config uses stride=1).
    return out


# ------------------------- pure-JAX reference (check) -------------------------

def reference_forward(x, params, *, win_size, shift_size, num_heads):
    B, C, H, W = x.shape
    D = params["wqkv"].shape[1] // 3
    head_dim = D // num_heads
    scale = head_dim ** (-0.5)
    N = win_size * win_size
    num_win = (H // win_size) * (W // win_size)

    xp = jnp.transpose(x, (0, 2, 3, 1))
    if shift_size > 0:
        xp = jnp.roll(xp, shift=(-shift_size, -shift_size), axis=(1, 2))
    xw = window_partition(xp, win_size).reshape(-1, N, C)
    BW = xw.shape[0]

    qkv = xw @ params["wqkv"] + params["bqkv"]
    q, k, v = qkv[..., :D], qkv[..., D:2 * D], qkv[..., 2 * D:]

    def heads(t):
        return t.reshape(BW, N, num_heads, head_dim).transpose(0, 2, 1, 3)

    qh, kh, vh = heads(q) * scale, heads(k), heads(v)
    attn = jnp.einsum("bhnd,bhmd->bhnm", qh, kh)
    attn = attn + params["rel_bias"][None]
    if shift_size > 0:
        attn = attn.reshape(B, num_win, num_heads, N, N) \
             + params["attn_mask"][None, :, None]
        attn = attn.reshape(BW, num_heads, N, N)
    attn = jax.nn.softmax(attn, axis=-1)
    out = jnp.einsum("bhnm,bhmd->bhnd", attn, vh)
    out = out.transpose(0, 2, 1, 3).reshape(BW, N, D)
    out = out.reshape(-1, win_size, win_size, D)
    xr = window_reverse(out, win_size, H, W)
    if shift_size > 0:
        xr = jnp.roll(xr, shift=(shift_size, shift_size), axis=(1, 2))
    return jnp.transpose(xr, (0, 3, 1, 2))


# ----------------------------------- main ------------------------------------

if __name__ == "__main__":
    # Module config (small, consistent with the PyTorch forward):
    B, dim, H, W = 2, 32, 16, 16
    dim_out = dim
    num_heads = 4
    win_size = 8
    shift_size = win_size // 2           # min(feat_size)=16 > win_size -> shift kept
    N = win_size * win_size

    key = jax.random.PRNGKey(0)
    k_x, k_w, k_b, k_t = jax.random.split(key, 4)

    x = jax.random.normal(k_x, (B, dim, H, W), dtype=jnp.float32)

    # Deterministic parameter init (synthetic; mimics nn.Linear(dim, 3*dim_out)).
    w_qkv = jax.random.normal(k_w, (3 * dim_out, dim), dtype=jnp.float32) * 0.05
    b_qkv = jax.random.normal(k_b, (3 * dim_out,), dtype=jnp.float32) * 0.05
    rel_table = jax.random.normal(
        k_t, ((2 * win_size - 1) * (2 * win_size - 1), num_heads),
        dtype=jnp.float32) * 0.02

    params = {
        "wqkv": w_qkv.T,                                 # (dim, 3*dim_out), cols [q|k|v]
        "bqkv": b_qkv.reshape(1, 3 * dim_out),
        "rel_bias": make_relative_position_bias(rel_table, win_size, num_heads),
        "attn_mask": make_attn_mask(H, W, win_size, shift_size),
    }

    out = window_attention(x, params, win_size=win_size,
                           shift_size=shift_size, num_heads=num_heads)
    out = jax.block_until_ready(out)

    ref = reference_forward(x, params, win_size=win_size,
                            shift_size=shift_size, num_heads=num_heads)
    ref = jax.block_until_ready(ref)

    assert out.shape == (B, dim_out, H, W), out.shape
    # bf16 MXU operands + approx-reciprocal softmax vs. the pure-f32 reference.
    np.testing.assert_allclose(np.asarray(out), np.asarray(ref), atol=2e-2, rtol=2e-2)
    print("KERNEL_OK")
</pallas_src>

<mosaic_0001>
module attributes {stable_mosaic.version = 11 : i64} {
  func.func @_window_attn_kernel(%arg0: i32, %arg1: memref<2x8x16x32xf32, #tpu.memory_space<vmem>>, %arg2: memref<3x32x32xbf16, #tpu.memory_space<vmem>>, %arg3: memref<3x1x32xf32, #tpu.memory_space<vmem>>, %arg4: memref<4x1x32xf32, #tpu.memory_space<vmem>>, %arg5: memref<1x4x2x64x64xbf16, #tpu.memory_space<vmem>>, %arg6: memref<2x8x16x32xf32, #tpu.memory_space<vmem>>) attributes {dimension_semantics = [#tpu.dimension_semantics<parallel>], iteration_bounds = array<i64: 2>, scalar_prefetch = 0 : i64, scratch_operands = 0 : i64, tpu.core_type = #tpu.core_type<tc>, window_params = [{transform_indices = @transform_0, window_bounds = array<i64: 2, 8, 16, 32>}, {pipeline_mode = #tpu.pipeline_mode<synchronous>, transform_indices = @transform_1, window_bounds = array<i64: 3, 32, 32>}, {pipeline_mode = #tpu.pipeline_mode<synchronous>, transform_indices = @transform_2, window_bounds = array<i64: 3, 1, 32>}, {pipeline_mode = #tpu.pipeline_mode<synchronous>, transform_indices = @transform_3, window_bounds = array<i64: 4, 1, 32>}, {transform_indices = @transform_4, window_bounds = array<i64: 1, 4, 2, 64, 64>}, {transform_indices = @transform_5, window_bounds = array<i64: 2, 8, 16, 32>}]} {
    %c0 = arith.constant 0 : index
    %c0_0 = arith.constant 0 : index
    %c0_1 = arith.constant 0 : index
    %c0_2 = arith.constant 0 : index
    %0 = vector.load %arg1[%c0, %c0_0, %c0_1, %c0_2] : memref<2x8x16x32xf32, #tpu.memory_space<vmem>>, vector<2x8x16x32xf32>
    %1 = vector.shape_cast %0 : vector<2x8x16x32xf32> to vector<256x32xf32>
    %2 = arith.truncf %1 : vector<256x32xf32> to vector<256x32xbf16>
    %c0_3 = arith.constant 0 : index
    %c0_4 = arith.constant 0 : index
    %c0_5 = arith.constant 0 : index
    %3 = vector.load %arg2[%c0_3, %c0_4, %c0_5] : memref<3x32x32xbf16, #tpu.memory_space<vmem>>, vector<1x32x32xbf16>
    %4 = vector.shape_cast %3 : vector<1x32x32xbf16> to vector<32x32xbf16>
    %cst = arith.constant dense<0.000000e+00> : vector<256x32xf32>
    %5 = tpu.matmul %2, %4, %cst {dimension_numbers = #tpu.dot_dimension_numbers<[1], [0], [0], [1], [0, 0, 1, 1], [], []>} : vector<256x32xbf16>, vector<32x32xbf16>, vector<256x32xf32> -> vector<256x32xf32>
    %c0_6 = arith.constant 0 : index
    %c0_7 = arith.constant 0 : index
    %c0_8 = arith.constant 0 : index
    %6 = vector.load %arg3[%c0_6, %c0_7, %c0_8] : memref<3x1x32xf32, #tpu.memory_space<vmem>>, vector<1x1x32xf32>
    %7 = vector.shape_cast %6 : vector<1x1x32xf32> to vector<1x32xf32>
    %8 = vector.broadcast %7 : vector<1x32xf32> to vector<256x32xf32>
    %9 = arith.addf %5, %8 : vector<256x32xf32>
    %10 = vector.shape_cast %9 : vector<256x32xf32> to vector<2x8x16x32xf32>
    %c1 = arith.constant 1 : index
    %c0_9 = arith.constant 0 : index
    %c0_10 = arith.constant 0 : index
    %11 = vector.load %arg2[%c1, %c0_9, %c0_10] : memref<3x32x32xbf16, #tpu.memory_space<vmem>>, vector<1x32x32xbf16>
    %12 = vector.shape_cast %11 : vector<1x32x32xbf16> to vector<32x32xbf16>
    %cst_11 = arith.constant dense<0.000000e+00> : vector<256x32xf32>
    %13 = tpu.matmul %2, %12, %cst_11 {dimension_numbers = #tpu.dot_dimension_numbers<[1], [0], [0], [1], [0, 0, 1, 1], [], []>} : vector<256x32xbf16>, vector<32x32xbf16>, vector<256x32xf32> -> vector<256x32xf32>
    %c1_12 = arith.constant 1 : index
    %c0_13 = arith.constant 0 : index
    %c0_14 = arith.constant 0 : index
    %14 = vector.load %arg3[%c1_12, %c0_13, %c0_14] : memref<3x1x32xf32, #tpu.memory_space<vmem>>, vector<1x1x32xf32>
    %15 = vector.shape_cast %14 : vector<1x1x32xf32> to vector<1x32xf32>
    %16 = vector.broadcast %15 : vector<1x32xf32> to vector<256x32xf32>
    %17 = arith.addf %13, %16 : vector<256x32xf32>
    %18 = vector.shape_cast %17 : vector<256x32xf32> to vector<2x8x16x32xf32>
    %c2 = arith.constant 2 : index
    %c0_15 = arith.constant 0 : index
    %c0_16 = arith.constant 0 : index
    %19 = vector.load %arg2[%c2, %c0_15, %c0_16] : memref<3x32x32xbf16, #tpu.memory_space<vmem>>, vector<1x32x32xbf16>
    %20 = vector.shape_cast %19 : vector<1x32x32xbf16> to vector<32x32xbf16>
    %cst_17 = arith.constant dense<0.000000e+00> : vector<256x32xf32>
    %21 = tpu.matmul %2, %20, %cst_17 {dimension_numbers = #tpu.dot_dimension_numbers<[1], [0], [0], [1], [0, 0, 1, 1], [], []>} : vector<256x32xbf16>, vector<32x32xbf16>, vector<256x32xf32> -> vector<256x32xf32>
    %c2_18 = arith.constant 2 : index
    %c0_19 = arith.constant 0 : index
    %c0_20 = arith.constant 0 : index
    %22 = vector.load %arg3[%c2_18, %c0_19, %c0_20] : memref<3x1x32xf32, #tpu.memory_space<vmem>>, vector<1x1x32xf32>
    %23 = vector.shape_cast %22 : vector<1x1x32xf32> to vector<1x32xf32>
    %24 = vector.broadcast %23 : vector<1x32xf32> to vector<256x32xf32>
    %25 = arith.addf %21, %24 : vector<256x32xf32>
    %26 = vector.shape_cast %25 : vector<256x32xf32> to vector<2x8x16x32xf32>
    %c0_21 = arith.constant 0 : index
    %c0_22 = arith.constant 0 : index
    %c0_23 = arith.constant 0 : index
    %27 = vector.load %arg4[%c0_21, %c0_22, %c0_23] : memref<4x1x32xf32, #tpu.memory_space<vmem>>, vector<4x1x32xf32>
    %28 = vector.extract_strided_slice %10 {offsets = [0, 0, 0, 0], sizes = [2, 8, 8, 32], strides = [1, 1, 1, 1]} : vector<2x8x16x32xf32> to vector<2x8x8x32xf32>
    %29 = vector.shape_cast %28 : vector<2x8x8x32xf32> to vector<2x64x32xf32>
    %30 = vector.extract_strided_slice %18 {offsets = [0, 0, 0, 0], sizes = [2, 8, 8, 32], strides = [1, 1, 1, 1]} : vector<2x8x16x32xf32> to vector<2x8x8x32xf32>
    %31 = vector.shape_cast %30 : vector<2x8x8x32xf32> to vector<2x64x32xf32>
    %32 = arith.truncf %31 : vector<2x64x32xf32> to vector<2x64x32xbf16>
    %33 = vector.extract_strided_slice %26 {offsets = [0, 0, 0, 0], sizes = [2, 8, 8, 32], strides = [1, 1, 1, 1]} : vector<2x8x16x32xf32> to vector<2x8x8x32xf32>
    %34 = vector.shape_cast %33 : vector<2x8x8x32xf32> to vector<2x64x32xf32>
    %35 = arith.truncf %34 : vector<2x64x32xf32> to vector<2x64x32xbf16>
    %cst_24 = arith.constant 0.000000e+00 : f32
    %36 = vector.broadcast %cst_24 : f32 to vector<2x64x32xf32>
    %37 = vector.extract_strided_slice %27 {offsets = [0, 0, 0], sizes = [1, 1, 32], strides = [1, 1, 1]} : vector<4x1x32xf32> to vector<1x1x32xf32>
    %38 = vector.shape_cast %37 : vector<1x1x32xf32> to vector<1x32xf32>
    %39 = vector.shape_cast %38 : vector<1x32xf32> to vector<1x1x32xf32>
    %40 = vector.broadcast %39 : vector<1x1x32xf32> to vector<2x64x32xf32>
    %41 = arith.mulf %29, %40 : vector<2x64x32xf32>
    %42 = arith.truncf %41 : vector<2x64x32xf32> to vector<2x64x32xbf16>
    "tpu.trace_start"() <{level = 10 : i32, message = "bid,bjd->bij"}> : () -> ()
    %cst_25 = arith.constant dense<0.000000e+00> : vector<2x64x64xf32>
    %43 = tpu.matmul %42, %32, %cst_25 {dimension_numbers = #tpu.dot_dimension_numbers<[2], [2], [1], [1], [0, 0, 0, 1, 1, 1], [0], [0]>} : vector<2x64x32xbf16>, vector<2x64x32xbf16>, vector<2x64x64xf32> -> vector<2x64x64xf32>
    "tpu.trace_stop"() : () -> ()
    %c0_26 = arith.constant 0 : index
    %c0_27 = arith.constant 0 : index
    %c0_28 = arith.constant 0 : index
    %c0_29 = arith.constant 0 : index
    %c0_30 = arith.constant 0 : index
    %44 = vector.load %arg5[%c0_26, %c0_27, %c0_28, %c0_29, %c0_30] : memref<1x4x2x64x64xbf16, #tpu.memory_space<vmem>>, vector<1x1x1x64x64xbf16>
    %45 = vector.shape_cast %44 : vector<1x1x1x64x64xbf16> to vector<64x64xbf16>
    %46 = arith.extf %45 : vector<64x64xbf16> to vector<64x64xf32>
    %47 = vector.shape_cast %46 : vector<64x64xf32> to vector<1x64x64xf32>
    %48 = vector.broadcast %47 : vector<1x64x64xf32> to vector<2x64x64xf32>
    %49 = arith.addf %43, %48 : vector<2x64x64xf32>
    %cst_31 = arith.constant dense<0xFF800000> : vector<2x64xf32>
    %50 = vector.multi_reduction <maximumf>, %49, %cst_31 [2] : vector<2x64x64xf32> to vector<2x64xf32>
    %51 = vector.shape_cast %50 : vector<2x64xf32> to vector<2x64x1xf32>
    %52 = vector.broadcast %51 : vector<2x64x1xf32> to vector<2x64x64xf32>
    %53 = arith.subf %49, %52 : vector<2x64x64xf32>
    %54 = math.exp %53 : vector<2x64x64xf32>
    %cst_32 = arith.constant dense<0.000000e+00> : vector<2x64xf32>
    %55 = vector.multi_reduction <add>, %54, %cst_32 [2] : vector<2x64x64xf32> to vector<2x64xf32>
    %56 = vector.shape_cast %55 : vector<2x64xf32> to vector<2x64x1xf32>
    %57 = tpu.reciprocal %56 {approx = true} : vector<2x64x1xf32> -> vector<2x64x1xf32>
    %58 = vector.broadcast %57 : vector<2x64x1xf32> to vector<2x64x64xf32>
    %59 = arith.mulf %54, %58 : vector<2x64x64xf32>
    %60 = arith.truncf %59 : vector<2x64x64xf32> to vector<2x64x64xbf16>
    "tpu.trace_start"() <{level = 10 : i32, message = "bij,bjd->bid"}> : () -> ()
    %cst_33 = arith.constant dense<0.000000e+00> : vector<2x64x32xf32>
    %61 = tpu.matmul %60, %35, %cst_33 {dimension_numbers = #tpu.dot_dimension_numbers<[2], [1], [1], [2], [0, 0, 0, 1, 1, 2], [0], [0]>} : vector<2x64x64xbf16>, vector<2x64x32xbf16>, vector<2x64x32xf32> -> vector<2x64x32xf32>
    "tpu.trace_stop"() : () -> ()
    %62 = vector.shape_cast %38 : vector<1x32xf32> to vector<1x1x32xf32>
    %63 = vector.broadcast %62 : vector<1x1x32xf32> to vector<2x64x32xf32>
    %64 = arith.mulf %61, %63 : vector<2x64x32xf32>
    %65 = arith.addf %36, %64 : vector<2x64x32xf32>
    %66 = vector.extract_strided_slice %27 {offsets = [1, 0, 0], sizes = [1, 1, 32], strides = [1, 1, 1]} : vector<4x1x32xf32> to vector<1x1x32xf32>
    %67 = vector.shape_cast %66 : vector<1x1x32xf32> to vector<1x32xf32>
    %68 = vector.shape_cast %67 : vector<1x32xf32> to vector<1x1x32xf32>
    %69 = vector.broadcast %68 : vector<1x1x32xf32> to vector<2x64x32xf32>
    %70 = arith.mulf %29, %69 : vector<2x64x32xf32>
    %71 = arith.truncf %70 : vector<2x64x32xf32> to vector<2x64x32xbf16>
    "tpu.trace_start"() <{level = 10 : i32, message = "bid,bjd->bij"}> : () -> ()
    %cst_34 = arith.constant dense<0.000000e+00> : vector<2x64x64xf32>
    %72 = tpu.matmul %71, %32, %cst_34 {dimension_numbers = #tpu.dot_dimension_numbers<[2], [2], [1], [1], [0, 0, 0, 1, 1, 1], [0], [0]>} : vector<2x64x32xbf16>, vector<2x64x32xbf16>, vector<2x64x64xf32> -> vector<2x64x64xf32>
    "tpu.trace_stop"() : () -> ()
    %c0_35 = arith.constant 0 : index
    %c1_36 = arith.constant 1 : index
    %c0_37 = arith.constant 0 : index
    %c0_38 = arith.constant 0 : index
    %c0_39 = arith.constant 0 : index
    %73 = vector.load %arg5[%c0_35, %c1_36, %c0_37, %c0_38, %c0_39] : memref<1x4x2x64x64xbf16, #tpu.memory_space<vmem>>, vector<1x1x1x64x64xbf16>
    %74 = vector.shape_cast %73 : vector<1x1x1x64x64xbf16> to vector<64x64xbf16>
    %75 = arith.extf %74 : vector<64x64xbf16> to vector<64x64xf32>
    %76 = vector.shape_cast %75 : vector<64x64xf32> to vector<1x64x64xf32>
    %77 = vector.broadcast %76 : vector<1x64x64xf32> to vector<2x64x64xf32>
    %78 = arith.addf %72, %77 : vector<2x64x64xf32>
    %cst_40 = arith.constant dense<0xFF800000> : vector<2x64xf32>
    %79 = vector.multi_reduction <maximumf>, %78, %cst_40 [2] : vector<2x64x64xf32> to vector<2x64xf32>
    %80 = vector.shape_cast %79 : vector<2x64xf32> to vector<2x64x1xf32>
    %81 = vector.broadcast %80 : vector<2x64x1xf32> to vector<2x64x64xf32>
    %82 = arith.subf %78, %81 : vector<2x64x64xf32>
    %83 = math.exp %82 : vector<2x64x64xf32>
    %cst_41 = arith.constant dense<0.000000e+00> : vector<2x64xf32>
    %84 = vector.multi_reduction <add>, %83, %cst_41 [2] : vector<2x64x64xf32> to vector<2x64xf32>
    %85 = vector.shape_cast %84 : vector<2x64xf32> to vector<2x64x1xf32>
    %86 = tpu.reciprocal %85 {approx = true} : vector<2x64x1xf32> -> vector<2x64x1xf32>
    %87 = vector.broadcast %86 : vector<2x64x1xf32> to vector<2x64x64xf32>
    %88 = arith.mulf %83, %87 : vector<2x64x64xf32>
    %89 = arith.truncf %88 : vector<2x64x64xf32> to vector<2x64x64xbf16>
    "tpu.trace_start"() <{level = 10 : i32, message = "bij,bjd->bid"}> : () -> ()
    %cst_42 = arith.constant dense<0.000000e+00> : vector<2x64x32xf32>
    %90 = tpu.matmul %89, %35, %cst_42 {dimension_numbers = #tpu.dot_dimension_numbers<[2], [1], [1], [2], [0, 0, 0, 1, 1, 2], [0], [0]>} : vector<2x64x64xbf16>, vector<2x64x32xbf16>, vector<2x64x32xf32> -> vector<2x64x32xf32>
    "tpu.trace_stop"() : () -> ()
    %91 = vector.shape_cast %67 : vector<1x32xf32> to vector<1x1x32xf32>
    %92 = vector.broadcast %91 : vector<1x1x32xf32> to vector<2x64x32xf32>
    %93 = arith.mulf %90, %92 : vector<2x64x32xf32>
    %94 = arith.addf %65, %93 : vector<2x64x32xf32>
    %95 = vector.extract_strided_slice %27 {offsets = [2, 0, 0], sizes = [1, 1, 32], strides = [1, 1, 1]} : vector<4x1x32xf32> to vector<1x1x32xf32>
    %96 = vector.shape_cast %95 : vector<1x1x32xf32> to vector<1x32xf32>
    %97 = vector.shape_cast %96 : vector<1x32xf32> to vector<1x1x32xf32>
    %98 = vector.broadcast %97 : vector<1x1x32xf32> to vector<2x64x32xf32>
    %99 = arith.mulf %29, %98 : vector<2x64x32xf32>
    %100 = arith.truncf %99 : vector<2x64x32xf32> to vector<2x64x32xbf16>
    "tpu.trace_start"() <{level = 10 : i32, message = "bid,bjd->bij"}> : () -> ()
    %cst_43 = arith.constant dense<0.000000e+00> : vector<2x64x64xf32>
    %101 = tpu.matmul %100, %32, %cst_43 {dimension_numbers = #tpu.dot_dimension_numbers<[2], [2], [1], [1], [0, 0, 0, 1, 1, 1], [0], [0]>} : vector<2x64x32xbf16>, vector<2x64x32xbf16>, vector<2x64x64xf32> -> vector<2x64x64xf32>
    "tpu.trace_stop"() : () -> ()
    %c0_44 = arith.constant 0 : index
    %c2_45 = arith.constant 2 : index
    %c0_46 = arith.constant 0 : index
    %c0_47 = arith.constant 0 : index
    %c0_48 = arith.constant 0 : index
    %102 = vector.load %arg5[%c0_44, %c2_45, %c0_46, %c0_47, %c0_48] : memref<1x4x2x64x64xbf16, #tpu.memory_space<vmem>>, vector<1x1x1x64x64xbf16>
    %103 = vector.shape_cast %102 : vector<1x1x1x64x64xbf16> to vector<64x64xbf16>
    %104 = arith.extf %103 : vector<64x64xbf16> to vector<64x64xf32>
    %105 = vector.shape_cast %104 : vector<64x64xf32> to vector<1x64x64xf32>
    %106 = vector.broadcast %105 : vector<1x64x64xf32> to vector<2x64x64xf32>
    %107 = arith.addf %101, %106 : vector<2x64x64xf32>
    %cst_49 = arith.constant dense<0xFF800000> : vector<2x64xf32>
    %108 = vector.multi_reduction <maximumf>, %107, %cst_49 [2] : vector<2x64x64xf32> to vector<2x64xf32>
    %109 = vector.shape_cast %108 : vector<2x64xf32> to vector<2x64x1xf32>
    %110 = vector.broadcast %109 : vector<2x64x1xf32> to vector<2x64x64xf32>
    %111 = arith.subf %107, %110 : vector<2x64x64xf32>
    %112 = math.exp %111 : vector<2x64x64xf32>
    %cst_50 = arith.constant dense<0.000000e+00> : vector<2x64xf32>
    %113 = vector.multi_reduction <add>, %112, %cst_50 [2] : vector<2x64x64xf32> to vector<2x64xf32>
    %114 = vector.shape_cast %113 : vector<2x64xf32> to vector<2x64x1xf32>
    %115 = tpu.reciprocal %114 {approx = true} : vector<2x64x1xf32> -> vector<2x64x1xf32>
    %116 = vector.broadcast %115 : vector<2x64x1xf32> to vector<2x64x64xf32>
    %117 = arith.mulf %112, %116 : vector<2x64x64xf32>
    %118 = arith.truncf %117 : vector<2x64x64xf32> to vector<2x64x64xbf16>
    "tpu.trace_start"() <{level = 10 : i32, message = "bij,bjd->bid"}> : () -> ()
    %cst_51 = arith.constant dense<0.000000e+00> : vector<2x64x32xf32>
    %119 = tpu.matmul %118, %35, %cst_51 {dimension_numbers = #tpu.dot_dimension_numbers<[2], [1], [1], [2], [0, 0, 0, 1, 1, 2], [0], [0]>} : vector<2x64x64xbf16>, vector<2x64x32xbf16>, vector<2x64x32xf32> -> vector<2x64x32xf32>
    "tpu.trace_stop"() : () -> ()
    %120 = vector.shape_cast %96 : vector<1x32xf32> to vector<1x1x32xf32>
    %121 = vector.broadcast %120 : vector<1x1x32xf32> to vector<2x64x32xf32>
    %122 = arith.mulf %119, %121 : vector<2x64x32xf32>
    %123 = arith.addf %94, %122 : vector<2x64x32xf32>
    %124 = vector.extract_strided_slice %27 {offsets = [3, 0, 0], sizes = [1, 1, 32], strides = [1, 1, 1]} : vector<4x1x32xf32> to vector<1x1x32xf32>
    %125 = vector.shape_cast %124 : vector<1x1x32xf32> to vector<1x32xf32>
    %126 = vector.shape_cast %125 : vector<1x32xf32> to vector<1x1x32xf32>
    %127 = vector.broadcast %126 : vector<1x1x32xf32> to vector<2x64x32xf32>
    %128 = arith.mulf %29, %127 : vector<2x64x32xf32>
    %129 = arith.truncf %128 : vector<2x64x32xf32> to vector<2x64x32xbf16>
    "tpu.trace_start"() <{level = 10 : i32, message = "bid,bjd->bij"}> : () -> ()
    %cst_52 = arith.constant dense<0.000000e+00> : vector<2x64x64xf32>
    %130 = tpu.matmul %129, %32, %cst_52 {dimension_numbers = #tpu.dot_dimension_numbers<[2], [2], [1], [1], [0, 0, 0, 1, 1, 1], [0], [0]>} : vector<2x64x32xbf16>, vector<2x64x32xbf16>, vector<2x64x64xf32> -> vector<2x64x64xf32>
    "tpu.trace_stop"() : () -> ()
    %c0_53 = arith.constant 0 : index
    %c3 = arith.constant 3 : index
    %c0_54 = arith.constant 0 : index
    %c0_55 = arith.constant 0 : index
    %c0_56 = arith.constant 0 : index
    %131 = vector.load %arg5[%c0_53, %c3, %c0_54, %c0_55, %c0_56] : memref<1x4x2x64x64xbf16, #tpu.memory_space<vmem>>, vector<1x1x1x64x64xbf16>
    %132 = vector.shape_cast %131 : vector<1x1x1x64x64xbf16> to vector<64x64xbf16>
    %133 = arith.extf %132 : vector<64x64xbf16> to vector<64x64xf32>
    %134 = vector.shape_cast %133 : vector<64x64xf32> to vector<1x64x64xf32>
    %135 = vector.broadcast %134 : vector<1x64x64xf32> to vector<2x64x64xf32>
    %136 = arith.addf %130, %135 : vector<2x64x64xf32>
    %cst_57 = arith.constant dense<0xFF800000> : vector<2x64xf32>
    %137 = vector.multi_reduction <maximumf>, %136, %cst_57 [2] : vector<2x64x64xf32> to vector<2x64xf32>
    %138 = vector.shape_cast %137 : vector<2x64xf32> to vector<2x64x1xf32>
    %139 = vector.broadcast %138 : vector<2x64x1xf32> to vector<2x64x64xf32>
    %140 = arith.subf %136, %139 : vector<2x64x64xf32>
    %141 = math.exp %140 : vector<2x64x64xf32>
    %cst_58 = arith.constant dense<0.000000e+00> : vector<2x64xf32>
    %142 = vector.multi_reduction <add>, %141, %cst_58 [2] : vector<2x64x64xf32> to vector<2x64xf32>
    %143 = vector.shape_cast %142 : vector<2x64xf32> to vector<2x64x1xf32>
    %144 = tpu.reciprocal %143 {approx = true} : vector<2x64x1xf32> -> vector<2x64x1xf32>
    %145 = vector.broadcast %144 : vector<2x64x1xf32> to vector<2x64x64xf32>
    %146 = arith.mulf %141, %145 : vector<2x64x64xf32>
    %147 = arith.truncf %146 : vector<2x64x64xf32> to vector<2x64x64xbf16>
    "tpu.trace_start"() <{level = 10 : i32, message = "bij,bjd->bid"}> : () -> ()
    %cst_59 = arith.constant dense<0.000000e+00> : vector<2x64x32xf32>
    %148 = tpu.matmul %147, %35, %cst_59 {dimension_numbers = #tpu.dot_dimension_numbers<[2], [1], [1], [2], [0, 0, 0, 1, 1, 2], [0], [0]>} : vector<2x64x64xbf16>, vector<2x64x32xbf16>, vector<2x64x32xf32> -> vector<2x64x32xf32>
    "tpu.trace_stop"() : () -> ()
    %149 = vector.shape_cast %125 : vector<1x32xf32> to vector<1x1x32xf32>
    %150 = vector.broadcast %149 : vector<1x1x32xf32> to vector<2x64x32xf32>
    %151 = arith.mulf %148, %150 : vector<2x64x32xf32>
    %152 = arith.addf %123, %151 : vector<2x64x32xf32>
    %153 = vector.shape_cast %152 : vector<2x64x32xf32> to vector<2x8x8x32xf32>
    %c0_60 = arith.constant 0 : index
    %c0_61 = arith.constant 0 : index
    %c0_62 = arith.constant 0 : index
    %c0_63 = arith.constant 0 : index
    %154 = vector.load %arg6[%c0_60, %c0_61, %c0_62, %c0_63] : memref<2x8x16x32xf32, #tpu.memory_space<vmem>>, vector<2x8x8x32xf32>
    tpu.vector_store %arg6[%c0_60, %c0_61, %c0_62, %c0_63], %153 {strides = array<i32>} : memref<2x8x16x32xf32, #tpu.memory_space<vmem>>, vector<2x8x8x32xf32>,
    %155 = vector.extract_strided_slice %10 {offsets = [0, 0, 8, 0], sizes = [2, 8, 8, 32], strides = [1, 1, 1, 1]} : vector<2x8x16x32xf32> to vector<2x8x8x32xf32>
    %156 = vector.shape_cast %155 : vector<2x8x8x32xf32> to vector<2x64x32xf32>
    %157 = vector.extract_strided_slice %18 {offsets = [0, 0, 8, 0], sizes = [2, 8, 8, 32], strides = [1, 1, 1, 1]} : vector<2x8x16x32xf32> to vector<2x8x8x32xf32>
    %158 = vector.shape_cast %157 : vector<2x8x8x32xf32> to vector<2x64x32xf32>
    %159 = arith.truncf %158 : vector<2x64x32xf32> to vector<2x64x32xbf16>
    %160 = vector.extract_strided_slice %26 {offsets = [0, 0, 8, 0], sizes = [2, 8, 8, 32], strides = [1, 1, 1, 1]} : vector<2x8x16x32xf32> to vector<2x8x8x32xf32>
    %161 = vector.shape_cast %160 : vector<2x8x8x32xf32> to vector<2x64x32xf32>
    %162 = arith.truncf %161 : vector<2x64x32xf32> to vector<2x64x32xbf16>
    %cst_64 = arith.constant 0.000000e+00 : f32
    %163 = vector.broadcast %cst_64 : f32 to vector<2x64x32xf32>
    %164 = vector.extract_strided_slice %27 {offsets = [0, 0, 0], sizes = [1, 1, 32], strides = [1, 1, 1]} : vector<4x1x32xf32> to vector<1x1x32xf32>
    %165 = vector.shape_cast %164 : vector<1x1x32xf32> to vector<1x32xf32>
    %166 = vector.shape_cast %165 : vector<1x32xf32> to vector<1x1x32xf32>
    %167 = vector.broadcast %166 : vector<1x1x32xf32> to vector<2x64x32xf32>
    %168 = arith.mulf %156, %167 : vector<2x64x32xf32>
    %169 = arith.truncf %168 : vector<2x64x32xf32> to vector<2x64x32xbf16>
    "tpu.trace_start"() <{level = 10 : i32, message = "bid,bjd->bij"}> : () -> ()
    %cst_65 = arith.constant dense<0.000000e+00> : vector<2x64x64xf32>
    %170 = tpu.matmul %169, %159, %cst_65 {dimension_numbers = #tpu.dot_dimension_numbers<[2], [2], [1], [1], [0, 0, 0, 1, 1, 1], [0], [0]>} : vector<2x64x32xbf16>, vector<2x64x32xbf16>, vector<2x64x64xf32> -> vector<2x64x64xf32>
    "tpu.trace_stop"() : () -> ()
    %c0_66 = arith.constant 0 : index
    %c0_67 = arith.constant 0 : index
    %c1_68 = arith.constant 1 : index
    %c0_69 = arith.constant 0 : index
    %c0_70 = arith.constant 0 : index
    %171 = vector.load %arg5[%c0_66, %c0_67, %c1_68, %c0_69, %c0_70] : memref<1x4x2x64x64xbf16, #tpu.memory_space<vmem>>, vector<1x1x1x64x64xbf16>
    %172 = vector.shape_cast %171 : vector<1x1x1x64x64xbf16> to vector<64x64xbf16>
    %173 = arith.extf %172 : vector<64x64xbf16> to vector<64x64xf32>
    %174 = vector.shape_cast %173 : vector<64x64xf32> to vector<1x64x64xf32>
    %175 = vector.broadcast %174 : vector<1x64x64xf32> to vector<2x64x64xf32>
    %176 = arith.addf %170, %175 : vector<2x64x64xf32>
    %cst_71 = arith.constant dense<0xFF800000> : vector<2x64xf32>
    %177 = vector.multi_reduction <maximumf>, %176, %cst_71 [2] : vector<2x64x64xf32> to vector<2x64xf32>
    %178 = vector.shape_cast %177 : vector<2x64xf32> to vector<2x64x1xf32>
    %179 = vector.broadcast %178 : vector<2x64x1xf32> to vector<2x64x64xf32>
    %180 = arith.subf %176, %179 : vector<2x64x64xf32>
    %181 = math.exp %180 : vector<2x64x64xf32>
    %cst_72 = arith.constant dense<0.000000e+00> : vector<2x64xf32>
    %182 = vector.multi_reduction <add>, %181, %cst_72 [2] : vector<2x64x64xf32> to vector<2x64xf32>
    %183 = vector.shape_cast %182 : vector<2x64xf32> to vector<2x64x1xf32>
    %184 = tpu.reciprocal %183 {approx = true} : vector<2x64x1xf32> -> vector<2x64x1xf32>
    %185 = vector.broadcast %184 : vector<2x64x1xf32> to vector<2x64x64xf32>
    %186 = arith.mulf %181, %185 : vector<2x64x64xf32>
    %187 = arith.truncf %186 : vector<2x64x64xf32> to vector<2x64x64xbf16>
    "tpu.trace_start"() <{level = 10 : i32, message = "bij,bjd->bid"}> : () -> ()
    %cst_73 = arith.constant dense<0.000000e+00> : vector<2x64x32xf32>
    %188 = tpu.matmul %187, %162, %cst_73 {dimension_numbers = #tpu.dot_dimension_numbers<[2], [1], [1], [2], [0, 0, 0, 1, 1, 2], [0], [0]>} : vector<2x64x64xbf16>, vector<2x64x32xbf16>, vector<2x64x32xf32> -> vector<2x64x32xf32>
    "tpu.trace_stop"() : () -> ()
    %189 = vector.shape_cast %165 : vector<1x32xf32> to vector<1x1x32xf32>
    %190 = vector.broadcast %189 : vector<1x1x32xf32> to vector<2x64x32xf32>
    %191 = arith.mulf %188, %190 : vector<2x64x32xf32>
    %192 = arith.addf %163, %191 : vector<2x64x32xf32>
    %193 = vector.extract_strided_slice %27 {offsets = [1, 0, 0], sizes = [1, 1, 32], strides = [1, 1, 1]} : vector<4x1x32xf32> to vector<1x1x32xf32>
    %194 = vector.shape_cast %193 : vector<1x1x32xf32> to vector<1x32xf32>
    %195 = vector.shape_cast %194 : vector<1x32xf32> to vector<1x1x32xf32>
    %196 = vector.broadcast %195 : vector<1x1x32xf32> to vector<2x64x32xf32>
    %197 = arith.mulf %156, %196 : vector<2x64x32xf32>
    %198 = arith.truncf %197 : vector<2x64x32xf32> to vector<2x64x32xbf16>
    "tpu.trace_start"() <{level = 10 : i32, message = "bid,bjd->bij"}> : () -> ()
    %cst_74 = arith.constant dense<0.000000e+00> : vector<2x64x64xf32>
    %199 = tpu.matmul %198, %159, %cst_74 {dimension_numbers = #tpu.dot_dimension_numbers<[2], [2], [1], [1], [0, 0, 0, 1, 1, 1], [0], [0]>} : vector<2x64x32xbf16>, vector<2x64x32xbf16>, vector<2x64x64xf32> -> vector<2x64x64xf32>
    "tpu.trace_stop"() : () -> ()
    %c0_75 = arith.constant 0 : index
    %c1_76 = arith.constant 1 : index
    %c1_77 = arith.constant 1 : index
    %c0_78 = arith.constant 0 : index
    %c0_79 = arith.constant 0 : index
    %200 = vector.load %arg5[%c0_75, %c1_76, %c1_77, %c0_78, %c0_79] : memref<1x4x2x64x64xbf16, #tpu.memory_space<vmem>>, vector<1x1x1x64x64xbf16>
    %201 = vector.shape_cast %200 : vector<1x1x1x64x64xbf16> to vector<64x64xbf16>
    %202 = arith.extf %201 : vector<64x64xbf16> to vector<64x64xf32>
    %203 = vector.shape_cast %202 : vector<64x64xf32> to vector<1x64x64xf32>
    %204 = vector.broadcast %203 : vector<1x64x64xf32> to vector<2x64x64xf32>
    %205 = arith.addf %199, %204 : vector<2x64x64xf32>
    %cst_80 = arith.constant dense<0xFF800000> : vector<2x64xf32>
    %206 = vector.multi_reduction <maximumf>, %205, %cst_80 [2] : vector<2x64x64xf32> to vector<2x64xf32>
    %207 = vector.shape_cast %206 : vector<2x64xf32> to vector<2x64x1xf32>
    %208 = vector.broadcast %207 : vector<2x64x1xf32> to vector<2x64x64xf32>
    %209 = arith.subf %205, %208 : vector<2x64x64xf32>
    %210 = math.exp %209 : vector<2x64x64xf32>
    %cst_81 = arith.constant dense<0.000000e+00> : vector<2x64xf32>
    %211 = vector.multi_reduction <add>, %210, %cst_81 [2] : vector<2x64x64xf32> to vector<2x64xf32>
    %212 = vector.shape_cast %211 : vector<2x64xf32> to vector<2x64x1xf32>
    %213 = tpu.reciprocal %212 {approx = true} : vector<2x64x1xf32> -> vector<2x64x1xf32>
    %214 = vector.broadcast %213 : vector<2x64x1xf32> to vector<2x64x64xf32>
    %215 = arith.mulf %210, %214 : vector<2x64x64xf32>
    %216 = arith.truncf %215 : vector<2x64x64xf32> to vector<2x64x64xbf16>
    "tpu.trace_start"() <{level = 10 : i32, message = "bij,bjd->bid"}> : () -> ()
    %cst_82 = arith.constant dense<0.000000e+00> : vector<2x64x32xf32>
    %217 = tpu.matmul %216, %162, %cst_82 {dimension_numbers = #tpu.dot_dimension_numbers<[2], [1], [1], [2], [0, 0, 0, 1, 1, 2], [0], [0]>} : vector<2x64x64xbf16>, vector<2x64x32xbf16>, vector<2x64x32xf32> -> vector<2x64x32xf32>
    "tpu.trace_stop"() : () -> ()
    %218 = vector.shape_cast %194 : vector<1x32xf32> to vector<1x1x32xf32>
    %219 = vector.broadcast %218 : vector<1x1x32xf32> to vector<2x64x32xf32>
    %220 = arith.mulf %217, %219 : vector<2x64x32xf32>
    %221 = arith.addf %192, %220 : vector<2x64x32xf32>
    %222 = vector.extract_strided_slice %27 {offsets = [2, 0, 0], sizes = [1, 1, 32], strides = [1, 1, 1]} : vector<4x1x32xf32> to vector<1x1x32xf32>
    %223 = vector.shape_cast %222 : vector<1x1x32xf32> to vector<1x32xf32>
    %224 = vector.shape_cast %223 : vector<1x32xf32> to vector<1x1x32xf32>
    %225 = vector.broadcast %224 : vector<1x1x32xf32> to vector<2x64x32xf32>
    %226 = arith.mulf %156, %225 : vector<2x64x32xf32>
    %227 = arith.truncf %226 : vector<2x64x32xf32> to vector<2x64x32xbf16>
    "tpu.trace_start"() <{level = 10 : i32, message = "bid,bjd->bij"}> : () -> ()
    %cst_83 = arith.constant dense<0.000000e+00> : vector<2x64x64xf32>
    %228 = tpu.matmul %227, %159, %cst_83 {dimension_numbers = #tpu.dot_dimension_numbers<[2], [2], [1], [1], [0, 0, 0, 1, 1, 1], [0], [0]>} : vector<2x64x32xbf16>, vector<2x64x32xbf16>, vector<2x64x64xf32> -> vector<2x64x64xf32>
    "tpu.trace_stop"() : () -> ()
    %c0_84 = arith.constant 0 : index
    %c2_85 = arith.constant 2 : index
    %c1_86 = arith.constant 1 : index
    %c0_87 = arith.constant 0 : index
    %c0_88 = arith.constant 0 : index
    %229 = vector.load %arg5[%c0_84, %c2_85, %c1_86, %c0_87, %c0_88] : memref<1x4x2x64x64xbf16, #tpu.memory_space<vmem>>, vector<1x1x1x64x64xbf16>
    %230 = vector.shape_cast %229 : vector<1x1x1x64x64xbf16> to vector<64x64xbf16>
    %231 = arith.extf %230 : vector<64x64xbf16> to vector<64x64xf32>
    %232 = vector.shape_cast %231 : vector<64x64xf32> to vector<1x64x64xf32>
    %233 = vector.broadcast %232 : vector<1x64x64xf32> to vector<2x64x64xf32>
    %234 = arith.addf %228, %233 : vector<2x64x64xf32>
    %cst_89 = arith.constant dense<0xFF800000> : vector<2x64xf32>
    %235 = vector.multi_reduction <maximumf>, %234, %cst_89 [2] : vector<2x64x64xf32> to vector<2x64xf32>
    %236 = vector.shape_cast %235 : vector<2x64xf32> to vector<2x64x1xf32>
    %237 = vector.broadcast %236 : vector<2x64x1xf32> to vector<2x64x64xf32>
    %238 = arith.subf %234, %237 : vector<2x64x64xf32>
    %239 = math.exp %238 : vector<2x64x64xf32>
    %cst_90 = arith.constant dense<0.000000e+00> : vector<2x64xf32>
    %240 = vector.multi_reduction <add>, %239, %cst_90 [2] : vector<2x64x64xf32> to vector<2x64xf32>
    %241 = vector.shape_cast %240 : vector<2x64xf32> to vector<2x64x1xf32>
    %242 = tpu.reciprocal %241 {approx = true} : vector<2x64x1xf32> -> vector<2x64x1xf32>
    %243 = vector.broadcast %242 : vector<2x64x1xf32> to vector<2x64x64xf32>
    %244 = arith.mulf %239, %243 : vector<2x64x64xf32>
    %245 = arith.truncf %244 : vector<2x64x64xf32> to vector<2x64x64xbf16>
    "tpu.trace_start"() <{level = 10 : i32, message = "bij,bjd->bid"}> : () -> ()
    %cst_91 = arith.constant dense<0.000000e+00> : vector<2x64x32xf32>
    %246 = tpu.matmul %245, %162, %cst_91 {dimension_numbers = #tpu.dot_dimension_numbers<[2], [1], [1], [2], [0, 0, 0, 1, 1, 2], [0], [0]>} : vector<2x64x64xbf16>, vector<2x64x32xbf16>, vector<2x64x32xf32> -> vector<2x64x32xf32>
    "tpu.trace_stop"() : () -> ()
    %247 = vector.shape_cast %223 : vector<1x32xf32> to vector<1x1x32xf32>
    %248 = vector.broadcast %247 : vector<1x1x32xf32> to vector<2x64x32xf32>
    %249 = arith.mulf %246, %248 : vector<2x64x32xf32>
    %250 = arith.addf %221, %249 : vector<2x64x32xf32>
    %251 = vector.extract_strided_slice %27 {offsets = [3, 0, 0], sizes = [1, 1, 32], strides = [1, 1, 1]} : vector<4x1x32xf32> to vector<1x1x32xf32>
    %252 = vector.shape_cast %251 : vector<1x1x32xf32> to vector<1x32xf32>
    %253 = vector.shape_cast %252 : vector<1x32xf32> to vector<1x1x32xf32>
    %254 = vector.broadcast %253 : vector<1x1x32xf32> to vector<2x64x32xf32>
    %255 = arith.mulf %156, %254 : vector<2x64x32xf32>
    %256 = arith.truncf %255 : vector<2x64x32xf32> to vector<2x64x32xbf16>
    "tpu.trace_start"() <{level = 10 : i32, message = "bid,bjd->bij"}> : () -> ()
    %cst_92 = arith.constant dense<0.000000e+00> : vector<2x64x64xf32>
    %257 = tpu.matmul %256, %159, %cst_92 {dimension_numbers = #tpu.dot_dimension_numbers<[2], [2], [1], [1], [0, 0, 0, 1, 1, 1], [0], [0]>} : vector<2x64x32xbf16>, vector<2x64x32xbf16>, vector<2x64x64xf32> -> vector<2x64x64xf32>
    "tpu.trace_stop"() : () -> ()
    %c0_93 = arith.constant 0 : index
    %c3_94 = arith.constant 3 : index
    %c1_95 = arith.constant 1 : index
    %c0_96 = arith.constant 0 : index
    %c0_97 = arith.constant 0 : index
    %258 = vector.load %arg5[%c0_93, %c3_94, %c1_95, %c0_96, %c0_97] : memref<1x4x2x64x64xbf16, #tpu.memory_space<vmem>>, vector<1x1x1x64x64xbf16>
    %259 = vector.shape_cast %258 : vector<1x1x1x64x64xbf16> to vector<64x64xbf16>
    %260 = arith.extf %259 : vector<64x64xbf16> to vector<64x64xf32>
    %261 = vector.shape_cast %260 : vector<64x64xf32> to vector<1x64x64xf32>
    %262 = vector.broadcast %261 : vector<1x64x64xf32> to vector<2x64x64xf32>
    %263 = arith.addf %257, %262 : vector<2x64x64xf32>
    %cst_98 = arith.constant dense<0xFF800000> : vector<2x64xf32>
    %264 = vector.multi_reduction <maximumf>, %263, %cst_98 [2] : vector<2x64x64xf32> to vector<2x64xf32>
    %265 = vector.shape_cast %264 : vector<2x64xf32> to vector<2x64x1xf32>
    %266 = vector.broadcast %265 : vector<2x64x1xf32> to vector<2x64x64xf32>
    %267 = arith.subf %263, %266 : vector<2x64x64xf32>
    %268 = math.exp %267 : vector<2x64x64xf32>
    %cst_99 = arith.constant dense<0.000000e+00> : vector<2x64xf32>
    %269 = vector.multi_reduction <add>, %268, %cst_99 [2] : vector<2x64x64xf32> to vector<2x64xf32>
    %270 = vector.shape_cast %269 : vector<2x64xf32> to vector<2x64x1xf32>
    %271 = tpu.reciprocal %270 {approx = true} : vector<2x64x1xf32> -> vector<2x64x1xf32>
    %272 = vector.broadcast %271 : vector<2x64x1xf32> to vector<2x64x64xf32>
    %273 = arith.mulf %268, %272 : vector<2x64x64xf32>
    %274 = arith.truncf %273 : vector<2x64x64xf32> to vector<2x64x64xbf16>
    "tpu.trace_start"() <{level = 10 : i32, message = "bij,bjd->bid"}> : () -> ()
    %cst_100 = arith.constant dense<0.000000e+00> : vector<2x64x32xf32>
    %275 = tpu.matmul %274, %162, %cst_100 {dimension_numbers = #tpu.dot_dimension_numbers<[2], [1], [1], [2], [0, 0, 0, 1, 1, 2], [0], [0]>} : vector<2x64x64xbf16>, vector<2x64x32xbf16>, vector<2x64x32xf32> -> vector<2x64x32xf32>
    "tpu.trace_stop"() : () -> ()
    %276 = vector.shape_cast %252 : vector<1x32xf32> to vector<1x1x32xf32>
    %277 = vector.broadcast %276 : vector<1x1x32xf32> to vector<2x64x32xf32>
    %278 = arith.mulf %275, %277 : vector<2x64x32xf32>
    %279 = arith.addf %250, %278 : vector<2x64x32xf32>
    %280 = vector.shape_cast %279 : vector<2x64x32xf32> to vector<2x8x8x32xf32>
    %c0_101 = arith.constant 0 : index
    %c0_102 = arith.constant 0 : index
    %c8 = arith.constant 8 : index
    %c0_103 = arith.constant 0 : index
    %281 = vector.load %arg6[%c0_101, %c0_102, %c8, %c0_103] : memref<2x8x16x32xf32, #tpu.memory_space<vmem>>, vector<2x8x8x32xf32>
    tpu.vector_store %arg6[%c0_101, %c0_102, %c8, %c0_103], %280 {strides = array<i32>} : memref<2x8x16x32xf32, #tpu.memory_space<vmem>>, vector<2x8x8x32xf32>,
    return
  }
  func.func @transform_0(%arg0: i32) -> (i32, i32, i32, i32) {
    %c0_i32 = arith.constant 0 : i32
    %c0_i32_0 = arith.constant 0 : i32
    %c0_i32_1 = arith.constant 0 : i32
    %c0_i32_2 = arith.constant 0 : i32
    return %c0_i32, %arg0, %c0_i32_0, %c0_i32_1 : i32, i32, i32, i32
  }
  func.func @transform_1(%arg0: i32) -> (i32, i32, i32) {
    %c0_i32 = arith.constant 0 : i32
    %c0_i32_0 = arith.constant 0 : i32
    %c0_i32_1 = arith.constant 0 : i32
    %c0_i32_2 = arith.constant 0 : i32
    return %c0_i32, %c0_i32_0, %c0_i32_1 : i32, i32, i32
  }
  func.func @transform_2(%arg0: i32) -> (i32, i32, i32) {
    %c0_i32 = arith.constant 0 : i32
    %c0_i32_0 = arith.constant 0 : i32
    %c0_i32_1 = arith.constant 0 : i32
    %c0_i32_2 = arith.constant 0 : i32
    return %c0_i32, %c0_i32_0, %c0_i32_1 : i32, i32, i32
  }
  func.func @transform_3(%arg0: i32) -> (i32, i32, i32) {
    %c0_i32 = arith.constant 0 : i32
    %c0_i32_0 = arith.constant 0 : i32
    %c0_i32_1 = arith.constant 0 : i32
    %c0_i32_2 = arith.constant 0 : i32
    return %c0_i32, %c0_i32_0, %c0_i32_1 : i32, i32, i32
  }
  func.func @transform_4(%arg0: i32) -> (i32, i32, i32, i32, i32) {
    %c0_i32 = arith.constant 0 : i32
    %c0_i32_0 = arith.constant 0 : i32
    %c0_i32_1 = arith.constant 0 : i32
    %c0_i32_2 = arith.constant 0 : i32
    %c0_i32_3 = arith.constant 0 : i32
    return %arg0, %c0_i32, %c0_i32_0, %c0_i32_1, %c0_i32_2 : i32, i32, i32, i32, i32
  }
  func.func @transform_5(%arg0: i32) -> (i32, i32, i32, i32) {
    %c0_i32 = arith.constant 0 : i32
    %c0_i32_0 = arith.constant 0 : i32
    %c0_i32_1 = arith.constant 0 : i32
    %c0_i32_2 = arith.constant 0 : i32
    return %c0_i32, %arg0, %c0_i32_0, %c0_i32_1 : i32, i32, i32, i32
  }
}

</mosaic_0001>

<llo_original>
// kernel: tpu_custom_call.1
$region0: #{tpu_custom_call.1}
  #allocation0 [shape = 'u32[]', space=smem, size = 0x4, offset = 0x4, fixed_abs, tag = 'smem constant byte address 0x4 - core index']
  #allocation1 [shape = 'u32[144,128]{1,0:T(1,128)}', space=vmem, size = 0x12000, scoped, tag = 'internal scratch']
  #allocation11 [shape = 's32[]', space=sflag, size = 0x4, offset = 0, fixed_abs, tag = 'sflag constant byte address 0x0 - dummy sync flag']
  #allocation13 [shape = 's32[]', space=sflag, size = 0x4, offset = 0, fixed_abs, tag = 'sflag constant byte address 0x0 - dummy sync flag']
  %s0 = inlined_call_operand.hbm [shape: f32[2,16,16,32], index: 0, kind: input, shape index: {}]
  %s1 = inlined_call_operand.hbm [shape: bf16[3,32,32], index: 1, kind: input, shape index: {}]
  %s2 = inlined_call_operand.hbm [shape: f32[3,1,32], index: 2, kind: input, shape index: {}]
  %s3 = inlined_call_operand.vmem [shape: f32[4,1,32], index: 3, kind: input, shape index: {}]
  %s4 = inlined_call_operand.hbm [shape: bf16[2,4,2,64,64], index: 4, kind: input, shape index: {}]
  %s5 = inlined_call_operand.hbm [shape: f32[2,16,16,32], index: 5, kind: output, shape index: {}]
  %s6 = sld [smem:[#allocation0]]
  $region69: #{tpu_custom_call.1} parent=0
    _
  %s8 = ssub.s32 1, %s6
  %s9 = scalar_select 0, %s8, %s6
  $region1: #{tpu_custom_call.1} parent=0
    #allocation2 [shape = 'u8[262144]{0}', space=vmem, size = 0x40000, scoped, tag = 'input window, operand 0']
    #allocation3 [shape = 's32[2]{0}', space=sflag, size = 0x8, scoped, tag = 'scoped memory for tpu_custom_call.1']
    #allocation4 [shape = 's32[2]{0}', space=sflag, size = 0x8, scoped, tag = 'scoped memory for tpu_custom_call.1']
    #allocation5 [shape = 'u8[24576]{0}', space=vmem, size = 0x6000, scoped, tag = 'input window, operand 1, single buffered']
    #allocation6 [shape = 's32[1]{0}', space=sflag, size = 0x4, scoped, tag = 'scoped memory for tpu_custom_call.1']
    #allocation7 [shape = 'u8[1536]{0}', space=vmem, size = 0x800, scoped, tag = 'input window, operand 2, single buffered']
    #allocation8 [shape = 'u8[262144]{0}', space=vmem, size = 0x40000, scoped, tag = 'input window, operand 4']
    #allocation9 [shape = 's32[2]{0}', space=sflag, size = 0x8, scoped, tag = 'scoped memory for tpu_custom_call.1']
    #allocation10 [shape = 'u8[262144]{0}', space=vmem, size = 0x40000, scoped, tag = 'output window, operand 0']
    %10 = vsyncpa [#allocation3], 0
    %s11 = scalar_lea.sflag [#allocation3], 1
    %12 = vsyncpa %s11, 0
    %13 = vsyncpa [#allocation6], 0
    %14 = vsyncpa [#allocation9], 0
    %s15 = scalar_lea.sflag [#allocation9], 1
    %16 = vsyncpa %s15, 0
    %17 = vsyncpa [#allocation4], 0
    %s18 = scalar_lea.sflag [#allocation4], 1
    %19 = vsyncpa %s18, 0
    loop: start=0, step=1, limit=4
    $region2: #{tpu_custom_call.1} parent=1 // loop_pre_header
      _
    $region3: #{tpu_custom_call.1} parent=1 // loop_header
      %s21 = sphi 0, %s25
      %p22 = scmp.ge.s32.totalorder %s21, 4
      %s31 = sphi 0, %s33
      %s34 = sphi 0, %s31
      %s35 = sphi 0, %s34
      %s51 = sphi 0, %s35
      %s55 = sphi 0, %s55
      %s57 = sphi 0, %s55
      %s58 = sphi 0, %s57
      %s72 = sphi 0, %s58
      %s76 = sphi 0, %s76
      %s78 = sphi 0, %s76
      %s79 = sphi 0, %s78
      %s93 = sphi 0, %s79
      %s97 = sphi 0, %s97
      %s99 = sphi 0, %s97
      %s100 = sphi 0, %s99
      %s114 = sphi 0, %s100
      %s120 = sphi 0, %s122
      %s123 = sphi 0, %s120
      %s124 = sphi 0, %s123
      %s140 = sphi 0, %s124
      %s146 = sphi 0, %s148
      %s149 = sphi 0, %s146
      %s150 = sphi 0, %s149
      %s166 = sphi 0, %s150
    $region4: #{tpu_custom_call.1} parent=1 // loop_header_branch
      %24 = sbr.rel (%p22) target = $region8
    $region5: #{tpu_custom_call.1} parent=1 // loop_body
      %s26 = ssub.s32 %s21, 1
      %s27 = ssub.s32 %s21, 2
      %s28 = sadd.s32 %s21, 1
      %s29 = ssub.s32 %s21, %s28
      %p30 = scmp.eq.s32.totalorder %s29, 0
      %s32 = sadd.s32 %s31, 1
      %s33 = scalar_select %p30, %s31, %s32
      %p36 = pneg %p30
      %p37 = scmp.eq.s32.totalorder %s21, 1
      %p38 = por %p36, %p37
      %p39 = scmp.ne.s32.totalorder %s31, %s34
      %p40 = scmp.eq.s32.totalorder %s21, 0
      %p41 = por %p39, %p40
      %p42 = scmp.ne.s32.totalorder %s31, %s34
      %p43 = scmp.eq.s32.totalorder %s26, 1
      %p44 = por %p42, %p43
      %p45 = scmp.ne.s32.totalorder %s34, %s35
      %p46 = scmp.eq.s32.totalorder %s26, 0
      %p47 = por %p45, %p46
      %p48 = scmp.ne.s32.totalorder %s34, %s35
      %p49 = scmp.eq.s32.totalorder %s27, 1
      %p50 = por %p48, %p49
      %p52 = scmp.ne.s32.totalorder %s35, %s51
      %p53 = scmp.eq.s32.totalorder %s27, 0
      %p54 = por %p52, %p53
      %s56 = sadd.s32 %s55, 1
      %p59 = scmp.eq.s32.totalorder %s21, 1
      %p60 = scmp.ne.s32.totalorder %s55, %s57
      %p61 = scmp.eq.s32.totalorder %s21, 0
      %p62 = por %p60, %p61
      %p63 = scmp.ne.s32.totalorder %s55, %s57
      %p64 = scmp.eq.s32.totalorder %s26, 1
      %p65 = por %p63, %p64
      %p66 = scmp.ne.s32.totalorder %s57, %s58
      %p67 = scmp.eq.s32.totalorder %s26, 0
      %p68 = por %p66, %p67
      %p69 = scmp.ne.s32.totalorder %s57, %s58
      %p70 = scmp.eq.s32.totalorder %s27, 1
      %p71 = por %p69, %p70
      %p73 = scmp.ne.s32.totalorder %s58, %s72
      %p74 = scmp.eq.s32.totalorder %s27, 0
      %p75 = por %p73, %p74
      %s77 = sadd.s32 %s76, 1
      %p80 = scmp.eq.s32.totalorder %s21, 1
      %p81 = scmp.ne.s32.totalorder %s76, %s78
      %p82 = scmp.eq.s32.totalorder %s21, 0
      %p83 = por %p81, %p82
      %p84 = scmp.ne.s32.totalorder %s76, %s78
      %p85 = scmp.eq.s32.totalorder %s26, 1
      %p86 = por %p84, %p85
      %p87 = scmp.ne.s32.totalorder %s78, %s79
      %p88 = scmp.eq.s32.totalorder %s26, 0
      %p89 = por %p87, %p88
      %p90 = scmp.ne.s32.totalorder %s78, %s79
      %p91 = scmp.eq.s32.totalorder %s27, 1
      %p92 = por %p90, %p91
      %p94 = scmp.ne.s32.totalorder %s79, %s93
      %p95 = scmp.eq.s32.totalorder %s27, 0
      %p96 = por %p94, %p95
      %s98 = sadd.s32 %s97, 1
      %p101 = scmp.eq.s32.totalorder %s21, 1
      %p102 = scmp.ne.s32.totalorder %s97, %s99
      %p103 = scmp.eq.s32.totalorder %s21, 0
      %p104 = por %p102, %p103
      %p105 = scmp.ne.s32.totalorder %s97, %s99
      %p106 = scmp.eq.s32.totalorder %s26, 1
      %p107 = por %p105, %p106
      %p108 = scmp.ne.s32.totalorder %s99, %s100
      %p109 = scmp.eq.s32.totalorder %s26, 0
      %p110 = por %p108, %p109
      %p111 = scmp.ne.s32.totalorder %s99, %s100
      %p112 = scmp.eq.s32.totalorder %s27, 1
      %p113 = por %p111, %p112
      %p115 = scmp.ne.s32.totalorder %s100, %s114
      %p116 = scmp.eq.s32.totalorder %s27, 0
      %p117 = por %p115, %p116
      %s118 = ssub.s32 %s21, %s28
      %p119 = scmp.eq.s32.totalorder %s118, 0
      %s121 = sadd.s32 %s120, 1
      %s122 = scalar_select %p119, %s120, %s121
      %p125 = pneg %p119
      %p126 = scmp.eq.s32.totalorder %s21, 1
      %p127 = por %p125, %p126
      %p128 = scmp.ne.s32.totalorder %s120, %s123
      %p129 = scmp.eq.s32.totalorder %s21, 0
      %p130 = por %p128, %p129
      %p131 = scmp.ne.s32.totalorder %s120, %s123
      %p132 = scmp.eq.s32.totalorder %s26, 1
      %p133 = por %p131, %p132
      %p134 = scmp.ne.s32.totalorder %s123, %s124
      %p135 = scmp.eq.s32.totalorder %s26, 0
      %p136 = por %p134, %p135
      %p137 = scmp.ne.s32.totalorder %s123, %s124
      %p138 = scmp.eq.s32.totalorder %s27, 1
      %p139 = por %p137, %p138
      %p141 = scmp.ne.s32.totalorder %s124, %s140
      %p142 = scmp.eq.s32.totalorder %s27, 0
      %p143 = por %p141, %p142
      %s144 = ssub.s32 %s21, %s28
      %p145 = scmp.eq.s32.totalorder %s144, 0
      %s147 = sadd.s32 %s146, 1
      %s148 = scalar_select %p145, %s146, %s147
      %p151 = pneg %p145
      %p152 = scmp.eq.s32.totalorder %s21, 1
      %p153 = por %p151, %p152
      %p154 = scmp.ne.s32.totalorder %s146, %s149
      %p155 = scmp.eq.s32.totalorder %s21, 0
      %p156 = por %p154, %p155
      %p157 = scmp.ne.s32.totalorder %s146, %s149
      %p158 = scmp.eq.s32.totalorder %s26, 1
      %p159 = por %p157, %p158
      %p160 = scmp.ne.s32.totalorder %s149, %s150
      %p161 = scmp.eq.s32.totalorder %s26, 0
      %p162 = por %p160, %p161
      %p163 = scmp.ne.s32.totalorder %s149, %s150
      %p164 = scmp.eq.s32.totalorder %s27, 1
      %p165 = por %p163, %p164
      %p167 = scmp.ne.s32.totalorder %s150, %s166
      %p168 = scmp.eq.s32.totalorder %s27, 0
      %p169 = por %p167, %p168
      %p170 = scmp.le.s32.totalorder 1, %s21
      %p171 = scmp.lt.s32.totalorder %s21, 3
      %p172 = pnand %p170, %p171
      %p173 = pneg %p172
      // Predicated region
      $region9: #{tpu_custom_call.1} parent=5 // pred_check
        _
      $region10: #{tpu_custom_call.1} parent=5 // pred_check_branch
        %175 = sbr.rel (%p172) target = $region12
      $region11: #{tpu_custom_call.1} parent=5 // pred_region
        %s176 = ssub.s32 %s21, 1
        // Predicated region
        $region13: #{tpu_custom_call.1} parent=11 // pred_check
          %p177 = pneg %p68
        $region14: #{tpu_custom_call.1} parent=11 // pred_check_branch
          %179 = sbr.rel (%p177) target = $region16
        $region15: #{tpu_custom_call.1} parent=11 // pred_region
          %s181 = ssub.s32 768, 768
          %182 = vsyncadd [#allocation6], %s181
          %s183 = sshll.u32 [#allocation5], 4
          %s184 = int_to_ptr.vmem [resolvable:$true] %s183
          %189 = dma.hbm_to_vmem [thread:$0]  %s1, 768, %s184, [#allocation6], 64, 64, 4
        $region16: #{tpu_custom_call.1} parent=11 // pred_fallthru
          _
        // Predicated region
        $region17: #{tpu_custom_call.1} parent=11 // pred_check
          %p190 = pneg %p89
        $region18: #{tpu_custom_call.1} parent=11 // pred_check_branch
          %192 = sbr.rel (%p190) target = $region20
        $region19: #{tpu_custom_call.1} parent=11 // pred_region
          %s194 = ssub.s32 48, 48
          %195 = vsyncadd [#allocation6], %s194
          %s196 = sshll.u32 [#allocation7], 4
          %s197 = int_to_ptr.vmem [resolvable:$true] %s196
          %202 = dma.hbm_to_vmem [thread:$0]  %s2, 48, %s197, [#allocation6], 16, 16, 1
        $region20: #{tpu_custom_call.1} parent=11 // pred_fallthru
          _
        // Predicated region
        $region21: #{tpu_custom_call.1} parent=11 // pred_check
          %p203 = pneg %p110
        $region22: #{tpu_custom_call.1} parent=11 // pred_check_branch
          %205 = sbr.rel (%p203) target = $region24
        $region23: #{tpu_custom_call.1} parent=11 // pred_region
          _
        $region24: #{tpu_custom_call.1} parent=11 // pred_fallthru
          _
      $region12: #{tpu_custom_call.1} parent=5 // pred_fallthru
        _
      %p206 = scmp.lt.s32.totalorder %s21, 2
      // Predicated region
      $region25: #{tpu_custom_call.1} parent=5 // pred_check
        %p207 = pneg %p206
      $region26: #{tpu_custom_call.1} parent=5 // pred_check_branch
        %209 = sbr.rel (%p207) target = $region28
      $region27: #{tpu_custom_call.1} parent=5 // pred_region
        // Predicated region
        $region29: #{tpu_custom_call.1} parent=27 // pred_check
          %p210 = pneg %p41
        $region30: #{tpu_custom_call.1} parent=27 // pred_check_branch
          %212 = sbr.rel (%p210) target = $region32
        $region31: #{tpu_custom_call.1} parent=27 // pred_region
          #allocation12 [shape = 'u32[6]{0}', space=smem, size = 0x18, scoped, tag = 'DMA stride descriptor']
          %s213 = sand.u32 %s31, 1
          %s214 = scalar_lea.sflag [#allocation3], %s213
          %s215 = sand.u32 %s31, 1
          %s216 = smul.addr %s215, 256
          %s217 = scalar_lea.vmem [#allocation2], %s216
          %s218 = smul.u32 8, %s21
          %s220 = ssub.s32 4096, 4096
          %221 = vsyncadd %s214, %s220
          %s222 = smul.addr %s218, 2
          %s223 = smul.addr %s222, 128
          %s224 = scalar_lea.hbm %s0, %s223
          %s226 = sshll.u32 1, 14
          %s227 = sxor.u32 4294967295, %s226
          %s229 = sld [smem:[#allocation0]]
          %s230 = sadd.s32 2, %s229
          %s232 = sshll.u32 7, 26
          %s233 = sxor.u32 4294967295, %s232
          %s234 = sand.u32 0, %s233
          %s235 = sshll.u32 %s230, 26
          %s236 = sor.u32 %s234, %s235
          %s237 = sshll.u32 %s217, 4
          %s238 = int_to_ptr.vmem [resolvable:$true] %s237
          %244 = sst [smem:[#allocation12]] 4096
          %s245 = scalar_lea.smem [#allocation12], 1
          %246 = sst [smem:[%s245]] 2048
          %s247 = scalar_lea.smem [#allocation12], 2
          %248 = sst [smem:[%s247]] 16
          %s249 = scalar_lea.smem [#allocation12], 3
          %250 = sst [smem:[%s249]] 128
          %s251 = scalar_lea.smem [#allocation12], 4
          %252 = sst [smem:[%s251]] 128
          %s253 = scalar_lea.smem [#allocation12], 5
          %254 = sst [smem:[%s253]] 8
          %256 = dma.general %s224, 4096, %s238, %s214, 131072, [#allocation12], %s236, 0
        $region32: #{tpu_custom_call.1} parent=27 // pred_fallthru
          _
        // Predicated region
        $region33: #{tpu_custom_call.1} parent=27 // pred_check
          %p257 = pneg %p130
        $region34: #{tpu_custom_call.1} parent=27 // pred_check_branch
          %259 = sbr.rel (%p257) target = $region36
        $region35: #{tpu_custom_call.1} parent=27 // pred_region
          %s260 = sand.u32 %s120, 1
          %s261 = scalar_lea.sflag [#allocation9], %s260
          %s262 = sand.u32 %s120, 1
          %s263 = smul.addr %s262, 256
          %s264 = scalar_lea.vmem [#allocation8], %s263
          %s266 = ssub.s32 4096, 4096
          %267 = vsyncadd %s261, %s266
          %s268 = smul.addr %s21, 64
          %s269 = smul.addr %s268, 64
          %s270 = scalar_lea.hbm %s4, %s269
          %s271 = sshll.u32 %s264, 4
          %s272 = int_to_ptr.vmem [resolvable:$true] %s271
          %277 = dma.hbm_to_vmem [thread:$0]  %s270, 4096, %s272, %s261, 64, 64, 4
        $region36: #{tpu_custom_call.1} parent=27 // pred_fallthru
          _
      $region28: #{tpu_custom_call.1} parent=5 // pred_fallthru
        _
      %p278 = scmp.le.s32.totalorder 1, %s21
      %p279 = scmp.lt.s32.totalorder %s21, 3
      %p280 = pnand %p278, %p279
      %p281 = pneg %p280
      // Predicated region
      $region37: #{tpu_custom_call.1} parent=5 // pred_check
        _
      $region38: #{tpu_custom_call.1} parent=5 // pred_check_branch
        %283 = sbr.rel (%p280) target = $region40
      $region39: #{tpu_custom_call.1} parent=5 // pred_region
        %s284 = ssub.s32 %s21, 1
        %s285 = sand.u32 %s34, 1
        %s286 = scalar_lea.sflag [#allocation3], %s285
        %s287 = sand.u32 %s34, 1
        %s288 = smul.addr %s287, 256
        %s289 = scalar_lea.vmem [#allocation2], %s288
        // Predicated region
        $region41: #{tpu_custom_call.1} parent=39 // pred_check
          %p290 = pneg %p47
        $region42: #{tpu_custom_call.1} parent=39 // pred_check_branch
          %292 = sbr.rel (%p290) target = $region44
        $region43: #{tpu_custom_call.1} parent=39 // pred_region
          %293 = dma.done %s286, 4096
        $region44: #{tpu_custom_call.1} parent=39 // pred_fallthru
          _
        // Predicated region
        $region45: #{tpu_custom_call.1} parent=39 // pred_check
          %p294 = pneg %p68
        $region46: #{tpu_custom_call.1} parent=39 // pred_check_branch
          %296 = sbr.rel (%p294) target = $region48
        $region47: #{tpu_custom_call.1} parent=39 // pred_region
          %297 = dma.done [#allocation6], 768
        $region48: #{tpu_custom_call.1} parent=39 // pred_fallthru
          _
        // Predicated region
        $region49: #{tpu_custom_call.1} parent=39 // pred_check
          %p298 = pneg %p89
        $region50: #{tpu_custom_call.1} parent=39 // pred_check_branch
          %300 = sbr.rel (%p298) target = $region52
        $region51: #{tpu_custom_call.1} parent=39 // pred_region
          %301 = dma.done [#allocation6], 48
        $region52: #{tpu_custom_call.1} parent=39 // pred_fallthru
          _
        %s302 = sand.u32 %s123, 1
        %s303 = scalar_lea.sflag [#allocation9], %s302
        %s304 = sand.u32 %s123, 1
        %s305 = smul.addr %s304, 256
        %s306 = scalar_lea.vmem [#allocation8], %s305
        // Predicated region
        $region53: #{tpu_custom_call.1} parent=39 // pred_check
          %p307 = pneg %p136
        $region54: #{tpu_custom_call.1} parent=39 // pred_check_branch
          %309 = sbr.rel (%p307) target = $region56
        $region55: #{tpu_custom_call.1} parent=39 // pred_region
          %310 = dma.done %s303, 4096
        $region56: #{tpu_custom_call.1} parent=39 // pred_fallthru
          _
        %s311 = sand.u32 %s34, 1
        %s312 = scalar_lea.sflag [#allocation3], %s311
        %s313 = sand.u32 %s34, 1
        %s314 = smul.addr %s313, 256
        %s315 = scalar_lea.vmem [#allocation2], %s314
        %p316 = pneg %p47
        %p317 = pneg %p44
        %p318 = pneg %p68
        %p319 = pneg %p65
        %p320 = pneg %p89
        %p321 = pneg %p86
        %p322 = pneg %p110
        %p323 = pneg %p107
        %s324 = sand.u32 %s123, 1
        %s325 = scalar_lea.sflag [#allocation9], %s324
        %s326 = sand.u32 %s123, 1
        %s327 = smul.addr %s326, 256
        %s328 = scalar_lea.vmem [#allocation8], %s327
        %p329 = pneg %p136
        %p330 = pneg %p133
        %p331 = pneg %p162
        %p332 = pneg %p159
        %s333 = sand.u32 %s149, 1
        %s334 = scalar_lea.sflag [#allocation4], %s333
        %s335 = sand.u32 %s149, 1
        %s336 = smul.addr %s335, 256
        %s337 = scalar_lea.vmem [#allocation10], %s336
        %s338 = smul.u32 8, %s26
        %s339 = smul.u32 8, %s26
        %v341 = vld [vmem:[%s289] sm:$0xff]
        %v342 = vld [vmem:[%s289 + $0x8] sm:$0xff]
        %v343 = vld [vmem:[%s289 + $0x10] sm:$0xff]
        %v344 = vld [vmem:[%s289 + $0x18] sm:$0xff]
        %v345 = vld [vmem:[%s289 + $0x20] sm:$0xff]
        %v346 = vld [vmem:[%s289 + $0x28] sm:$0xff]
        %v347 = vld [vmem:[%s289 + $0x30] sm:$0xff]
        %v348 = vld [vmem:[%s289 + $0x38] sm:$0xff]
        %v349 = vld [vmem:[%s289 + $0x40] sm:$0xff]
        %v350 = vld [vmem:[%s289 + $0x48] sm:$0xff]
        %v351 = vld [vmem:[%s289 + $0x50] sm:$0xff]
        %v352 = vld [vmem:[%s289 + $0x58] sm:$0xff]
        %v353 = vld [vmem:[%s289 + $0x60] sm:$0xff]
        %v354 = vld [vmem:[%s289 + $0x68] sm:$0xff]
        %v355 = vld [vmem:[%s289 + $0x70] sm:$0xff]
        %v356 = vld [vmem:[%s289 + $0x78] sm:$0xff]
        %v357 = vld [vmem:[%s289 + $0x80] sm:$0xff]
        %v358 = vld [vmem:[%s289 + $0x88] sm:$0xff]
        %v359 = vld [vmem:[%s289 + $0x90] sm:$0xff]
        %v360 = vld [vmem:[%s289 + $0x98] sm:$0xff]
        %v361 = vld [vmem:[%s289 + $0xa0] sm:$0xff]
        %v362 = vld [vmem:[%s289 + $0xa8] sm:$0xff]
        %v363 = vld [vmem:[%s289 + $0xb0] sm:$0xff]
        %v364 = vld [vmem:[%s289 + $0xb8] sm:$0xff]
        %v365 = vld [vmem:[%s289 + $0xc0] sm:$0xff]
        %v366 = vld [vmem:[%s289 + $0xc8] sm:$0xff]
        %v367 = vld [vmem:[%s289 + $0xd0] sm:$0xff]
        %v368 = vld [vmem:[%s289 + $0xd8] sm:$0xff]
        %v369 = vld [vmem:[%s289 + $0xe0] sm:$0xff]
        %v370 = vld [vmem:[%s289 + $0xe8] sm:$0xff]
        %v371 = vld [vmem:[%s289 + $0xf0] sm:$0xff]
        %v372 = vld [vmem:[%s289 + $0xf8] sm:$0xff]
        %v373 = vpack.c.bf16 %v342, %v341
        %v374 = vpack.c.bf16 %v344, %v343
        %v375 = vpack.c.bf16 %v346, %v345
        %v376 = vpack.c.bf16 %v348, %v347
        %v377 = vpack.c.bf16 %v350, %v349
        %v378 = vpack.c.bf16 %v352, %v351
        %v379 = vpack.c.bf16 %v354, %v353
        %v380 = vpack.c.bf16 %v356, %v355
        %v381 = vpack.c.bf16 %v358, %v357
        %v382 = vpack.c.bf16 %v360, %v359
        %v383 = vpack.c.bf16 %v362, %v361
        %v384 = vpack.c.bf16 %v364, %v363
        %v385 = vpack.c.bf16 %v366, %v365
        %v386 = vpack.c.bf16 %v368, %v367
        %v387 = vpack.c.bf16 %v370, %v369
        %v388 = vpack.c.bf16 %v372, %v371
        %v389 = vld [vmem:[#allocation5] sm:$0xf]
        %v390 = vld [vmem:[#allocation5 + $0x4] sm:$0xf]
        %v391 = vld [vmem:[#allocation5 + $0x8] sm:$0xf]
        %v392 = vld [vmem:[#allocation5 + $0xc] sm:$0xf]
        %v393 = vld [vmem:[#allocation7] sm:$0x1]
        %v395 = vlaneseq
        %v396 = vshrl.u32 %v395, 7
        %v397 = vsub.s32 0, %v396
        %v398 = vrot.slane %v393, %v397
        %v404 = vunpack.c.l.b16 %v389
        %v405 = vunpack.c.l.b16 %v390
        %v406 = vunpack.c.l.b16 %v391
        %v407 = vunpack.c.l.b16 %v392
        %v408 = vpack.c.b16 %v405, %v404
        %v409 = vpack.c.b16 %v407, %v406
        %vm412 = vcmask 261120
        %v414 = vsel %vm412, %v373, 0
        %v417 = vsel %vm412, %v374, 0
        %v420 = vsel %vm412, %v375, 0
        %v423 = vsel %vm412, %v376, 0
        %v426 = vsel %vm412, %v377, 0
        %v429 = vsel %vm412, %v378, 0
        %v432 = vsel %vm412, %v379, 0
        %v435 = vsel %vm412, %v380, 0
        %v438 = vsel %vm412, %v381, 0
        %v441 = vsel %vm412, %v382, 0
        %v444 = vsel %vm412, %v383, 0
        %v447 = vsel %vm412, %v384, 0
        %v450 = vsel %vm412, %v385, 0
        %v453 = vsel %vm412, %v386, 0
        %v456 = vsel %vm412, %v387, 0
        %v459 = vsel %vm412, %v388, 0
        %461 = vmatprep.subr.bf16.mxu0 0
        %462 = vmatpush1.bf16.msra.mxu0 0
        %463 = vmatprep.subr.bf16.mxu0 0
        %464 = vmatpush1.bf16.msra.mxu0 0
        %465 = vmatprep.subr.bf16.mxu0 0
        %466 = vmatpush1.bf16.msra.mxu0 0
        %467 = vmatprep.subr.bf16.mxu0 0
        %468 = vmatpush1.bf16.msra.mxu0 0
        %469 = vmatprep.subr.bf16.mxu0 0
        %470 = vmatpush1.bf16.msra.mxu0 0
        %471 = vmatprep.subr.bf16.mxu0 0
        %472 = vmatpush1.bf16.msra.mxu0 0
        %473 = vmatprep.subr.bf16.mxu0 0
        %474 = vmatpush1.bf16.msra.mxu0 %v409
        %475 = vmatprep.subr.bf16.mxu0 0
        %476 = vmatpush1.bf16.msra.mxu0 %v408
        %477 = vmatprep.subr.bf16.mxu0 0
        %478 = vmatpush2.bf16.msra.mxu0 0
        %479 = vmatprep.subr.bf16.mxu0 0
        %480 = vmatpush2.bf16.msra.mxu0 0
        %481 = vmatprep.subr.bf16.mxu0 0
        %482 = vmatpush2.bf16.msra.mxu0 0
        %483 = vmatprep.subr.bf16.mxu0 0
        %484 = vmatpush2.bf16.msra.mxu0 0
        %485 = vmatprep.subr.bf16.mxu0 0
        %486 = vmatpush2.bf16.msra.mxu0 0
        %487 = vmatprep.subr.bf16.mxu0 0
        %488 = vmatpush2.bf16.msra.mxu0 0
        %489 = vmatprep.subr.bf16.mxu0 0
        %490 = vmatpush2.bf16.msra.mxu0 0
        %491 = vmatprep.subr.bf16.mxu0 0
        %492 = vmatpush2.bf16.msra.mxu0 0
        %493 = vmatprep.mubr.bf16.mxu0 0
        %494 = vmatmul.mubr.bf16.gmra.mxu0 %v414
        %v495 = vpop.f32.mrf.mxu0
        %v496 = vadd.f32 %v398, %v495
        %v497 = vpop.f32.mrf.mxu0
        %v498 = vpop.f32.mrf.mxu0
        %v499 = vadd.f32 %v398, %v498
        %v500 = vpop.f32.mrf.mxu0
        %501 = vmatprep.mubr.bf16.mxu0 0
        %502 = vmatmul.mubr.bf16.gmra.mxu0 %v417
        %v503 = vpop.f32.mrf.mxu0
        %v504 = vadd.f32 %v398, %v503
        %v505 = vpop.f32.mrf.mxu0
        %v506 = vpop.f32.mrf.mxu0
        %v507 = vadd.f32 %v398, %v506
        %v508 = vpop.f32.mrf.mxu0
        %509 = vmatprep.mubr.bf16.mxu0 0
        %510 = vmatmul.mubr.bf16.gmra.mxu0 %v420
        %v511 = vpop.f32.mrf.mxu0
        %v512 = vadd.f32 %v398, %v511
        %v513 = vpop.f32.mrf.mxu0
        %v514 = vpop.f32.mrf.mxu0
        %v515 = vadd.f32 %v398, %v514
        %v516 = vpop.f32.mrf.mxu0
        %517 = vmatprep.mubr.bf16.mxu0 0
        %518 = vmatmul.mubr.bf16.gmra.mxu0 %v423
        %v519 = vpop.f32.mrf.mxu0
        %v520 = vadd.f32 %v398, %v519
        %v521 = vpop.f32.mrf.mxu0
        %v522 = vpop.f32.mrf.mxu0
        %v523 = vadd.f32 %v398, %v522
        %v524 = vpop.f32.mrf.mxu0
        %525 = vmatprep.mubr.bf16.mxu0 0
        %526 = vmatmul.mubr.bf16.gmra.mxu0 %v426
        %v527 = vpop.f32.mrf.mxu0
        %v528 = vadd.f32 %v398, %v527
        %v529 = vpop.f32.mrf.mxu0
        %v530 = vpop.f32.mrf.mxu0
        %v531 = vadd.f32 %v398, %v530
        %v532 = vpop.f32.mrf.mxu0
        %533 = vmatprep.mubr.bf16.mxu0 0
        %534 = vmatmul.mubr.bf16.gmra.mxu0 %v429
        %v535 = vpop.f32.mrf.mxu0
        %v536 = vadd.f32 %v398, %v535
        %v537 = vpop.f32.mrf.mxu0
        %v538 = vpop.f32.mrf.mxu0
        %v539 = vadd.f32 %v398, %v538
        %v540 = vpop.f32.mrf.mxu0
        %541 = vmatprep.mubr.bf16.mxu0 0
        %542 = vmatmul.mubr.bf16.gmra.mxu0 %v432
        %v543 = vpop.f32.mrf.mxu0
        %v544 = vadd.f32 %v398, %v543
        %v545 = vpop.f32.mrf.mxu0
        %v546 = vpop.f32.mrf.mxu0
        %v547 = vadd.f32 %v398, %v546
        %v548 = vpop.f32.mrf.mxu0
        %549 = vmatprep.mubr.bf16.mxu0 0
        %550 = vmatmul.mubr.bf16.gmra.mxu0 %v435
        %v551 = vpop.f32.mrf.mxu0
        %v552 = vadd.f32 %v398, %v551
        %v553 = vpop.f32.mrf.mxu0
        %v554 = vpop.f32.mrf.mxu0
        %v555 = vadd.f32 %v398, %v554
        %v556 = vpop.f32.mrf.mxu0
        %557 = vmatprep.mubr.bf16.mxu0 0
        %558 = vmatmul.mubr.bf16.gmra.mxu0 %v438
        %v559 = vpop.f32.mrf.mxu0
        %v560 = vadd.f32 %v398, %v559
        %v561 = vpop.f32.mrf.mxu0
        %v562 = vpop.f32.mrf.mxu0
        %v563 = vadd.f32 %v398, %v562
        %v564 = vpop.f32.mrf.mxu0
        %565 = vmatprep.mubr.bf16.mxu0 0
        %566 = vmatmul.mubr.bf16.gmra.mxu0 %v441
        %v567 = vpop.f32.mrf.mxu0
        %v568 = vadd.f32 %v398, %v567
        %v569 = vpop.f32.mrf.mxu0
        %v570 = vpop.f32.mrf.mxu0
        %v571 = vadd.f32 %v398, %v570
        %v572 = vpop.f32.mrf.mxu0
        %573 = vmatprep.mubr.bf16.mxu0 0
        %574 = vmatmul.mubr.bf16.gmra.mxu0 %v444
        %v575 = vpop.f32.mrf.mxu0
        %v576 = vadd.f32 %v398, %v575
        %v577 = vpop.f32.mrf.mxu0
        %v578 = vpop.f32.mrf.mxu0
        %v579 = vadd.f32 %v398, %v578
        %v580 = vpop.f32.mrf.mxu0
        %581 = vmatprep.mubr.bf16.mxu0 0
        %582 = vmatmul.mubr.bf16.gmra.mxu0 %v447
        %v583 = vpop.f32.mrf.mxu0
        %v584 = vadd.f32 %v398, %v583
        %v585 = vpop.f32.mrf.mxu0
        %v586 = vpop.f32.mrf.mxu0
        %v587 = vadd.f32 %v398, %v586
        %v588 = vpop.f32.mrf.mxu0
        %589 = vmatprep.mubr.bf16.mxu0 0
        %590 = vmatmul.mubr.bf16.gmra.mxu0 %v450
        %v591 = vpop.f32.mrf.mxu0
        %v592 = vadd.f32 %v398, %v591
        %v593 = vpop.f32.mrf.mxu0
        %v594 = vpop.f32.mrf.mxu0
        %v595 = vadd.f32 %v398, %v594
        %v596 = vpop.f32.mrf.mxu0
        %597 = vmatprep.mubr.bf16.mxu0 0
        %598 = vmatmul.mubr.bf16.gmra.mxu0 %v453
        %v599 = vpop.f32.mrf.mxu0
        %v600 = vadd.f32 %v398, %v599
        %v601 = vpop.f32.mrf.mxu0
        %v602 = vpop.f32.mrf.mxu0
        %v603 = vadd.f32 %v398, %v602
        %v604 = vpop.f32.mrf.mxu0
        %605 = vmatprep.mubr.bf16.mxu0 0
        %606 = vmatmul.mubr.bf16.gmra.mxu0 %v456
        %v607 = vpop.f32.mrf.mxu0
        %v608 = vadd.f32 %v398, %v607
        %v609 = vpop.f32.mrf.mxu0
        %v610 = vpop.f32.mrf.mxu0
        %v611 = vadd.f32 %v398, %v610
        %v612 = vpop.f32.mrf.mxu0
        %613 = vmatprep.mubr.bf16.mxu0 0
        %614 = vmatmul.mubr.bf16.gmra.mxu0 %v459
        %v615 = vpop.f32.mrf.mxu0
        %v616 = vadd.f32 %v398, %v615
        %v617 = vpop.f32.mrf.mxu0
        %v618 = vpop.f32.mrf.mxu0
        %v619 = vadd.f32 %v398, %v618
        %v620 = vpop.f32.mrf.mxu0
        %621 = vdwg.mxu0
        %s622 = scalar_lea.vmem [#allocation5], 16
        %v623 = vld [vmem:[%s622] sm:$0xf]
        %v624 = vld [vmem:[%s622 + $0x4] sm:$0xf]
        %v625 = vld [vmem:[%s622 + $0x8] sm:$0xf]
        %v626 = vld [vmem:[%s622 + $0xc] sm:$0xf]
        %s627 = scalar_lea.vmem [#allocation7], 1
        %v628 = vld [vmem:[%s627] sm:$0x1]
        %v630 = vlaneseq
        %v631 = vshrl.u32 %v630, 7
        %v632 = vsub.s32 0, %v631
        %v633 = vrot.slane %v628, %v632
        %v639 = vunpack.c.l.b16 %v623
        %v640 = vunpack.c.l.b16 %v624
        %v641 = vunpack.c.l.b16 %v625
        %v642 = vunpack.c.l.b16 %v626
        %v643 = vpack.c.b16 %v640, %v639
        %v644 = vpack.c.b16 %v642, %v641
        %647 = vmatprep.subr.bf16.mxu0 0
        %648 = vmatpush1.bf16.msra.mxu0 0
        %649 = vmatprep.subr.bf16.mxu0 0
        %650 = vmatpush1.bf16.msra.mxu0 0
        %651 = vmatprep.subr.bf16.mxu0 0
        %652 = vmatpush1.bf16.msra.mxu0 0
        %653 = vmatprep.subr.bf16.mxu0 0
        %654 = vmatpush1.bf16.msra.mxu0 0
        %655 = vmatprep.subr.bf16.mxu0 0
        %656 = vmatpush1.bf16.msra.mxu0 0
        %657 = vmatprep.subr.bf16.mxu0 0
        %658 = vmatpush1.bf16.msra.mxu0 0
        %659 = vmatprep.subr.bf16.mxu0 0
        %660 = vmatpush1.bf16.msra.mxu0 %v644
        %661 = vmatprep.subr.bf16.mxu0 0
        %662 = vmatpush1.bf16.msra.mxu0 %v643
        %663 = vmatprep.subr.bf16.mxu0 0
        %664 = vmatpush2.bf16.msra.mxu0 0
        %665 = vmatprep.subr.bf16.mxu0 0
        %666 = vmatpush2.bf16.msra.mxu0 0
        %667 = vmatprep.subr.bf16.mxu0 0
        %668 = vmatpush2.bf16.msra.mxu0 0
        %669 = vmatprep.subr.bf16.mxu0 0
        %670 = vmatpush2.bf16.msra.mxu0 0
        %671 = vmatprep.subr.bf16.mxu0 0
        %672 = vmatpush2.bf16.msra.mxu0 0
        %673 = vmatprep.subr.bf16.mxu0 0
        %674 = vmatpush2.bf16.msra.mxu0 0
        %675 = vmatprep.subr.bf16.mxu0 0
        %676 = vmatpush2.bf16.msra.mxu0 0
        %677 = vmatprep.subr.bf16.mxu0 0
        %678 = vmatpush2.bf16.msra.mxu0 0
        %679 = vmatprep.mubr.bf16.mxu0 0
        %680 = vmatmul.mubr.bf16.gmra.mxu0 %v414
        %v681 = vpop.f32.mrf.mxu0
        %v682 = vadd.f32 %v633, %v681
        %v683 = vpop.f32.mrf.mxu0
        %v684 = vpop.f32.mrf.mxu0
        %v685 = vadd.f32 %v633, %v684
        %v686 = vpop.f32.mrf.mxu0
        %687 = vmatprep.mubr.bf16.mxu0 0
        %688 = vmatmul.mubr.bf16.gmra.mxu0 %v417
        %v689 = vpop.f32.mrf.mxu0
        %v690 = vadd.f32 %v633, %v689
        %v691 = vpop.f32.mrf.mxu0
        %v692 = vpop.f32.mrf.mxu0
        %v693 = vadd.f32 %v633, %v692
        %v694 = vpop.f32.mrf.mxu0
        %695 = vmatprep.mubr.bf16.mxu0 0
        %696 = vmatmul.mubr.bf16.gmra.mxu0 %v420
        %v697 = vpop.f32.mrf.mxu0
        %v698 = vadd.f32 %v633, %v697
        %v699 = vpop.f32.mrf.mxu0
        %v700 = vpop.f32.mrf.mxu0
        %v701 = vadd.f32 %v633, %v700
        %v702 = vpop.f32.mrf.mxu0
        %703 = vmatprep.mubr.bf16.mxu0 0
        %704 = vmatmul.mubr.bf16.gmra.mxu0 %v423
        %v705 = vpop.f32.mrf.mxu0
        %v706 = vadd.f32 %v633, %v705
        %v707 = vpop.f32.mrf.mxu0
        %v708 = vpop.f32.mrf.mxu0
        %v709 = vadd.f32 %v633, %v708
        %v710 = vpop.f32.mrf.mxu0
        %711 = vmatprep.mubr.bf16.mxu0 0
        %712 = vmatmul.mubr.bf16.gmra.mxu0 %v426
        %v713 = vpop.f32.mrf.mxu0
        %v714 = vadd.f32 %v633, %v713
        %v715 = vpop.f32.mrf.mxu0
        %v716 = vpop.f32.mrf.mxu0
        %v717 = vadd.f32 %v633, %v716
        %v718 = vpop.f32.mrf.mxu0
        %719 = vmatprep.mubr.bf16.mxu0 0
        %720 = vmatmul.mubr.bf16.gmra.mxu0 %v429
        %v721 = vpop.f32.mrf.mxu0
        %v722 = vadd.f32 %v633, %v721
        %v723 = vpop.f32.mrf.mxu0
        %v724 = vpop.f32.mrf.mxu0
        %v725 = vadd.f32 %v633, %v724
        %v726 = vpop.f32.mrf.mxu0
        %727 = vmatprep.mubr.bf16.mxu0 0
        %728 = vmatmul.mubr.bf16.gmra.mxu0 %v432
        %v729 = vpop.f32.mrf.mxu0
        %v730 = vadd.f32 %v633, %v729
        %v731 = vpop.f32.mrf.mxu0
        %v732 = vpop.f32.mrf.mxu0
        %v733 = vadd.f32 %v633, %v732
        %v734 = vpop.f32.mrf.mxu0
        %735 = vmatprep.mubr.bf16.mxu0 0
        %736 = vmatmul.mubr.bf16.gmra.mxu0 %v435
        %v737 = vpop.f32.mrf.mxu0
        %v738 = vadd.f32 %v633, %v737
        %v739 = vpop.f32.mrf.mxu0
        %v740 = vpop.f32.mrf.mxu0
        %v741 = vadd.f32 %v633, %v740
        %v742 = vpop.f32.mrf.mxu0
        %743 = vmatprep.mubr.bf16.mxu0 0
        %744 = vmatmul.mubr.bf16.gmra.mxu0 %v438
        %v745 = vpop.f32.mrf.mxu0
        %v746 = vadd.f32 %v633, %v745
        %v747 = vpop.f32.mrf.mxu0
        %v748 = vpop.f32.mrf.mxu0
        %v749 = vadd.f32 %v633, %v748
        %v750 = vpop.f32.mrf.mxu0
        %751 = vmatprep.mubr.bf16.mxu0 0
        %752 = vmatmul.mubr.bf16.gmra.mxu0 %v441
        %v753 = vpop.f32.mrf.mxu0
        %v754 = vadd.f32 %v633, %v753
        %v755 = vpop.f32.mrf.mxu0
        %v756 = vpop.f32.mrf.mxu0
        %v757 = vadd.f32 %v633, %v756
        %v758 = vpop.f32.mrf.mxu0
        %759 = vmatprep.mubr.bf16.mxu0 0
        %760 = vmatmul.mubr.bf16.gmra.mxu0 %v444
        %v761 = vpop.f32.mrf.mxu0
        %v762 = vadd.f32 %v633, %v761
        %v763 = vpop.f32.mrf.mxu0
        %v764 = vpop.f32.mrf.mxu0
        %v765 = vadd.f32 %v633, %v764
        %v766 = vpop.f32.mrf.mxu0
        %767 = vmatprep.mubr.bf16.mxu0 0
        %768 = vmatmul.mubr.bf16.gmra.mxu0 %v447
        %v769 = vpop.f32.mrf.mxu0
        %v770 = vadd.f32 %v633, %v769
        %v771 = vpop.f32.mrf.mxu0
        %v772 = vpop.f32.mrf.mxu0
        %v773 = vadd.f32 %v633, %v772
        %v774 = vpop.f32.mrf.mxu0
        %775 = vmatprep.mubr.bf16.mxu0 0
        %776 = vmatmul.mubr.bf16.gmra.mxu0 %v450
        %v777 = vpop.f32.mrf.mxu0
        %v778 = vadd.f32 %v633, %v777
        %v779 = vpop.f32.mrf.mxu0
        %v780 = vpop.f32.mrf.mxu0
        %v781 = vadd.f32 %v633, %v780
        %v782 = vpop.f32.mrf.mxu0
        %783 = vmatprep.mubr.bf16.mxu0 0
        %784 = vmatmul.mubr.bf16.gmra.mxu0 %v453
        %v785 = vpop.f32.mrf.mxu0
        %v786 = vadd.f32 %v633, %v785
        %v787 = vpop.f32.mrf.mxu0
        %v788 = vpop.f32.mrf.mxu0
        %v789 = vadd.f32 %v633, %v788
        %v790 = vpop.f32.mrf.mxu0
        %791 = vmatprep.mubr.bf16.mxu0 0
        %792 = vmatmul.mubr.bf16.gmra.mxu0 %v456
        %v793 = vpop.f32.mrf.mxu0
        %v794 = vadd.f32 %v633, %v793
        %v795 = vpop.f32.mrf.mxu0
        %v796 = vpop.f32.mrf.mxu0
        %v797 = vadd.f32 %v633, %v796
        %v798 = vpop.f32.mrf.mxu0
        %799 = vmatprep.mubr.bf16.mxu0 0
        %800 = vmatmul.mubr.bf16.gmra.mxu0 %v459
        %v801 = vpop.f32.mrf.mxu0
        %v802 = vadd.f32 %v633, %v801
        %v803 = vpop.f32.mrf.mxu0
        %v804 = vpop.f32.mrf.mxu0
        %v805 = vadd.f32 %v633, %v804
        %v806 = vpop.f32.mrf.mxu0
        %807 = vdwg.mxu0
        %s808 = scalar_lea.vmem [#allocation5], 32
        %v809 = vld [vmem:[%s808] sm:$0xf]
        %v810 = vld [vmem:[%s808 + $0x4] sm:$0xf]
        %v811 = vld [vmem:[%s808 + $0x8] sm:$0xf]
        %v812 = vld [vmem:[%s808 + $0xc] sm:$0xf]
        %s813 = scalar_lea.vmem [#allocation7], 2
        %v814 = vld [vmem:[%s813] sm:$0x1]
        %v816 = vlaneseq
        %v817 = vshrl.u32 %v816, 7
        %v818 = vsub.s32 0, %v817
        %v819 = vrot.slane %v814, %v818
        %v825 = vunpack.c.l.b16 %v809
        %v826 = vunpack.c.l.b16 %v810
        %v827 = vunpack.c.l.b16 %v811
        %v828 = vunpack.c.l.b16 %v812
        %v829 = vpack.c.b16 %v826, %v825
        %v830 = vpack.c.b16 %v828, %v827
        %833 = vmatprep.subr.bf16.mxu0 0
        %834 = vmatpush1.bf16.msra.mxu0 0
        %835 = vmatprep.subr.bf16.mxu0 0
        %836 = vmatpush1.bf16.msra.mxu0 0
        %837 = vmatprep.subr.bf16.mxu0 0
        %838 = vmatpush1.bf16.msra.mxu0 0
        %839 = vmatprep.subr.bf16.mxu0 0
        %840 = vmatpush1.bf16.msra.mxu0 0
        %841 = vmatprep.subr.bf16.mxu0 0
        %842 = vmatpush1.bf16.msra.mxu0 0
        %843 = vmatprep.subr.bf16.mxu0 0
        %844 = vmatpush1.bf16.msra.mxu0 0
        %845 = vmatprep.subr.bf16.mxu0 0
        %846 = vmatpush1.bf16.msra.mxu0 %v830
        %847 = vmatprep.subr.bf16.mxu0 0
        %848 = vmatpush1.bf16.msra.mxu0 %v829
        %849 = vmatprep.subr.bf16.mxu0 0
        %850 = vmatpush2.bf16.msra.mxu0 0
        %851 = vmatprep.subr.bf16.mxu0 0
        %852 = vmatpush2.bf16.msra.mxu0 0
        %853 = vmatprep.subr.bf16.mxu0 0
        %854 = vmatpush2.bf16.msra.mxu0 0
        %855 = vmatprep.subr.bf16.mxu0 0
        %856 = vmatpush2.bf16.msra.mxu0 0
        %857 = vmatprep.subr.bf16.mxu0 0
        %858 = vmatpush2.bf16.msra.mxu0 0
        %859 = vmatprep.subr.bf16.mxu0 0
        %860 = vmatpush2.bf16.msra.mxu0 0
        %861 = vmatprep.subr.bf16.mxu0 0
        %862 = vmatpush2.bf16.msra.mxu0 0
        %863 = vmatprep.subr.bf16.mxu0 0
        %864 = vmatpush2.bf16.msra.mxu0 0
        %865 = vmatprep.mubr.bf16.mxu0 0
        %866 = vmatmul.mubr.bf16.gmra.mxu0 %v414
        %v867 = vpop.f32.mrf.mxu0
        %v868 = vadd.f32 %v819, %v867
        %v869 = vpop.f32.mrf.mxu0
        %v870 = vpop.f32.mrf.mxu0
        %v871 = vadd.f32 %v819, %v870
        %v872 = vpop.f32.mrf.mxu0
        %873 = vmatprep.mubr.bf16.mxu0 0
        %874 = vmatmul.mubr.bf16.gmra.mxu0 %v417
        %v875 = vpop.f32.mrf.mxu0
        %v876 = vadd.f32 %v819, %v875
        %v877 = vpop.f32.mrf.mxu0
        %v878 = vpop.f32.mrf.mxu0
        %v879 = vadd.f32 %v819, %v878
        %v880 = vpop.f32.mrf.mxu0
        %881 = vmatprep.mubr.bf16.mxu0 0
        %882 = vmatmul.mubr.bf16.gmra.mxu0 %v420
        %v883 = vpop.f32.mrf.mxu0
        %v884 = vadd.f32 %v819, %v883
        %v885 = vpop.f32.mrf.mxu0
        %v886 = vpop.f32.mrf.mxu0
        %v887 = vadd.f32 %v819, %v886
        %v888 = vpop.f32.mrf.mxu0
        %889 = vmatprep.mubr.bf16.mxu0 0
        %890 = vmatmul.mubr.bf16.gmra.mxu0 %v423
        %v891 = vpop.f32.mrf.mxu0
        %v892 = vadd.f32 %v819, %v891
        %v893 = vpop.f32.mrf.mxu0
        %v894 = vpop.f32.mrf.mxu0
        %v895 = vadd.f32 %v819, %v894
        %v896 = vpop.f32.mrf.mxu0
        %897 = vmatprep.mubr.bf16.mxu0 0
        %898 = vmatmul.mubr.bf16.gmra.mxu0 %v426
        %v899 = vpop.f32.mrf.mxu0
        %v900 = vadd.f32 %v819, %v899
        %v901 = vpop.f32.mrf.mxu0
        %v902 = vpop.f32.mrf.mxu0
        %v903 = vadd.f32 %v819, %v902
        %v904 = vpop.f32.mrf.mxu0
        %905 = vmatprep.mubr.bf16.mxu0 0
        %906 = vmatmul.mubr.bf16.gmra.mxu0 %v429
        %v907 = vpop.f32.mrf.mxu0
        %v908 = vadd.f32 %v819, %v907
        %v909 = vpop.f32.mrf.mxu0
        %v910 = vpop.f32.mrf.mxu0
        %v911 = vadd.f32 %v819, %v910
        %v912 = vpop.f32.mrf.mxu0
        %913 = vmatprep.mubr.bf16.mxu0 0
        %914 = vmatmul.mubr.bf16.gmra.mxu0 %v432
        %v915 = vpop.f32.mrf.mxu0
        %v916 = vadd.f32 %v819, %v915
        %v917 = vpop.f32.mrf.mxu0
        %v918 = vpop.f32.mrf.mxu0
        %v919 = vadd.f32 %v819, %v918
        %v920 = vpop.f32.mrf.mxu0
        %921 = vmatprep.mubr.bf16.mxu0 0
        %922 = vmatmul.mubr.bf16.gmra.mxu0 %v435
        %v923 = vpop.f32.mrf.mxu0
        %v924 = vadd.f32 %v819, %v923
        %v925 = vpop.f32.mrf.mxu0
        %v926 = vpop.f32.mrf.mxu0
        %v927 = vadd.f32 %v819, %v926
        %v928 = vpop.f32.mrf.mxu0
        %929 = vmatprep.mubr.bf16.mxu0 0
        %930 = vmatmul.mubr.bf16.gmra.mxu0 %v438
        %v931 = vpop.f32.mrf.mxu0
        %v932 = vadd.f32 %v819, %v931
        %v933 = vpop.f32.mrf.mxu0
        %v934 = vpop.f32.mrf.mxu0
        %v935 = vadd.f32 %v819, %v934
        %v936 = vpop.f32.mrf.mxu0
        %937 = vmatprep.mubr.bf16.mxu0 0
        %938 = vmatmul.mubr.bf16.gmra.mxu0 %v441
        %v939 = vpop.f32.mrf.mxu0
        %v940 = vadd.f32 %v819, %v939
        %v941 = vpop.f32.mrf.mxu0
        %v942 = vpop.f32.mrf.mxu0
        %v943 = vadd.f32 %v819, %v942
        %v944 = vpop.f32.mrf.mxu0
        %945 = vmatprep.mubr.bf16.mxu0 0
        %946 = vmatmul.mubr.bf16.gmra.mxu0 %v444
        %v947 = vpop.f32.mrf.mxu0
        %v948 = vadd.f32 %v819, %v947
        %v949 = vpop.f32.mrf.mxu0
        %v950 = vpop.f32.mrf.mxu0
        %v951 = vadd.f32 %v819, %v950
        %v952 = vpop.f32.mrf.mxu0
        %953 = vmatprep.mubr.bf16.mxu0 0
        %954 = vmatmul.mubr.bf16.gmra.mxu0 %v447
        %v955 = vpop.f32.mrf.mxu0
        %v956 = vadd.f32 %v819, %v955
        %v957 = vpop.f32.mrf.mxu0
        %v958 = vpop.f32.mrf.mxu0
        %v959 = vadd.f32 %v819, %v958
        %v960 = vpop.f32.mrf.mxu0
        %961 = vmatprep.mubr.bf16.mxu0 0
        %962 = vmatmul.mubr.bf16.gmra.mxu0 %v450
        %v963 = vpop.f32.mrf.mxu0
        %v964 = vadd.f32 %v819, %v963
        %v965 = vpop.f32.mrf.mxu0
        %v966 = vpop.f32.mrf.mxu0
        %v967 = vadd.f32 %v819, %v966
        %v968 = vpop.f32.mrf.mxu0
        %969 = vmatprep.mubr.bf16.mxu0 0
        %970 = vmatmul.mubr.bf16.gmra.mxu0 %v453
        %v971 = vpop.f32.mrf.mxu0
        %v972 = vadd.f32 %v819, %v971
        %v973 = vpop.f32.mrf.mxu0
        %v974 = vpop.f32.mrf.mxu0
        %v975 = vadd.f32 %v819, %v974
        %v976 = vpop.f32.mrf.mxu0
        %977 = vmatprep.mubr.bf16.mxu0 0
        %978 = vmatmul.mubr.bf16.gmra.mxu0 %v456
        %v979 = vpop.f32.mrf.mxu0
        %v980 = vadd.f32 %v819, %v979
        %v981 = vpop.f32.mrf.mxu0
        %v982 = vpop.f32.mrf.mxu0
        %v983 = vadd.f32 %v819, %v982
        %v984 = vpop.f32.mrf.mxu0
        %985 = vmatprep.mubr.bf16.mxu0 0
        %986 = vmatmul.mubr.bf16.gmra.mxu0 %v459
        %v987 = vpop.f32.mrf.mxu0
        %v988 = vadd.f32 %v819, %v987
        %v989 = vpop.f32.mrf.mxu0
        %v990 = vpop.f32.mrf.mxu0
        %v991 = vadd.f32 %v819, %v990
        %v992 = vpop.f32.mrf.mxu0
        %993 = vdwg.mxu0
        %v994 = vld [vmem:[%s3] sm:$0x1]
        %v995 = vld [vmem:[%s3 + $0x1] sm:$0x1]
        %v996 = vld [vmem:[%s3 + $0x2] sm:$0x1]
        %v997 = vld [vmem:[%s3 + $0x3] sm:$0x1]
        %v998 = vpack.c.bf16 %v690, %v682
        %v999 = vpack.c.bf16 %v706, %v698
        %v1000 = vpack.c.bf16 %v722, %v714
        %v1001 = vpack.c.bf16 %v738, %v730
        %v1002 = vpack.c.bf16 %v754, %v746
        %v1003 = vpack.c.bf16 %v770, %v762
        %v1004 = vpack.c.bf16 %v786, %v778
        %v1005 = vpack.c.bf16 %v802, %v794
        %v1006 = vpack.c.bf16 %v876, %v868
        %v1007 = vpack.c.bf16 %v892, %v884
        %v1008 = vpack.c.bf16 %v908, %v900
        %v1009 = vpack.c.bf16 %v924, %v916
        %v1010 = vpack.c.bf16 %v940, %v932
        %v1011 = vpack.c.bf16 %v956, %v948
        %v1012 = vpack.c.bf16 %v972, %v964
        %v1013 = vpack.c.bf16 %v988, %v980
        %v1015 = vlaneseq
        %v1016 = vshrl.u32 %v1015, 7
        %v1017 = vsub.s32 0, %v1016
        %v1018 = vrot.slane %v994, %v1017
        %v1020 = vmul.f32 %v496, %v1018
        %v1021 = vmul.f32 %v504, %v1018
        %v1022 = vmul.f32 %v512, %v1018
        %v1023 = vmul.f32 %v520, %v1018
        %v1024 = vmul.f32 %v528, %v1018
        %v1025 = vmul.f32 %v536, %v1018
        %v1026 = vmul.f32 %v544, %v1018
        %v1027 = vmul.f32 %v552, %v1018
        %v1028 = vmul.f32 %v560, %v1018
        %v1029 = vmul.f32 %v568, %v1018
        %v1030 = vmul.f32 %v576, %v1018
        %v1031 = vmul.f32 %v584, %v1018
        %v1032 = vmul.f32 %v592, %v1018
        %v1033 = vmul.f32 %v600, %v1018
        %v1034 = vmul.f32 %v608, %v1018
        %v1035 = vmul.f32 %v616, %v1018
        %v1036 = vpack.c.bf16 %v1021, %v1020
        %v1037 = vpack.c.bf16 %v1023, %v1022
        %v1038 = vpack.c.bf16 %v1025, %v1024
        %v1039 = vpack.c.bf16 %v1027, %v1026
        %v1040 = vpack.c.bf16 %v1029, %v1028
        %v1041 = vpack.c.bf16 %v1031, %v1030
        %v1042 = vpack.c.bf16 %v1033, %v1032
        %v1043 = vpack.c.bf16 %v1035, %v1034
        %v1044 = vld [vmem:[%s306] sm:$0xf]
        %v1045 = vld [vmem:[%s306 + $0x4] sm:$0xf]
        %v1046 = vld [vmem:[%s306 + $0x8] sm:$0xf]
        %v1047 = vld [vmem:[%s306 + $0xc] sm:$0xf]
        %v1048 = vld [vmem:[%s306 + $0x10] sm:$0xf]
        %v1049 = vld [vmem:[%s306 + $0x14] sm:$0xf]
        %v1050 = vld [vmem:[%s306 + $0x18] sm:$0xf]
        %v1051 = vld [vmem:[%s306 + $0x1c] sm:$0xf]
        %v1052 = vunpack.c.l.bf16 %v1044
        %v1053 = vunpack.c.l.bf16 %v1045
        %v1054 = vunpack.c.l.bf16 %v1046
        %v1055 = vunpack.c.l.bf16 %v1047
        %v1056 = vunpack.c.l.bf16 %v1048
        %v1057 = vunpack.c.l.bf16 %v1049
        %v1058 = vunpack.c.l.bf16 %v1050
        %v1059 = vunpack.c.l.bf16 %v1051
        %v1061 = vsel %vm412, %v1036, 0
        %v1064 = vsel %vm412, %v1037, 0
        %v1067 = vsel %vm412, %v1038, 0
        %v1070 = vsel %vm412, %v1039, 0
        %v1073 = vsel %vm412, %v998, 0
        %v1076 = vsel %vm412, %v999, 0
        %v1079 = vsel %vm412, %v1000, 0
        %v1082 = vsel %vm412, %v1001, 0
        %1084 = vmatprep.subr.bf16.mxu0 0
        %1085 = vmatpush1.bf16.xpose.msra.mxu0 0
        %1086 = vmatprep.subr.bf16.mxu0 0
        %1087 = vmatpush1.bf16.xpose.msra.mxu0 0
        %1088 = vmatprep.subr.bf16.mxu0 0
        %1089 = vmatpush1.bf16.xpose.msra.mxu0 0
        %1090 = vmatprep.subr.bf16.mxu0 0
        %1091 = vmatpush1.bf16.xpose.msra.mxu0 0
        %1092 = vmatprep.subr.bf16.mxu0 0
        %1093 = vmatpush1.bf16.xpose.msra.mxu0 %v1082
        %1094 = vmatprep.subr.bf16.mxu0 0
        %1095 = vmatpush1.bf16.xpose.msra.mxu0 %v1079
        %1096 = vmatprep.subr.bf16.mxu0 0
        %1097 = vmatpush1.bf16.xpose.msra.mxu0 %v1076
        %1098 = vmatprep.subr.bf16.mxu0 0
        %1099 = vmatpush1.bf16.xpose.msra.mxu0 %v1073
        %1100 = vmatprep.subr.bf16.mxu0 0
        %1101 = vmatpush2.bf16.xpose.msra.mxu0 0
        %1102 = vmatprep.subr.bf16.mxu0 0
        %1103 = vmatpush2.bf16.xpose.msra.mxu0 0
        %1104 = vmatprep.subr.bf16.mxu0 0
        %1105 = vmatpush2.bf16.xpose.msra.mxu0 0
        %1106 = vmatprep.subr.bf16.mxu0 0
        %1107 = vmatpush2.bf16.xpose.msra.mxu0 0
        %1108 = vmatprep.subr.bf16.mxu0 0
        %1109 = vmatpush2.bf16.xpose.msra.mxu0 0
        %1110 = vmatprep.subr.bf16.mxu0 0
        %1111 = vmatpush2.bf16.xpose.msra.mxu0 0
        %1112 = vmatprep.subr.bf16.mxu0 0
        %1113 = vmatpush2.bf16.xpose.msra.mxu0 0
        %1114 = vmatprep.subr.bf16.mxu0 0
        %1115 = vmatpush2.bf16.xpose.msra.mxu0 0
        %1116 = vmatprep.mubr.bf16.mxu0 0
        %1117 = vmatmul.mubr.bf16.gmra.mxu0 %v1061
        %v1118 = vpop.f32.mrf.mxu0
        %v1119 = vadd.f32 %v1052, %v1118
        %v1120 = vpop.f32.mrf.mxu0
        %v1121 = vpop.f32.mrf.mxu0
        %v1122 = vadd.f32 %v1053, %v1121
        %v1123 = vpop.f32.mrf.mxu0
        %1124 = vmatprep.mubr.bf16.mxu0 0
        %1125 = vmatmul.mubr.bf16.gmra.mxu0 %v1064
        %v1126 = vpop.f32.mrf.mxu0
        %v1127 = vadd.f32 %v1054, %v1126
        %v1128 = vpop.f32.mrf.mxu0
        %v1129 = vpop.f32.mrf.mxu0
        %v1130 = vadd.f32 %v1055, %v1129
        %v1131 = vpop.f32.mrf.mxu0
        %1132 = vmatprep.mubr.bf16.mxu0 0
        %1133 = vmatmul.mubr.bf16.gmra.mxu0 %v1067
        %v1134 = vpop.f32.mrf.mxu0
        %v1135 = vadd.f32 %v1056, %v1134
        %v1136 = vpop.f32.mrf.mxu0
        %v1137 = vpop.f32.mrf.mxu0
        %v1138 = vadd.f32 %v1057, %v1137
        %v1139 = vpop.f32.mrf.mxu0
        %1140 = vmatprep.mubr.bf16.mxu0 0
        %1141 = vmatmul.mubr.bf16.gmra.mxu0 %v1070
        %v1142 = vpop.f32.mrf.mxu0
        %v1143 = vadd.f32 %v1058, %v1142
        %v1144 = vpop.f32.mrf.mxu0
        %v1145 = vpop.f32.mrf.mxu0
        %v1146 = vadd.f32 %v1059, %v1145
        %v1147 = vpop.f32.mrf.mxu0
        %1148 = vdwg.mxu0
        %v1150 = vsel %vm412, %v1040, 0
        %v1153 = vsel %vm412, %v1041, 0
        %v1156 = vsel %vm412, %v1042, 0
        %v1159 = vsel %vm412, %v1043, 0
        %v1162 = vsel %vm412, %v1002, 0
        %v1165 = vsel %vm412, %v1003, 0
        %v1168 = vsel %vm412, %v1004, 0
        %v1171 = vsel %vm412, %v1005, 0
        %1173 = vmatprep.subr.bf16.mxu0 0
        %1174 = vmatpush1.bf16.xpose.msra.mxu0 0
        %1175 = vmatprep.subr.bf16.mxu0 0
        %1176 = vmatpush1.bf16.xpose.msra.mxu0 0
        %1177 = vmatprep.subr.bf16.mxu0 0
        %1178 = vmatpush1.bf16.xpose.msra.mxu0 0
        %1179 = vmatprep.subr.bf16.mxu0 0
        %1180 = vmatpush1.bf16.xpose.msra.mxu0 0
        %1181 = vmatprep.subr.bf16.mxu0 0
        %1182 = vmatpush1.bf16.xpose.msra.mxu0 %v1171
        %1183 = vmatprep.subr.bf16.mxu0 0
        %1184 = vmatpush1.bf16.xpose.msra.mxu0 %v1168
        %1185 = vmatprep.subr.bf16.mxu0 0
        %1186 = vmatpush1.bf16.xpose.msra.mxu0 %v1165
        %1187 = vmatprep.subr.bf16.mxu0 0
        %1188 = vmatpush1.bf16.xpose.msra.mxu0 %v1162
        %1189 = vmatprep.subr.bf16.mxu0 0
        %1190 = vmatpush2.bf16.xpose.msra.mxu0 0
        %1191 = vmatprep.subr.bf16.mxu0 0
        %1192 = vmatpush2.bf16.xpose.msra.mxu0 0
        %1193 = vmatprep.subr.bf16.mxu0 0
        %1194 = vmatpush2.bf16.xpose.msra.mxu0 0
        %1195 = vmatprep.subr.bf16.mxu0 0
        %1196 = vmatpush2.bf16.xpose.msra.mxu0 0
        %1197 = vmatprep.subr.bf16.mxu0 0
        %1198 = vmatpush2.bf16.xpose.msra.mxu0 0
        %1199 = vmatprep.subr.bf16.mxu0 0
        %1200 = vmatpush2.bf16.xpose.msra.mxu0 0
        %1201 = vmatprep.subr.bf16.mxu0 0
        %1202 = vmatpush2.bf16.xpose.msra.mxu0 0
        %1203 = vmatprep.subr.bf16.mxu0 0
        %1204 = vmatpush2.bf16.xpose.msra.mxu0 0
        %1205 = vmatprep.mubr.bf16.mxu0 0
        %1206 = vmatmul.mubr.bf16.gmra.mxu0 %v1150
        %v1207 = vpop.f32.mrf.mxu0
        %v1208 = vadd.f32 %v1052, %v1207
        %v1209 = vpop.f32.mrf.mxu0
        %v1210 = vpop.f32.mrf.mxu0
        %v1211 = vadd.f32 %v1053, %v1210
        %v1212 = vpop.f32.mrf.mxu0
        %1213 = vmatprep.mubr.bf16.mxu0 0
        %1214 = vmatmul.mubr.bf16.gmra.mxu0 %v1153
        %v1215 = vpop.f32.mrf.mxu0
        %v1216 = vadd.f32 %v1054, %v1215
        %v1217 = vpop.f32.mrf.mxu0
        %v1218 = vpop.f32.mrf.mxu0
        %v1219 = vadd.f32 %v1055, %v1218
        %v1220 = vpop.f32.mrf.mxu0
        %1221 = vmatprep.mubr.bf16.mxu0 0
        %1222 = vmatmul.mubr.bf16.gmra.mxu0 %v1156
        %v1223 = vpop.f32.mrf.mxu0
        %v1224 = vadd.f32 %v1056, %v1223
        %v1225 = vpop.f32.mrf.mxu0
        %v1226 = vpop.f32.mrf.mxu0
        %v1227 = vadd.f32 %v1057, %v1226
        %v1228 = vpop.f32.mrf.mxu0
        %1229 = vmatprep.mubr.bf16.mxu0 0
        %1230 = vmatmul.mubr.bf16.gmra.mxu0 %v1159
        %v1231 = vpop.f32.mrf.mxu0
        %v1232 = vadd.f32 %v1058, %v1231
        %v1233 = vpop.f32.mrf.mxu0
        %v1234 = vpop.f32.mrf.mxu0
        %v1235 = vadd.f32 %v1059, %v1234
        %v1236 = vpop.f32.mrf.mxu0
        %1237 = vdwg.mxu0
        %vm1238 = vcmask 523264
        %v1239 = vsel %vm1238, %v1119, -inf
        %1240 = vmax.xlane.f32.xlu0 %v1239
        %v1241 = vpop.xlane.xlu0 %1240
        %v1242 = vsel %vm1238, %v1122, -inf
        %1243 = vmax.xlane.f32.xlu0 %v1242
        %v1244 = vpop.xlane.xlu0 %1243
        %v1245 = vsel %vm1238, %v1127, -inf
        %1246 = vmax.xlane.f32.xlu0 %v1245
        %v1247 = vpop.xlane.xlu0 %1246
        %v1248 = vsel %vm1238, %v1130, -inf
        %1249 = vmax.xlane.f32.xlu0 %v1248
        %v1250 = vpop.xlane.xlu0 %1249
        %v1251 = vsel %vm1238, %v1135, -inf
        %1252 = vmax.xlane.f32.xlu0 %v1251
        %v1253 = vpop.xlane.xlu0 %1252
        %v1254 = vsel %vm1238, %v1138, -inf
        %1255 = vmax.xlane.f32.xlu0 %v1254
        %v1256 = vpop.xlane.xlu0 %1255
        %v1257 = vsel %vm1238, %v1143, -inf
        %1258 = vmax.xlane.f32.xlu0 %v1257
        %v1259 = vpop.xlane.xlu0 %1258
        %v1260 = vsel %vm1238, %v1146, -inf
        %1261 = vmax.xlane.f32.xlu0 %v1260
        %v1262 = vpop.xlane.xlu0 %1261
        %v1263 = vsel %vm1238, %v1208, -inf
        %1264 = vmax.xlane.f32.xlu0 %v1263
        %v1265 = vpop.xlane.xlu0 %1264
        %v1266 = vsel %vm1238, %v1211, -inf
        %1267 = vmax.xlane.f32.xlu0 %v1266
        %v1268 = vpop.xlane.xlu0 %1267
        %v1269 = vsel %vm1238, %v1216, -inf
        %1270 = vmax.xlane.f32.xlu0 %v1269
        %v1271 = vpop.xlane.xlu0 %1270
        %v1272 = vsel %vm1238, %v1219, -inf
        %1273 = vmax.xlane.f32.xlu0 %v1272
        %v1274 = vpop.xlane.xlu0 %1273
        %v1275 = vsel %vm1238, %v1224, -inf
        %1276 = vmax.xlane.f32.xlu0 %v1275
        %v1277 = vpop.xlane.xlu0 %1276
        %v1278 = vsel %vm1238, %v1227, -inf
        %1279 = vmax.xlane.f32.xlu0 %v1278
        %v1280 = vpop.xlane.xlu0 %1279
        %v1281 = vsel %vm1238, %v1232, -inf
        %1282 = vmax.xlane.f32.xlu0 %v1281
        %v1283 = vpop.xlane.xlu0 %1282
        %v1284 = vsel %vm1238, %v1235, -inf
        %1285 = vmax.xlane.f32.xlu0 %v1284
        %v1286 = vpop.xlane.xlu0 %1285
        %v1287 = vsub.f32 %v1119, %v1241
        %v1288 = vsub.f32 %v1122, %v1244
        %v1289 = vsub.f32 %v1127, %v1247
        %v1290 = vsub.f32 %v1130, %v1250
        %v1291 = vsub.f32 %v1135, %v1253
        %v1292 = vsub.f32 %v1138, %v1256
        %v1293 = vsub.f32 %v1143, %v1259
        %v1294 = vsub.f32 %v1146, %v1262
        %v1295 = vsub.f32 %v1208, %v1265
        %v1296 = vsub.f32 %v1211, %v1268
        %v1297 = vsub.f32 %v1216, %v1271
        %v1298 = vsub.f32 %v1219, %v1274
        %v1299 = vsub.f32 %v1224, %v1277
        %v1300 = vsub.f32 %v1227, %v1280
        %v1301 = vsub.f32 %v1232, %v1283
        %v1302 = vsub.f32 %v1235, %v1286
        %v1303 = vmul.f32 %v1287, 1.442695
        %v1304 = vpow.pop %v1303
        %v1305 = vmul.f32 %v1288, 1.442695
        %v1306 = vpow.pop %v1305
        %v1307 = vmul.f32 %v1289, 1.442695
        %v1308 = vpow.pop %v1307
        %v1309 = vmul.f32 %v1290, 1.442695
        %v1310 = vpow.pop %v1309
        %v1311 = vmul.f32 %v1291, 1.442695
        %v1312 = vpow.pop %v1311
        %v1313 = vmul.f32 %v1292, 1.442695
        %v1314 = vpow.pop %v1313
        %v1315 = vmul.f32 %v1293, 1.442695
        %v1316 = vpow.pop %v1315
        %v1317 = vmul.f32 %v1294, 1.442695
        %v1318 = vpow.pop %v1317
        %v1319 = vmul.f32 %v1295, 1.442695
        %v1320 = vpow.pop %v1319
        %v1321 = vmul.f32 %v1296, 1.442695
        %v1322 = vpow.pop %v1321
        %v1323 = vmul.f32 %v1297, 1.442695
        %v1324 = vpow.pop %v1323
        %v1325 = vmul.f32 %v1298, 1.442695
        %v1326 = vpow.pop %v1325
        %v1327 = vmul.f32 %v1299, 1.442695
        %v1328 = vpow.pop %v1327
        %v1329 = vmul.f32 %v1300, 1.442695
        %v1330 = vpow.pop %v1329
        %v1331 = vmul.f32 %v1301, 1.442695
        %v1332 = vpow.pop %v1331
        %v1333 = vmul.f32 %v1302, 1.442695
        %v1334 = vpow.pop %v1333
        %v1335 = vsel %vm1238, %v1304, 0.0
        %1336 = vadd.xlane.f32.xlu0 %v1335
        %v1337 = vpop.xlane.xlu0 %1336
        %v1338 = vsel %vm1238, %v1306, 0.0
        %1339 = vadd.xlane.f32.xlu0 %v1338
        %v1340 = vpop.xlane.xlu0 %1339
        %v1341 = vsel %vm1238, %v1308, 0.0
        %1342 = vadd.xlane.f32.xlu0 %v1341
        %v1343 = vpop.xlane.xlu0 %1342
        %v1344 = vsel %vm1238, %v1310, 0.0
        %1345 = vadd.xlane.f32.xlu0 %v1344
        %v1346 = vpop.xlane.xlu0 %1345
        %v1347 = vsel %vm1238, %v1312, 0.0
        %1348 = vadd.xlane.f32.xlu0 %v1347
        %v1349 = vpop.xlane.xlu0 %1348
        %v1350 = vsel %vm1238, %v1314, 0.0
        %1351 = vadd.xlane.f32.xlu0 %v1350
        %v1352 = vpop.xlane.xlu0 %1351
        %v1353 = vsel %vm1238, %v1316, 0.0
        %1354 = vadd.xlane.f32.xlu0 %v1353
        %v1355 = vpop.xlane.xlu0 %1354
        %v1356 = vsel %vm1238, %v1318, 0.0
        %1357 = vadd.xlane.f32.xlu0 %v1356
        %v1358 = vpop.xlane.xlu0 %1357
        %v1359 = vsel %vm1238, %v1320, 0.0
        %1360 = vadd.xlane.f32.xlu0 %v1359
        %v1361 = vpop.xlane.xlu0 %1360
        %v1362 = vsel %vm1238, %v1322, 0.0
        %1363 = vadd.xlane.f32.xlu0 %v1362
        %v1364 = vpop.xlane.xlu0 %1363
        %v1365 = vsel %vm1238, %v1324, 0.0
        %1366 = vadd.xlane.f32.xlu0 %v1365
        %v1367 = vpop.xlane.xlu0 %1366
        %v1368 = vsel %vm1238, %v1326, 0.0
        %1369 = vadd.xlane.f32.xlu0 %v1368
        %v1370 = vpop.xlane.xlu0 %1369
        %v1371 = vsel %vm1238, %v1328, 0.0
        %1372 = vadd.xlane.f32.xlu0 %v1371
        %v1373 = vpop.xlane.xlu0 %1372
        %v1374 = vsel %vm1238, %v1330, 0.0
        %1375 = vadd.xlane.f32.xlu0 %v1374
        %v1376 = vpop.xlane.xlu0 %1375
        %v1377 = vsel %vm1238, %v1332, 0.0
        %1378 = vadd.xlane.f32.xlu0 %v1377
        %v1379 = vpop.xlane.xlu0 %1378
        %v1380 = vsel %vm1238, %v1334, 0.0
        %1381 = vadd.xlane.f32.xlu0 %v1380
        %v1382 = vpop.xlane.xlu0 %1381
        %v1383 = vrcp.pop %v1337
        %v1384 = vrcp.pop %v1340
        %v1385 = vrcp.pop %v1343
        %v1386 = vrcp.pop %v1346
        %v1387 = vrcp.pop %v1349
        %v1388 = vrcp.pop %v1352
        %v1389 = vrcp.pop %v1355
        %v1390 = vrcp.pop %v1358
        %v1391 = vrcp.pop %v1361
        %v1392 = vrcp.pop %v1364
        %v1393 = vrcp.pop %v1367
        %v1394 = vrcp.pop %v1370
        %v1395 = vrcp.pop %v1373
        %v1396 = vrcp.pop %v1376
        %v1397 = vrcp.pop %v1379
        %v1398 = vrcp.pop %v1382
        %v1399 = vmul.f32 %v1304, %v1383
        %v1400 = vmul.f32 %v1306, %v1384
        %v1401 = vmul.f32 %v1308, %v1385
        %v1402 = vmul.f32 %v1310, %v1386
        %v1403 = vmul.f32 %v1312, %v1387
        %v1404 = vmul.f32 %v1314, %v1388
        %v1405 = vmul.f32 %v1316, %v1389
        %v1406 = vmul.f32 %v1318, %v1390
        %v1407 = vmul.f32 %v1320, %v1391
        %v1408 = vmul.f32 %v1322, %v1392
        %v1409 = vmul.f32 %v1324, %v1393
        %v1410 = vmul.f32 %v1326, %v1394
        %v1411 = vmul.f32 %v1328, %v1395
        %v1412 = vmul.f32 %v1330, %v1396
        %v1413 = vmul.f32 %v1332, %v1397
        %v1414 = vmul.f32 %v1334, %v1398
        %v1415 = vpack.c.bf16 %v1400, %v1399
        %v1416 = vpack.c.bf16 %v1402, %v1401
        %v1417 = vpack.c.bf16 %v1404, %v1403
        %v1418 = vpack.c.bf16 %v1406, %v1405
        %v1419 = vpack.c.bf16 %v1408, %v1407
        %v1420 = vpack.c.bf16 %v1410, %v1409
        %v1421 = vpack.c.bf16 %v1412, %v1411
        %v1422 = vpack.c.bf16 %v1414, %v1413
        %v1424 = vsel %vm1238, %v1415, 0
        %v1427 = vsel %vm1238, %v1416, 0
        %v1430 = vsel %vm1238, %v1417, 0
        %v1433 = vsel %vm1238, %v1418, 0
        %1435 = vmatprep.subr.bf16.mxu0 0
        %1436 = vmatpush1.bf16.msra.mxu0 0
        %1437 = vmatprep.subr.bf16.mxu0 0
        %1438 = vmatpush1.bf16.msra.mxu0 0
        %1439 = vmatprep.subr.bf16.mxu0 0
        %1440 = vmatpush1.bf16.msra.mxu0 0
        %1441 = vmatprep.subr.bf16.mxu0 0
        %1442 = vmatpush1.bf16.msra.mxu0 0
        %1443 = vmatprep.subr.bf16.mxu0 0
        %1444 = vmatpush1.bf16.msra.mxu0 %v1009
        %1445 = vmatprep.subr.bf16.mxu0 0
        %1446 = vmatpush1.bf16.msra.mxu0 %v1008
        %1447 = vmatprep.subr.bf16.mxu0 0
        %1448 = vmatpush1.bf16.msra.mxu0 %v1007
        %1449 = vmatprep.subr.bf16.mxu0 0
        %1450 = vmatpush1.bf16.msra.mxu0 %v1006
        %1451 = vmatprep.subr.bf16.mxu0 0
        %1452 = vmatpush2.bf16.msra.mxu0 0
        %1453 = vmatprep.subr.bf16.mxu0 0
        %1454 = vmatpush2.bf16.msra.mxu0 0
        %1455 = vmatprep.subr.bf16.mxu0 0
        %1456 = vmatpush2.bf16.msra.mxu0 0
        %1457 = vmatprep.subr.bf16.mxu0 0
        %1458 = vmatpush2.bf16.msra.mxu0 0
        %1459 = vmatprep.subr.bf16.mxu0 0
        %1460 = vmatpush2.bf16.msra.mxu0 0
        %1461 = vmatprep.subr.bf16.mxu0 0
        %1462 = vmatpush2.bf16.msra.mxu0 0
        %1463 = vmatprep.subr.bf16.mxu0 0
        %1464 = vmatpush2.bf16.msra.mxu0 0
        %1465 = vmatprep.subr.bf16.mxu0 0
        %1466 = vmatpush2.bf16.msra.mxu0 0
        %1467 = vmatprep.mubr.bf16.mxu0 0
        %1468 = vmatmul.mubr.bf16.gmra.mxu0 %v1424
        %v1469 = vpop.f32.mrf.mxu0
        %v1470 = vadd.f32 0.0, %v1469
        %v1471 = vpop.f32.mrf.mxu0
        %v1472 = vpop.f32.mrf.mxu0
        %v1473 = vadd.f32 0.0, %v1472
        %v1474 = vpop.f32.mrf.mxu0
        %1475 = vmatprep.mubr.bf16.mxu0 0
        %1476 = vmatmul.mubr.bf16.gmra.mxu0 %v1427
        %v1477 = vpop.f32.mrf.mxu0
        %v1478 = vadd.f32 0.0, %v1477
        %v1479 = vpop.f32.mrf.mxu0
        %v1480 = vpop.f32.mrf.mxu0
        %v1481 = vadd.f32 0.0, %v1480
        %v1482 = vpop.f32.mrf.mxu0
        %1483 = vmatprep.mubr.bf16.mxu0 0
        %1484 = vmatmul.mubr.bf16.gmra.mxu0 %v1430
        %v1485 = vpop.f32.mrf.mxu0
        %v1486 = vadd.f32 0.0, %v1485
        %v1487 = vpop.f32.mrf.mxu0
        %v1488 = vpop.f32.mrf.mxu0
        %v1489 = vadd.f32 0.0, %v1488
        %v1490 = vpop.f32.mrf.mxu0
        %1491 = vmatprep.mubr.bf16.mxu0 0
        %1492 = vmatmul.mubr.bf16.gmra.mxu0 %v1433
        %v1493 = vpop.f32.mrf.mxu0
        %v1494 = vadd.f32 0.0, %v1493
        %v1495 = vpop.f32.mrf.mxu0
        %v1496 = vpop.f32.mrf.mxu0
        %v1497 = vadd.f32 0.0, %v1496
        %v1498 = vpop.f32.mrf.mxu0
        %1499 = vdwg.mxu0
        %v1501 = vsel %vm1238, %v1419, 0
        %v1504 = vsel %vm1238, %v1420, 0
        %v1507 = vsel %vm1238, %v1421, 0
        %v1510 = vsel %vm1238, %v1422, 0
        %1512 = vmatprep.subr.bf16.mxu0 0
        %1513 = vmatpush1.bf16.msra.mxu0 0
        %1514 = vmatprep.subr.bf16.mxu0 0
        %1515 = vmatpush1.bf16.msra.mxu0 0
        %1516 = vmatprep.subr.bf16.mxu0 0
        %1517 = vmatpush1.bf16.msra.mxu0 0
        %1518 = vmatprep.subr.bf16.mxu0 0
        %1519 = vmatpush1.bf16.msra.mxu0 0
        %1520 = vmatprep.subr.bf16.mxu0 0
        %1521 = vmatpush1.bf16.msra.mxu0 %v1013
        %1522 = vmatprep.subr.bf16.mxu0 0
        %1523 = vmatpush1.bf16.msra.mxu0 %v1012
        %1524 = vmatprep.subr.bf16.mxu0 0
        %1525 = vmatpush1.bf16.msra.mxu0 %v1011
        %1526 = vmatprep.subr.bf16.mxu0 0
        %1527 = vmatpush1.bf16.msra.mxu0 %v1010
        %1528 = vmatprep.subr.bf16.mxu0 0
        %1529 = vmatpush2.bf16.msra.mxu0 0
        %1530 = vmatprep.subr.bf16.mxu0 0
        %1531 = vmatpush2.bf16.msra.mxu0 0
        %1532 = vmatprep.subr.bf16.mxu0 0
        %1533 = vmatpush2.bf16.msra.mxu0 0
        %1534 = vmatprep.subr.bf16.mxu0 0
        %1535 = vmatpush2.bf16.msra.mxu0 0
        %1536 = vmatprep.subr.bf16.mxu0 0
        %1537 = vmatpush2.bf16.msra.mxu0 0
        %1538 = vmatprep.subr.bf16.mxu0 0
        %1539 = vmatpush2.bf16.msra.mxu0 0
        %1540 = vmatprep.subr.bf16.mxu0 0
        %1541 = vmatpush2.bf16.msra.mxu0 0
        %1542 = vmatprep.subr.bf16.mxu0 0
        %1543 = vmatpush2.bf16.msra.mxu0 0
        %1544 = vmatprep.mubr.bf16.mxu0 0
        %1545 = vmatmul.mubr.bf16.gmra.mxu0 %v1501
        %v1546 = vpop.f32.mrf.mxu0
        %v1547 = vadd.f32 0.0, %v1546
        %v1548 = vpop.f32.mrf.mxu0
        %v1549 = vpop.f32.mrf.mxu0
        %v1550 = vadd.f32 0.0, %v1549
        %v1551 = vpop.f32.mrf.mxu0
        %1552 = vmatprep.mubr.bf16.mxu0 0
        %1553 = vmatmul.mubr.bf16.gmra.mxu0 %v1504
        %v1554 = vpop.f32.mrf.mxu0
        %v1555 = vadd.f32 0.0, %v1554
        %v1556 = vpop.f32.mrf.mxu0
        %v1557 = vpop.f32.mrf.mxu0
        %v1558 = vadd.f32 0.0, %v1557
        %v1559 = vpop.f32.mrf.mxu0
        %1560 = vmatprep.mubr.bf16.mxu0 0
        %1561 = vmatmul.mubr.bf16.gmra.mxu0 %v1507
        %v1562 = vpop.f32.mrf.mxu0
        %v1563 = vadd.f32 0.0, %v1562
        %v1564 = vpop.f32.mrf.mxu0
        %v1565 = vpop.f32.mrf.mxu0
        %v1566 = vadd.f32 0.0, %v1565
        %v1567 = vpop.f32.mrf.mxu0
        %1568 = vmatprep.mubr.bf16.mxu0 0
        %1569 = vmatmul.mubr.bf16.gmra.mxu0 %v1510
        %v1570 = vpop.f32.mrf.mxu0
        %v1571 = vadd.f32 0.0, %v1570
        %v1572 = vpop.f32.mrf.mxu0
        %v1573 = vpop.f32.mrf.mxu0
        %v1574 = vadd.f32 0.0, %v1573
        %v1575 = vpop.f32.mrf.mxu0
        %1576 = vdwg.mxu0
        %v1577 = vmul.f32 %v1470, %v1018
        %v1578 = vmul.f32 %v1473, %v1018
        %v1579 = vmul.f32 %v1478, %v1018
        %v1580 = vmul.f32 %v1481, %v1018
        %v1581 = vmul.f32 %v1486, %v1018
        %v1582 = vmul.f32 %v1489, %v1018
        %v1583 = vmul.f32 %v1494, %v1018
        %v1584 = vmul.f32 %v1497, %v1018
        %v1585 = vmul.f32 %v1547, %v1018
        %v1586 = vmul.f32 %v1550, %v1018
        %v1587 = vmul.f32 %v1555, %v1018
        %v1588 = vmul.f32 %v1558, %v1018
        %v1589 = vmul.f32 %v1563, %v1018
        %v1590 = vmul.f32 %v1566, %v1018
        %v1591 = vmul.f32 %v1571, %v1018
        %v1592 = vmul.f32 %v1574, %v1018
        %v1593 = vadd.f32 %v1577, 0.0
        %v1594 = vadd.f32 %v1578, 0.0
        %v1595 = vadd.f32 %v1579, 0.0
        %v1596 = vadd.f32 %v1580, 0.0
        %v1597 = vadd.f32 %v1581, 0.0
        %v1598 = vadd.f32 %v1582, 0.0
        %v1599 = vadd.f32 %v1583, 0.0
        %v1600 = vadd.f32 %v1584, 0.0
        %v1601 = vadd.f32 %v1585, 0.0
        %v1602 = vadd.f32 %v1586, 0.0
        %v1603 = vadd.f32 %v1587, 0.0
        %v1604 = vadd.f32 %v1588, 0.0
        %v1605 = vadd.f32 %v1589, 0.0
        %v1606 = vadd.f32 %v1590, 0.0
        %v1607 = vadd.f32 %v1591, 0.0
        %v1608 = vadd.f32 %v1592, 0.0
        %v1610 = vlaneseq
        %v1611 = vshrl.u32 %v1610, 7
        %v1612 = vsub.s32 0, %v1611
        %v1613 = vrot.slane %v995, %v1612
        %v1615 = vmul.f32 %v496, %v1613
        %v1616 = vmul.f32 %v504, %v1613
        %v1617 = vmul.f32 %v512, %v1613
        %v1618 = vmul.f32 %v520, %v1613
        %v1619 = vmul.f32 %v528, %v1613
        %v1620 = vmul.f32 %v536, %v1613
        %v1621 = vmul.f32 %v544, %v1613
        %v1622 = vmul.f32 %v552, %v1613
        %v1623 = vmul.f32 %v560, %v1613
        %v1624 = vmul.f32 %v568, %v1613
        %v1625 = vmul.f32 %v576, %v1613
        %v1626 = vmul.f32 %v584, %v1613
        %v1627 = vmul.f32 %v592, %v1613
        %v1628 = vmul.f32 %v600, %v1613
        %v1629 = vmul.f32 %v608, %v1613
        %v1630 = vmul.f32 %v616, %v1613
        %v1631 = vpack.c.bf16 %v1616, %v1615
        %v1632 = vpack.c.bf16 %v1618, %v1617
        %v1633 = vpack.c.bf16 %v1620, %v1619
        %v1634 = vpack.c.bf16 %v1622, %v1621
        %v1635 = vpack.c.bf16 %v1624, %v1623
        %v1636 = vpack.c.bf16 %v1626, %v1625
        %v1637 = vpack.c.bf16 %v1628, %v1627
        %v1638 = vpack.c.bf16 %v1630, %v1629
        %s1639 = scalar_lea.vmem %s306, 64 [#allocation8]
        %v1640 = vld [vmem:[%s1639] sm:$0xf]
        %v1641 = vld [vmem:[%s1639 + $0x4] sm:$0xf]
        %v1642 = vld [vmem:[%s1639 + $0x8] sm:$0xf]
        %v1643 = vld [vmem:[%s1639 + $0xc] sm:$0xf]
        %v1644 = vld [vmem:[%s1639 + $0x10] sm:$0xf]
        %v1645 = vld [vmem:[%s1639 + $0x14] sm:$0xf]
        %v1646 = vld [vmem:[%s1639 + $0x18] sm:$0xf]
        %v1647 = vld [vmem:[%s1639 + $0x1c] sm:$0xf]
        %v1648 = vunpack.c.l.bf16 %v1640
        %v1649 = vunpack.c.l.bf16 %v1641
        %v1650 = vunpack.c.l.bf16 %v1642
        %v1651 = vunpack.c.l.bf16 %v1643
        %v1652 = vunpack.c.l.bf16 %v1644
        %v1653 = vunpack.c.l.bf16 %v1645
        %v1654 = vunpack.c.l.bf16 %v1646
        %v1655 = vunpack.c.l.bf16 %v1647
        %v1657 = vsel %vm412, %v1631, 0
        %v1660 = vsel %vm412, %v1632, 0
        %v1663 = vsel %vm412, %v1633, 0
        %v1666 = vsel %vm412, %v1634, 0
        %1668 = vmatprep.subr.bf16.mxu0 0
        %1669 = vmatpush1.bf16.xpose.msra.mxu0 0
        %1670 = vmatprep.subr.bf16.mxu0 0
        %1671 = vmatpush1.bf16.xpose.msra.mxu0 0
        %1672 = vmatprep.subr.bf16.mxu0 0
        %1673 = vmatpush1.bf16.xpose.msra.mxu0 0
        %1674 = vmatprep.subr.bf16.mxu0 0
        %1675 = vmatpush1.bf16.xpose.msra.mxu0 0
        %1676 = vmatprep.subr.bf16.mxu0 0
        %1677 = vmatpush1.bf16.xpose.msra.mxu0 %v1082
        %1678 = vmatprep.subr.bf16.mxu0 0
        %1679 = vmatpush1.bf16.xpose.msra.mxu0 %v1079
        %1680 = vmatprep.subr.bf16.mxu0 0
        %1681 = vmatpush1.bf16.xpose.msra.mxu0 %v1076
        %1682 = vmatprep.subr.bf16.mxu0 0
        %1683 = vmatpush1.bf16.xpose.msra.mxu0 %v1073
        %1684 = vmatprep.subr.bf16.mxu0 0
        %1685 = vmatpush2.bf16.xpose.msra.mxu0 0
        %1686 = vmatprep.subr.bf16.mxu0 0
        %1687 = vmatpush2.bf16.xpose.msra.mxu0 0
        %1688 = vmatprep.subr.bf16.mxu0 0
        %1689 = vmatpush2.bf16.xpose.msra.mxu0 0
        %1690 = vmatprep.subr.bf16.mxu0 0
        %1691 = vmatpush2.bf16.xpose.msra.mxu0 0
        %1692 = vmatprep.subr.bf16.mxu0 0
        %1693 = vmatpush2.bf16.xpose.msra.mxu0 0
        %1694 = vmatprep.subr.bf16.mxu0 0
        %1695 = vmatpush2.bf16.xpose.msra.mxu0 0
        %1696 = vmatprep.subr.bf16.mxu0 0
        %1697 = vmatpush2.bf16.xpose.msra.mxu0 0
        %1698 = vmatprep.subr.bf16.mxu0 0
        %1699 = vmatpush2.bf16.xpose.msra.mxu0 0
        %1700 = vmatprep.mubr.bf16.mxu0 0
        %1701 = vmatmul.mubr.bf16.gmra.mxu0 %v1657
        %v1702 = vpop.f32.mrf.mxu0
        %v1703 = vadd.f32 %v1648, %v1702
        %v1704 = vpop.f32.mrf.mxu0
        %v1705 = vpop.f32.mrf.mxu0
        %v1706 = vadd.f32 %v1649, %v1705
        %v1707 = vpop.f32.mrf.mxu0
        %1708 = vmatprep.mubr.bf16.mxu0 0
        %1709 = vmatmul.mubr.bf16.gmra.mxu0 %v1660
        %v1710 = vpop.f32.mrf.mxu0
        %v1711 = vadd.f32 %v1650, %v1710
        %v1712 = vpop.f32.mrf.mxu0
        %v1713 = vpop.f32.mrf.mxu0
        %v1714 = vadd.f32 %v1651, %v1713
        %v1715 = vpop.f32.mrf.mxu0
        %1716 = vmatprep.mubr.bf16.mxu0 0
        %1717 = vmatmul.mubr.bf16.gmra.mxu0 %v1663
        %v1718 = vpop.f32.mrf.mxu0
        %v1719 = vadd.f32 %v1652, %v1718
        %v1720 = vpop.f32.mrf.mxu0
        %v1721 = vpop.f32.mrf.mxu0
        %v1722 = vadd.f32 %v1653, %v1721
        %v1723 = vpop.f32.mrf.mxu0
        %1724 = vmatprep.mubr.bf16.mxu0 0
        %1725 = vmatmul.mubr.bf16.gmra.mxu0 %v1666
        %v1726 = vpop.f32.mrf.mxu0
        %v1727 = vadd.f32 %v1654, %v1726
        %v1728 = vpop.f32.mrf.mxu0
        %v1729 = vpop.f32.mrf.mxu0
        %v1730 = vadd.f32 %v1655, %v1729
        %v1731 = vpop.f32.mrf.mxu0
        %1732 = vdwg.mxu0
        %v1734 = vsel %vm412, %v1635, 0
        %v1737 = vsel %vm412, %v1636, 0
        %v1740 = vsel %vm412, %v1637, 0
        %v1743 = vsel %vm412, %v1638, 0
        %1745 = vmatprep.subr.bf16.mxu0 0
        %1746 = vmatpush1.bf16.xpose.msra.mxu0 0
        %1747 = vmatprep.subr.bf16.mxu0 0
        %1748 = vmatpush1.bf16.xpose.msra.mxu0 0
        %1749 = vmatprep.subr.bf16.mxu0 0
        %1750 = vmatpush1.bf16.xpose.msra.mxu0 0
        %1751 = vmatprep.subr.bf16.mxu0 0
        %1752 = vmatpush1.bf16.xpose.msra.mxu0 0
        %1753 = vmatprep.subr.bf16.mxu0 0
        %1754 = vmatpush1.bf16.xpose.msra.mxu0 %v1171
        %1755 = vmatprep.subr.bf16.mxu0 0
        %1756 = vmatpush1.bf16.xpose.msra.mxu0 %v1168
        %1757 = vmatprep.subr.bf16.mxu0 0
        %1758 = vmatpush1.bf16.xpose.msra.mxu0 %v1165
        %1759 = vmatprep.subr.bf16.mxu0 0
        %1760 = vmatpush1.bf16.xpose.msra.mxu0 %v1162
        %1761 = vmatprep.subr.bf16.mxu0 0
        %1762 = vmatpush2.bf16.xpose.msra.mxu0 0
        %1763 = vmatprep.subr.bf16.mxu0 0
        %1764 = vmatpush2.bf16.xpose.msra.mxu0 0
        %1765 = vmatprep.subr.bf16.mxu0 0
        %1766 = vmatpush2.bf16.xpose.msra.mxu0 0
        %1767 = vmatprep.subr.bf16.mxu0 0
        %1768 = vmatpush2.bf16.xpose.msra.mxu0 0
        %1769 = vmatprep.subr.bf16.mxu0 0
        %1770 = vmatpush2.bf16.xpose.msra.mxu0 0
        %1771 = vmatprep.subr.bf16.mxu0 0
        %1772 = vmatpush2.bf16.xpose.msra.mxu0 0
        %1773 = vmatprep.subr.bf16.mxu0 0
        %1774 = vmatpush2.bf16.xpose.msra.mxu0 0
        %1775 = vmatprep.subr.bf16.mxu0 0
        %1776 = vmatpush2.bf16.xpose.msra.mxu0 0
        %1777 = vmatprep.mubr.bf16.mxu0 0
        %1778 = vmatmul.mubr.bf16.gmra.mxu0 %v1734
        %v1779 = vpop.f32.mrf.mxu0
        %v1780 = vadd.f32 %v1648, %v1779
        %v1781 = vpop.f32.mrf.mxu0
        %v1782 = vpop.f32.mrf.mxu0
        %v1783 = vadd.f32 %v1649, %v1782
        %v1784 = vpop.f32.mrf.mxu0
        %1785 = vmatprep.mubr.bf16.mxu0 0
        %1786 = vmatmul.mubr.bf16.gmra.mxu0 %v1737
        %v1787 = vpop.f32.mrf.mxu0
        %v1788 = vadd.f32 %v1650, %v1787
        %v1789 = vpop.f32.mrf.mxu0
        %v1790 = vpop.f32.mrf.mxu0
        %v1791 = vadd.f32 %v1651, %v1790
        %v1792 = vpop.f32.mrf.mxu0
        %1793 = vmatprep.mubr.bf16.mxu0 0
        %1794 = vmatmul.mubr.bf16.gmra.mxu0 %v1740
        %v1795 = vpop.f32.mrf.mxu0
        %v1796 = vadd.f32 %v1652, %v1795
        %v1797 = vpop.f32.mrf.mxu0
        %v1798 = vpop.f32.mrf.mxu0
        %v1799 = vadd.f32 %v1653, %v1798
        %v1800 = vpop.f32.mrf.mxu0
        %1801 = vmatprep.mubr.bf16.mxu0 0
        %1802 = vmatmul.mubr.bf16.gmra.mxu0 %v1743
        %v1803 = vpop.f32.mrf.mxu0
        %v1804 = vadd.f32 %v1654, %v1803
        %v1805 = vpop.f32.mrf.mxu0
        %v1806 = vpop.f32.mrf.mxu0
        %v1807 = vadd.f32 %v1655, %v1806
        %v1808 = vpop.f32.mrf.mxu0
        %1809 = vdwg.mxu0
        %v1810 = vsel %vm1238, %v1703, -inf
        %1811 = vmax.xlane.f32.xlu0 %v1810
        %v1812 = vpop.xlane.xlu0 %1811
        %v1813 = vsel %vm1238, %v1706, -inf
        %1814 = vmax.xlane.f32.xlu0 %v1813
        %v1815 = vpop.xlane.xlu0 %1814
        %v1816 = vsel %vm1238, %v1711, -inf
        %1817 = vmax.xlane.f32.xlu0 %v1816
        %v1818 = vpop.xlane.xlu0 %1817
        %v1819 = vsel %vm1238, %v1714, -inf
        %1820 = vmax.xlane.f32.xlu0 %v1819
        %v1821 = vpop.xlane.xlu0 %1820
        %v1822 = vsel %vm1238, %v1719, -inf
        %1823 = vmax.xlane.f32.xlu0 %v1822
        %v1824 = vpop.xlane.xlu0 %1823
        %v1825 = vsel %vm1238, %v1722, -inf
        %1826 = vmax.xlane.f32.xlu0 %v1825
        %v1827 = vpop.xlane.xlu0 %1826
        %v1828 = vsel %vm1238, %v1727, -inf
        %1829 = vmax.xlane.f32.xlu0 %v1828
        %v1830 = vpop.xlane.xlu0 %1829
        %v1831 = vsel %vm1238, %v1730, -inf
        %1832 = vmax.xlane.f32.xlu0 %v1831
        %v1833 = vpop.xlane.xlu0 %1832
        %v1834 = vsel %vm1238, %v1780, -inf
        %1835 = vmax.xlane.f32.xlu0 %v1834
        %v1836 = vpop.xlane.xlu0 %1835
        %v1837 = vsel %vm1238, %v1783, -inf
        %1838 = vmax.xlane.f32.xlu0 %v1837
        %v1839 = vpop.xlane.xlu0 %1838
        %v1840 = vsel %vm1238, %v1788, -inf
        %1841 = vmax.xlane.f32.xlu0 %v1840
        %v1842 = vpop.xlane.xlu0 %1841
        %v1843 = vsel %vm1238, %v1791, -inf
        %1844 = vmax.xlane.f32.xlu0 %v1843
        %v1845 = vpop.xlane.xlu0 %1844
        %v1846 = vsel %vm1238, %v1796, -inf
        %1847 = vmax.xlane.f32.xlu0 %v1846
        %v1848 = vpop.xlane.xlu0 %1847
        %v1849 = vsel %vm1238, %v1799, -inf
        %1850 = vmax.xlane.f32.xlu0 %v1849
        %v1851 = vpop.xlane.xlu0 %1850
        %v1852 = vsel %vm1238, %v1804, -inf
        %1853 = vmax.xlane.f32.xlu0 %v1852
        %v1854 = vpop.xlane.xlu0 %1853
        %v1855 = vsel %vm1238, %v1807, -inf
        %1856 = vmax.xlane.f32.xlu0 %v1855
        %v1857 = vpop.xlane.xlu0 %1856
        %v1858 = vsub.f32 %v1703, %v1812
        %v1859 = vsub.f32 %v1706, %v1815
        %v1860 = vsub.f32 %v1711, %v1818
        %v1861 = vsub.f32 %v1714, %v1821
        %v1862 = vsub.f32 %v1719, %v1824
        %v1863 = vsub.f32 %v1722, %v1827
        %v1864 = vsub.f32 %v1727, %v1830
        %v1865 = vsub.f32 %v1730, %v1833
        %v1866 = vsub.f32 %v1780, %v1836
        %v1867 = vsub.f32 %v1783, %v1839
        %v1868 = vsub.f32 %v1788, %v1842
        %v1869 = vsub.f32 %v1791, %v1845
        %v1870 = vsub.f32 %v1796, %v1848
        %v1871 = vsub.f32 %v1799, %v1851
        %v1872 = vsub.f32 %v1804, %v1854
        %v1873 = vsub.f32 %v1807, %v1857
        %v1874 = vmul.f32 %v1858, 1.442695
        %v1875 = vpow.pop %v1874
        %v1876 = vmul.f32 %v1859, 1.442695
        %v1877 = vpow.pop %v1876
        %v1878 = vmul.f32 %v1860, 1.442695
        %v1879 = vpow.pop %v1878
        %v1880 = vmul.f32 %v1861, 1.442695
        %v1881 = vpow.pop %v1880
        %v1882 = vmul.f32 %v1862, 1.442695
        %v1883 = vpow.pop %v1882
        %v1884 = vmul.f32 %v1863, 1.442695
        %v1885 = vpow.pop %v1884
        %v1886 = vmul.f32 %v1864, 1.442695
        %v1887 = vpow.pop %v1886
        %v1888 = vmul.f32 %v1865, 1.442695
        %v1889 = vpow.pop %v1888
        %v1890 = vmul.f32 %v1866, 1.442695
        %v1891 = vpow.pop %v1890
        %v1892 = vmul.f32 %v1867, 1.442695
        %v1893 = vpow.pop %v1892
        %v1894 = vmul.f32 %v1868, 1.442695
        %v1895 = vpow.pop %v1894
        %v1896 = vmul.f32 %v1869, 1.442695
        %v1897 = vpow.pop %v1896
        %v1898 = vmul.f32 %v1870, 1.442695
        %v1899 = vpow.pop %v1898
        %v1900 = vmul.f32 %v1871, 1.442695
        %v1901 = vpow.pop %v1900
        %v1902 = vmul.f32 %v1872, 1.442695
        %v1903 = vpow.pop %v1902
        %v1904 = vmul.f32 %v1873, 1.442695
        %v1905 = vpow.pop %v1904
        %v1906 = vsel %vm1238, %v1875, 0.0
        %1907 = vadd.xlane.f32.xlu0 %v1906
        %v1908 = vpop.xlane.xlu0 %1907
        %v1909 = vsel %vm1238, %v1877, 0.0
        %1910 = vadd.xlane.f32.xlu0 %v1909
        %v1911 = vpop.xlane.xlu0 %1910
        %v1912 = vsel %vm1238, %v1879, 0.0
        %1913 = vadd.xlane.f32.xlu0 %v1912
        %v1914 = vpop.xlane.xlu0 %1913
        %v1915 = vsel %vm1238, %v1881, 0.0
        %1916 = vadd.xlane.f32.xlu0 %v1915
        %v1917 = vpop.xlane.xlu0 %1916
        %v1918 = vsel %vm1238, %v1883, 0.0
        %1919 = vadd.xlane.f32.xlu0 %v1918
        %v1920 = vpop.xlane.xlu0 %1919
        %v1921 = vsel %vm1238, %v1885, 0.0
        %1922 = vadd.xlane.f32.xlu0 %v1921
        %v1923 = vpop.xlane.xlu0 %1922
        %v1924 = vsel %vm1238, %v1887, 0.0
        %1925 = vadd.xlane.f32.xlu0 %v1924
        %v1926 = vpop.xlane.xlu0 %1925
        %v1927 = vsel %vm1238, %v1889, 0.0
        %1928 = vadd.xlane.f32.xlu0 %v1927
        %v1929 = vpop.xlane.xlu0 %1928
        %v1930 = vsel %vm1238, %v1891, 0.0
        %1931 = vadd.xlane.f32.xlu0 %v1930
        %v1932 = vpop.xlane.xlu0 %1931
        %v1933 = vsel %vm1238, %v1893, 0.0
        %1934 = vadd.xlane.f32.xlu0 %v1933
        %v1935 = vpop.xlane.xlu0 %1934
        %v1936 = vsel %vm1238, %v1895, 0.0
        %1937 = vadd.xlane.f32.xlu0 %v1936
        %v1938 = vpop.xlane.xlu0 %1937
        %v1939 = vsel %vm1238, %v1897, 0.0
        %1940 = vadd.xlane.f32.xlu0 %v1939
        %v1941 = vpop.xlane.xlu0 %1940
        %v1942 = vsel %vm1238, %v1899, 0.0
        %1943 = vadd.xlane.f32.xlu0 %v1942
        %v1944 = vpop.xlane.xlu0 %1943
        %v1945 = vsel %vm1238, %v1901, 0.0
        %1946 = vadd.xlane.f32.xlu0 %v1945
        %v1947 = vpop.xlane.xlu0 %1946
        %v1948 = vsel %vm1238, %v1903, 0.0
        %1949 = vadd.xlane.f32.xlu0 %v1948
        %v1950 = vpop.xlane.xlu0 %1949
        %v1951 = vsel %vm1238, %v1905, 0.0
        %1952 = vadd.xlane.f32.xlu0 %v1951
        %v1953 = vpop.xlane.xlu0 %1952
        %v1954 = vrcp.pop %v1908
        %v1955 = vrcp.pop %v1911
        %v1956 = vrcp.pop %v1914
        %v1957 = vrcp.pop %v1917
        %v1958 = vrcp.pop %v1920
        %v1959 = vrcp.pop %v1923
        %v1960 = vrcp.pop %v1926
        %v1961 = vrcp.pop %v1929
        %v1962 = vrcp.pop %v1932
        %v1963 = vrcp.pop %v1935
        %v1964 = vrcp.pop %v1938
        %v1965 = vrcp.pop %v1941
        %v1966 = vrcp.pop %v1944
        %v1967 = vrcp.pop %v1947
        %v1968 = vrcp.pop %v1950
        %v1969 = vrcp.pop %v1953
        %v1970 = vmul.f32 %v1875, %v1954
        %v1971 = vmul.f32 %v1877, %v1955
        %v1972 = vmul.f32 %v1879, %v1956
        %v1973 = vmul.f32 %v1881, %v1957
        %v1974 = vmul.f32 %v1883, %v1958
        %v1975 = vmul.f32 %v1885, %v1959
        %v1976 = vmul.f32 %v1887, %v1960
        %v1977 = vmul.f32 %v1889, %v1961
        %v1978 = vmul.f32 %v1891, %v1962
        %v1979 = vmul.f32 %v1893, %v1963
        %v1980 = vmul.f32 %v1895, %v1964
        %v1981 = vmul.f32 %v1897, %v1965
        %v1982 = vmul.f32 %v1899, %v1966
        %v1983 = vmul.f32 %v1901, %v1967
        %v1984 = vmul.f32 %v1903, %v1968
        %v1985 = vmul.f32 %v1905, %v1969
        %v1986 = vpack.c.bf16 %v1971, %v1970
        %v1987 = vpack.c.bf16 %v1973, %v1972
        %v1988 = vpack.c.bf16 %v1975, %v1974
        %v1989 = vpack.c.bf16 %v1977, %v1976
        %v1990 = vpack.c.bf16 %v1979, %v1978
        %v1991 = vpack.c.bf16 %v1981, %v1980
        %v1992 = vpack.c.bf16 %v1983, %v1982
        %v1993 = vpack.c.bf16 %v1985, %v1984
        %v1995 = vsel %vm1238, %v1986, 0
        %v1998 = vsel %vm1238, %v1987, 0
        %v2001 = vsel %vm1238, %v1988, 0
        %v2004 = vsel %vm1238, %v1989, 0
        %2006 = vmatprep.subr.bf16.mxu0 0
        %2007 = vmatpush1.bf16.msra.mxu0 0
        %2008 = vmatprep.subr.bf16.mxu0 0
        %2009 = vmatpush1.bf16.msra.mxu0 0
        %2010 = vmatprep.subr.bf16.mxu0 0
        %2011 = vmatpush1.bf16.msra.mxu0 0
        %2012 = vmatprep.subr.bf16.mxu0 0
        %2013 = vmatpush1.bf16.msra.mxu0 0
        %2014 = vmatprep.subr.bf16.mxu0 0
        %2015 = vmatpush1.bf16.msra.mxu0 %v1009
        %2016 = vmatprep.subr.bf16.mxu0 0
        %2017 = vmatpush1.bf16.msra.mxu0 %v1008
        %2018 = vmatprep.subr.bf16.mxu0 0
        %2019 = vmatpush1.bf16.msra.mxu0 %v1007
        %2020 = vmatprep.subr.bf16.mxu0 0
        %2021 = vmatpush1.bf16.msra.mxu0 %v1006
        %2022 = vmatprep.subr.bf16.mxu0 0
        %2023 = vmatpush2.bf16.msra.mxu0 0
        %2024 = vmatprep.subr.bf16.mxu0 0
        %2025 = vmatpush2.bf16.msra.mxu0 0
        %2026 = vmatprep.subr.bf16.mxu0 0
        %2027 = vmatpush2.bf16.msra.mxu0 0
        %2028 = vmatprep.subr.bf16.mxu0 0
        %2029 = vmatpush2.bf16.msra.mxu0 0
        %2030 = vmatprep.subr.bf16.mxu0 0
        %2031 = vmatpush2.bf16.msra.mxu0 0
        %2032 = vmatprep.subr.bf16.mxu0 0
        %2033 = vmatpush2.bf16.msra.mxu0 0
        %2034 = vmatprep.subr.bf16.mxu0 0
        %2035 = vmatpush2.bf16.msra.mxu0 0
        %2036 = vmatprep.subr.bf16.mxu0 0
        %2037 = vmatpush2.bf16.msra.mxu0 0
        %2038 = vmatprep.mubr.bf16.mxu0 0
        %2039 = vmatmul.mubr.bf16.gmra.mxu0 %v1995
        %v2040 = vpop.f32.mrf.mxu0
        %v2041 = vadd.f32 0.0, %v2040
        %v2042 = vpop.f32.mrf.mxu0
        %v2043 = vpop.f32.mrf.mxu0
        %v2044 = vadd.f32 0.0, %v2043
        %v2045 = vpop.f32.mrf.mxu0
        %2046 = vmatprep.mubr.bf16.mxu0 0
        %2047 = vmatmul.mubr.bf16.gmra.mxu0 %v1998
        %v2048 = vpop.f32.mrf.mxu0
        %v2049 = vadd.f32 0.0, %v2048
        %v2050 = vpop.f32.mrf.mxu0
        %v2051 = vpop.f32.mrf.mxu0
        %v2052 = vadd.f32 0.0, %v2051
        %v2053 = vpop.f32.mrf.mxu0
        %2054 = vmatprep.mubr.bf16.mxu0 0
        %2055 = vmatmul.mubr.bf16.gmra.mxu0 %v2001
        %v2056 = vpop.f32.mrf.mxu0
        %v2057 = vadd.f32 0.0, %v2056
        %v2058 = vpop.f32.mrf.mxu0
        %v2059 = vpop.f32.mrf.mxu0
        %v2060 = vadd.f32 0.0, %v2059
        %v2061 = vpop.f32.mrf.mxu0
        %2062 = vmatprep.mubr.bf16.mxu0 0
        %2063 = vmatmul.mubr.bf16.gmra.mxu0 %v2004
        %v2064 = vpop.f32.mrf.mxu0
        %v2065 = vadd.f32 0.0, %v2064
        %v2066 = vpop.f32.mrf.mxu0
        %v2067 = vpop.f32.mrf.mxu0
        %v2068 = vadd.f32 0.0, %v2067
        %v2069 = vpop.f32.mrf.mxu0
        %2070 = vdwg.mxu0
        %v2072 = vsel %vm1238, %v1990, 0
        %v2075 = vsel %vm1238, %v1991, 0
        %v2078 = vsel %vm1238, %v1992, 0
        %v2081 = vsel %vm1238, %v1993, 0
        %2083 = vmatprep.subr.bf16.mxu0 0
        %2084 = vmatpush1.bf16.msra.mxu0 0
        %2085 = vmatprep.subr.bf16.mxu0 0
        %2086 = vmatpush1.bf16.msra.mxu0 0
        %2087 = vmatprep.subr.bf16.mxu0 0
        %2088 = vmatpush1.bf16.msra.mxu0 0
        %2089 = vmatprep.subr.bf16.mxu0 0
        %2090 = vmatpush1.bf16.msra.mxu0 0
        %2091 = vmatprep.subr.bf16.mxu0 0
        %2092 = vmatpush1.bf16.msra.mxu0 %v1013
        %2093 = vmatprep.subr.bf16.mxu0 0
        %2094 = vmatpush1.bf16.msra.mxu0 %v1012
        %2095 = vmatprep.subr.bf16.mxu0 0
        %2096 = vmatpush1.bf16.msra.mxu0 %v1011
        %2097 = vmatprep.subr.bf16.mxu0 0
        %2098 = vmatpush1.bf16.msra.mxu0 %v1010
        %2099 = vmatprep.subr.bf16.mxu0 0
        %2100 = vmatpush2.bf16.msra.mxu0 0
        %2101 = vmatprep.subr.bf16.mxu0 0
        %2102 = vmatpush2.bf16.msra.mxu0 0
        %2103 = vmatprep.subr.bf16.mxu0 0
        %2104 = vmatpush2.bf16.msra.mxu0 0
        %2105 = vmatprep.subr.bf16.mxu0 0
        %2106 = vmatpush2.bf16.msra.mxu0 0
        %2107 = vmatprep.subr.bf16.mxu0 0
        %2108 = vmatpush2.bf16.msra.mxu0 0
        %2109 = vmatprep.subr.bf16.mxu0 0
        %2110 = vmatpush2.bf16.msra.mxu0 0
        %2111 = vmatprep.subr.bf16.mxu0 0
        %2112 = vmatpush2.bf16.msra.mxu0 0
        %2113 = vmatprep.subr.bf16.mxu0 0
        %2114 = vmatpush2.bf16.msra.mxu0 0
        %2115 = vmatprep.mubr.bf16.mxu0 0
        %2116 = vmatmul.mubr.bf16.gmra.mxu0 %v2072
        %v2117 = vpop.f32.mrf.mxu0
        %v2118 = vadd.f32 0.0, %v2117
        %v2119 = vpop.f32.mrf.mxu0
        %v2120 = vpop.f32.mrf.mxu0
        %v2121 = vadd.f32 0.0, %v2120
        %v2122 = vpop.f32.mrf.mxu0
        %2123 = vmatprep.mubr.bf16.mxu0 0
        %2124 = vmatmul.mubr.bf16.gmra.mxu0 %v2075
        %v2125 = vpop.f32.mrf.mxu0
        %v2126 = vadd.f32 0.0, %v2125
        %v2127 = vpop.f32.mrf.mxu0
        %v2128 = vpop.f32.mrf.mxu0
        %v2129 = vadd.f32 0.0, %v2128
        %v2130 = vpop.f32.mrf.mxu0
        %2131 = vmatprep.mubr.bf16.mxu0 0
        %2132 = vmatmul.mubr.bf16.gmra.mxu0 %v2078
        %v2133 = vpop.f32.mrf.mxu0
        %v2134 = vadd.f32 0.0, %v2133
        %v2135 = vpop.f32.mrf.mxu0
        %v2136 = vpop.f32.mrf.mxu0
        %v2137 = vadd.f32 0.0, %v2136
        %v2138 = vpop.f32.mrf.mxu0
        %2139 = vmatprep.mubr.bf16.mxu0 0
        %2140 = vmatmul.mubr.bf16.gmra.mxu0 %v2081
        %v2141 = vpop.f32.mrf.mxu0
        %v2142 = vadd.f32 0.0, %v2141
        %v2143 = vpop.f32.mrf.mxu0
        %v2144 = vpop.f32.mrf.mxu0
        %v2145 = vadd.f32 0.0, %v2144
        %v2146 = vpop.f32.mrf.mxu0
        %2147 = vdwg.mxu0
        %v2148 = vmul.f32 %v2041, %v1613
        %v2149 = vmul.f32 %v2044, %v1613
        %v2150 = vmul.f32 %v2049, %v1613
        %v2151 = vmul.f32 %v2052, %v1613
        %v2152 = vmul.f32 %v2057, %v1613
        %v2153 = vmul.f32 %v2060, %v1613
        %v2154 = vmul.f32 %v2065, %v1613
        %v2155 = vmul.f32 %v2068, %v1613
        %v2156 = vmul.f32 %v2118, %v1613
        %v2157 = vmul.f32 %v2121, %v1613
        %v2158 = vmul.f32 %v2126, %v1613
        %v2159 = vmul.f32 %v2129, %v1613
        %v2160 = vmul.f32 %v2134, %v1613
        %v2161 = vmul.f32 %v2137, %v1613
        %v2162 = vmul.f32 %v2142, %v1613
        %v2163 = vmul.f32 %v2145, %v1613
        %v2164 = vadd.f32 %v1593, %v2148
        %v2165 = vadd.f32 %v1594, %v2149
        %v2166 = vadd.f32 %v1595, %v2150
        %v2167 = vadd.f32 %v1596, %v2151
        %v2168 = vadd.f32 %v1597, %v2152
        %v2169 = vadd.f32 %v1598, %v2153
        %v2170 = vadd.f32 %v1599, %v2154
        %v2171 = vadd.f32 %v1600, %v2155
        %v2172 = vadd.f32 %v1601, %v2156
        %v2173 = vadd.f32 %v1602, %v2157
        %v2174 = vadd.f32 %v1603, %v2158
        %v2175 = vadd.f32 %v1604, %v2159
        %v2176 = vadd.f32 %v1605, %v2160
        %v2177 = vadd.f32 %v1606, %v2161
        %v2178 = vadd.f32 %v1607, %v2162
        %v2179 = vadd.f32 %v1608, %v2163
        %v2181 = vlaneseq
        %v2182 = vshrl.u32 %v2181, 7
        %v2183 = vsub.s32 0, %v2182
        %v2184 = vrot.slane %v996, %v2183
        %v2186 = vmul.f32 %v496, %v2184
        %v2187 = vmul.f32 %v504, %v2184
        %v2188 = vmul.f32 %v512, %v2184
        %v2189 = vmul.f32 %v520, %v2184
        %v2190 = vmul.f32 %v528, %v2184
        %v2191 = vmul.f32 %v536, %v2184
        %v2192 = vmul.f32 %v544, %v2184
        %v2193 = vmul.f32 %v552, %v2184
        %v2194 = vmul.f32 %v560, %v2184
        %v2195 = vmul.f32 %v568, %v2184
        %v2196 = vmul.f32 %v576, %v2184
        %v2197 = vmul.f32 %v584, %v2184
        %v2198 = vmul.f32 %v592, %v2184
        %v2199 = vmul.f32 %v600, %v2184
        %v2200 = vmul.f32 %v608, %v2184
        %v2201 = vmul.f32 %v616, %v2184
        %v2202 = vpack.c.bf16 %v2187, %v2186
        %v2203 = vpack.c.bf16 %v2189, %v2188
        %v2204 = vpack.c.bf16 %v2191, %v2190
        %v2205 = vpack.c.bf16 %v2193, %v2192
        %v2206 = vpack.c.bf16 %v2195, %v2194
        %v2207 = vpack.c.bf16 %v2197, %v2196
        %v2208 = vpack.c.bf16 %v2199, %v2198
        %v2209 = vpack.c.bf16 %v2201, %v2200
        %s2210 = scalar_lea.vmem %s306, 128 [#allocation8]
        %v2211 = vld [vmem:[%s2210] sm:$0xf]
        %v2212 = vld [vmem:[%s2210 + $0x4] sm:$0xf]
        %v2213 = vld [vmem:[%s2210 + $0x8] sm:$0xf]
        %v2214 = vld [vmem:[%s2210 + $0xc] sm:$0xf]
        %v2215 = vld [vmem:[%s2210 + $0x10] sm:$0xf]
        %v2216 = vld [vmem:[%s2210 + $0x14] sm:$0xf]
        %v2217 = vld [vmem:[%s2210 + $0x18] sm:$0xf]
        %v2218 = vld [vmem:[%s2210 + $0x1c] sm:$0xf]
        %v2219 = vunpack.c.l.bf16 %v2211
        %v2220 = vunpack.c.l.bf16 %v2212
        %v2221 = vunpack.c.l.bf16 %v2213
        %v2222 = vunpack.c.l.bf16 %v2214
        %v2223 = vunpack.c.l.bf16 %v2215
        %v2224 = vunpack.c.l.bf16 %v2216
        %v2225 = vunpack.c.l.bf16 %v2217
        %v2226 = vunpack.c.l.bf16 %v2218
        %v2228 = vsel %vm412, %v2202, 0
        %v2231 = vsel %vm412, %v2203, 0
        %v2234 = vsel %vm412, %v2204, 0
        %v2237 = vsel %vm412, %v2205, 0
        %2239 = vmatprep.subr.bf16.mxu0 0
        %2240 = vmatpush1.bf16.xpose.msra.mxu0 0
        %2241 = vmatprep.subr.bf16.mxu0 0
        %2242 = vmatpush1.bf16.xpose.msra.mxu0 0
        %2243 = vmatprep.subr.bf16.mxu0 0
        %2244 = vmatpush1.bf16.xpose.msra.mxu0 0
        %2245 = vmatprep.subr.bf16.mxu0 0
        %2246 = vmatpush1.bf16.xpose.msra.mxu0 0
        %2247 = vmatprep.subr.bf16.mxu0 0
        %2248 = vmatpush1.bf16.xpose.msra.mxu0 %v1082
        %2249 = vmatprep.subr.bf16.mxu0 0
        %2250 = vmatpush1.bf16.xpose.msra.mxu0 %v1079
        %2251 = vmatprep.subr.bf16.mxu0 0
        %2252 = vmatpush1.bf16.xpose.msra.mxu0 %v1076
        %2253 = vmatprep.subr.bf16.mxu0 0
        %2254 = vmatpush1.bf16.xpose.msra.mxu0 %v1073
        %2255 = vmatprep.subr.bf16.mxu0 0
        %2256 = vmatpush2.bf16.xpose.msra.mxu0 0
        %2257 = vmatprep.subr.bf16.mxu0 0
        %2258 = vmatpush2.bf16.xpose.msra.mxu0 0
        %2259 = vmatprep.subr.bf16.mxu0 0
        %2260 = vmatpush2.bf16.xpose.msra.mxu0 0
        %2261 = vmatprep.subr.bf16.mxu0 0
        %2262 = vmatpush2.bf16.xpose.msra.mxu0 0
        %2263 = vmatprep.subr.bf16.mxu0 0
        %2264 = vmatpush2.bf16.xpose.msra.mxu0 0
        %2265 = vmatprep.subr.bf16.mxu0 0
        %2266 = vmatpush2.bf16.xpose.msra.mxu0 0
        %2267 = vmatprep.subr.bf16.mxu0 0
        %2268 = vmatpush2.bf16.xpose.msra.mxu0 0
        %2269 = vmatprep.subr.bf16.mxu0 0
        %2270 = vmatpush2.bf16.xpose.msra.mxu0 0
        %2271 = vmatprep.mubr.bf16.mxu0 0
        %2272 = vmatmul.mubr.bf16.gmra.mxu0 %v2228
        %v2273 = vpop.f32.mrf.mxu0
        %v2274 = vadd.f32 %v2219, %v2273
        %v2275 = vpop.f32.mrf.mxu0
        %v2276 = vpop.f32.mrf.mxu0
        %v2277 = vadd.f32 %v2220, %v2276
        %v2278 = vpop.f32.mrf.mxu0
        %2279 = vmatprep.mubr.bf16.mxu0 0
        %2280 = vmatmul.mubr.bf16.gmra.mxu0 %v2231
        %v2281 = vpop.f32.mrf.mxu0
        %v2282 = vadd.f32 %v2221, %v2281
        %v2283 = vpop.f32.mrf.mxu0
        %v2284 = vpop.f32.mrf.mxu0
        %v2285 = vadd.f32 %v2222, %v2284
        %v2286 = vpop.f32.mrf.mxu0
        %2287 = vmatprep.mubr.bf16.mxu0 0
        %2288 = vmatmul.mubr.bf16.gmra.mxu0 %v2234
        %v2289 = vpop.f32.mrf.mxu0
        %v2290 = vadd.f32 %v2223, %v2289
        %v2291 = vpop.f32.mrf.mxu0
        %v2292 = vpop.f32.mrf.mxu0
        %v2293 = vadd.f32 %v2224, %v2292
        %v2294 = vpop.f32.mrf.mxu0
        %2295 = vmatprep.mubr.bf16.mxu0 0
        %2296 = vmatmul.mubr.bf16.gmra.mxu0 %v2237
        %v2297 = vpop.f32.mrf.mxu0
        %v2298 = vadd.f32 %v2225, %v2297
        %v2299 = vpop.f32.mrf.mxu0
        %v2300 = vpop.f32.mrf.mxu0
        %v2301 = vadd.f32 %v2226, %v2300
        %v2302 = vpop.f32.mrf.mxu0
        %2303 = vdwg.mxu0
        %v2305 = vsel %vm412, %v2206, 0
        %v2308 = vsel %vm412, %v2207, 0
        %v2311 = vsel %vm412, %v2208, 0
        %v2314 = vsel %vm412, %v2209, 0
        %2316 = vmatprep.subr.bf16.mxu0 0
        %2317 = vmatpush1.bf16.xpose.msra.mxu0 0
        %2318 = vmatprep.subr.bf16.mxu0 0
        %2319 = vmatpush1.bf16.xpose.msra.mxu0 0
        %2320 = vmatprep.subr.bf16.mxu0 0
        %2321 = vmatpush1.bf16.xpose.msra.mxu0 0
        %2322 = vmatprep.subr.bf16.mxu0 0
        %2323 = vmatpush1.bf16.xpose.msra.mxu0 0
        %2324 = vmatprep.subr.bf16.mxu0 0
        %2325 = vmatpush1.bf16.xpose.msra.mxu0 %v1171
        %2326 = vmatprep.subr.bf16.mxu0 0
        %2327 = vmatpush1.bf16.xpose.msra.mxu0 %v1168
        %2328 = vmatprep.subr.bf16.mxu0 0
        %2329 = vmatpush1.bf16.xpose.msra.mxu0 %v1165
        %2330 = vmatprep.subr.bf16.mxu0 0
        %2331 = vmatpush1.bf16.xpose.msra.mxu0 %v1162
        %2332 = vmatprep.subr.bf16.mxu0 0
        %2333 = vmatpush2.bf16.xpose.msra.mxu0 0
        %2334 = vmatprep.subr.bf16.mxu0 0
        %2335 = vmatpush2.bf16.xpose.msra.mxu0 0
        %2336 = vmatprep.subr.bf16.mxu0 0
        %2337 = vmatpush2.bf16.xpose.msra.mxu0 0
        %2338 = vmatprep.subr.bf16.mxu0 0
        %2339 = vmatpush2.bf16.xpose.msra.mxu0 0
        %2340 = vmatprep.subr.bf16.mxu0 0
        %2341 = vmatpush2.bf16.xpose.msra.mxu0 0
        %2342 = vmatprep.subr.bf16.mxu0 0
        %2343 = vmatpush2.bf16.xpose.msra.mxu0 0
        %2344 = vmatprep.subr.bf16.mxu0 0
        %2345 = vmatpush2.bf16.xpose.msra.mxu0 0
        %2346 = vmatprep.subr.bf16.mxu0 0
        %2347 = vmatpush2.bf16.xpose.msra.mxu0 0
        %2348 = vmatprep.mubr.bf16.mxu0 0
        %2349 = vmatmul.mubr.bf16.gmra.mxu0 %v2305
        %v2350 = vpop.f32.mrf.mxu0
        %v2351 = vadd.f32 %v2219, %v2350
        %v2352 = vpop.f32.mrf.mxu0
        %v2353 = vpop.f32.mrf.mxu0
        %v2354 = vadd.f32 %v2220, %v2353
        %v2355 = vpop.f32.mrf.mxu0
        %2356 = vmatprep.mubr.bf16.mxu0 0
        %2357 = vmatmul.mubr.bf16.gmra.mxu0 %v2308
        %v2358 = vpop.f32.mrf.mxu0
        %v2359 = vadd.f32 %v2221, %v2358
        %v2360 = vpop.f32.mrf.mxu0
        %v2361 = vpop.f32.mrf.mxu0
        %v2362 = vadd.f32 %v2222, %v2361
        %v2363 = vpop.f32.mrf.mxu0
        %2364 = vmatprep.mubr.bf16.mxu0 0
        %2365 = vmatmul.mubr.bf16.gmra.mxu0 %v2311
        %v2366 = vpop.f32.mrf.mxu0
        %v2367 = vadd.f32 %v2223, %v2366
        %v2368 = vpop.f32.mrf.mxu0
        %v2369 = vpop.f32.mrf.mxu0
        %v2370 = vadd.f32 %v2224, %v2369
        %v2371 = vpop.f32.mrf.mxu0
        %2372 = vmatprep.mubr.bf16.mxu0 0
        %2373 = vmatmul.mubr.bf16.gmra.mxu0 %v2314
        %v2374 = vpop.f32.mrf.mxu0
        %v2375 = vadd.f32 %v2225, %v2374
        %v2376 = vpop.f32.mrf.mxu0
        %v2377 = vpop.f32.mrf.mxu0
        %v2378 = vadd.f32 %v2226, %v2377
        %v2379 = vpop.f32.mrf.mxu0
        %2380 = vdwg.mxu0
        %v2381 = vsel %vm1238, %v2274, -inf
        %2382 = vmax.xlane.f32.xlu0 %v2381
        %v2383 = vpop.xlane.xlu0 %2382
        %v2384 = vsel %vm1238, %v2277, -inf
        %2385 = vmax.xlane.f32.xlu0 %v2384
        %v2386 = vpop.xlane.xlu0 %2385
        %v2387 = vsel %vm1238, %v2282, -inf
        %2388 = vmax.xlane.f32.xlu0 %v2387
        %v2389 = vpop.xlane.xlu0 %2388
        %v2390 = vsel %vm1238, %v2285, -inf
        %2391 = vmax.xlane.f32.xlu0 %v2390
        %v2392 = vpop.xlane.xlu0 %2391
        %v2393 = vsel %vm1238, %v2290, -inf
        %2394 = vmax.xlane.f32.xlu0 %v2393
        %v2395 = vpop.xlane.xlu0 %2394
        %v2396 = vsel %vm1238, %v2293, -inf
        %2397 = vmax.xlane.f32.xlu0 %v2396
        %v2398 = vpop.xlane.xlu0 %2397
        %v2399 = vsel %vm1238, %v2298, -inf
        %2400 = vmax.xlane.f32.xlu0 %v2399
        %v2401 = vpop.xlane.xlu0 %2400
        %v2402 = vsel %vm1238, %v2301, -inf
        %2403 = vmax.xlane.f32.xlu0 %v2402
        %v2404 = vpop.xlane.xlu0 %2403
        %v2405 = vsel %vm1238, %v2351, -inf
        %2406 = vmax.xlane.f32.xlu0 %v2405
        %v2407 = vpop.xlane.xlu0 %2406
        %v2408 = vsel %vm1238, %v2354, -inf
        %2409 = vmax.xlane.f32.xlu0 %v2408
        %v2410 = vpop.xlane.xlu0 %2409
        %v2411 = vsel %vm1238, %v2359, -inf
        %2412 = vmax.xlane.f32.xlu0 %v2411
        %v2413 = vpop.xlane.xlu0 %2412
        %v2414 = vsel %vm1238, %v2362, -inf
        %2415 = vmax.xlane.f32.xlu0 %v2414
        %v2416 = vpop.xlane.xlu0 %2415
        %v2417 = vsel %vm1238, %v2367, -inf
        %2418 = vmax.xlane.f32.xlu0 %v2417
        %v2419 = vpop.xlane.xlu0 %2418
        %v2420 = vsel %vm1238, %v2370, -inf
        %2421 = vmax.xlane.f32.xlu0 %v2420
        %v2422 = vpop.xlane.xlu0 %2421
        %v2423 = vsel %vm1238, %v2375, -inf
        %2424 = vmax.xlane.f32.xlu0 %v2423
        %v2425 = vpop.xlane.xlu0 %2424
        %v2426 = vsel %vm1238, %v2378, -inf
        %2427 = vmax.xlane.f32.xlu0 %v2426
        %v2428 = vpop.xlane.xlu0 %2427
        %v2429 = vsub.f32 %v2274, %v2383
        %v2430 = vsub.f32 %v2277, %v2386
        %v2431 = vsub.f32 %v2282, %v2389
        %v2432 = vsub.f32 %v2285, %v2392
        %v2433 = vsub.f32 %v2290, %v2395
        %v2434 = vsub.f32 %v2293, %v2398
        %v2435 = vsub.f32 %v2298, %v2401
        %v2436 = vsub.f32 %v2301, %v2404
        %v2437 = vsub.f32 %v2351, %v2407
        %v2438 = vsub.f32 %v2354, %v2410
        %v2439 = vsub.f32 %v2359, %v2413
        %v2440 = vsub.f32 %v2362, %v2416
        %v2441 = vsub.f32 %v2367, %v2419
        %v2442 = vsub.f32 %v2370, %v2422
        %v2443 = vsub.f32 %v2375, %v2425
        %v2444 = vsub.f32 %v2378, %v2428
        %v2445 = vmul.f32 %v2429, 1.442695
        %v2446 = vpow.pop %v2445
        %v2447 = vmul.f32 %v2430, 1.442695
        %v2448 = vpow.pop %v2447
        %v2449 = vmul.f32 %v2431, 1.442695
        %v2450 = vpow.pop %v2449
        %v2451 = vmul.f32 %v2432, 1.442695
        %v2452 = vpow.pop %v2451
        %v2453 = vmul.f32 %v2433, 1.442695
        %v2454 = vpow.pop %v2453
        %v2455 = vmul.f32 %v2434, 1.442695
        %v2456 = vpow.pop %v2455
        %v2457 = vmul.f32 %v2435, 1.442695
        %v2458 = vpow.pop %v2457
        %v2459 = vmul.f32 %v2436, 1.442695
        %v2460 = vpow.pop %v2459
        %v2461 = vmul.f32 %v2437, 1.442695
        %v2462 = vpow.pop %v2461
        %v2463 = vmul.f32 %v2438, 1.442695
        %v2464 = vpow.pop %v2463
        %v2465 = vmul.f32 %v2439, 1.442695
        %v2466 = vpow.pop %v2465
        %v2467 = vmul.f32 %v2440, 1.442695
        %v2468 = vpow.pop %v2467
        %v2469 = vmul.f32 %v2441, 1.442695
        %v2470 = vpow.pop %v2469
        %v2471 = vmul.f32 %v2442, 1.442695
        %v2472 = vpow.pop %v2471
        %v2473 = vmul.f32 %v2443, 1.442695
        %v2474 = vpow.pop %v2473
        %v2475 = vmul.f32 %v2444, 1.442695
        %v2476 = vpow.pop %v2475
        %v2477 = vsel %vm1238, %v2446, 0.0
        %2478 = vadd.xlane.f32.xlu0 %v2477
        %v2479 = vpop.xlane.xlu0 %2478
        %v2480 = vsel %vm1238, %v2448, 0.0
        %2481 = vadd.xlane.f32.xlu0 %v2480
        %v2482 = vpop.xlane.xlu0 %2481
        %v2483 = vsel %vm1238, %v2450, 0.0
        %2484 = vadd.xlane.f32.xlu0 %v2483
        %v2485 = vpop.xlane.xlu0 %2484
        %v2486 = vsel %vm1238, %v2452, 0.0
        %2487 = vadd.xlane.f32.xlu0 %v2486
        %v2488 = vpop.xlane.xlu0 %2487
        %v2489 = vsel %vm1238, %v2454, 0.0
        %2490 = vadd.xlane.f32.xlu0 %v2489
        %v2491 = vpop.xlane.xlu0 %2490
        %v2492 = vsel %vm1238, %v2456, 0.0
        %2493 = vadd.xlane.f32.xlu0 %v2492
        %v2494 = vpop.xlane.xlu0 %2493
        %v2495 = vsel %vm1238, %v2458, 0.0
        %2496 = vadd.xlane.f32.xlu0 %v2495
        %v2497 = vpop.xlane.xlu0 %2496
        %v2498 = vsel %vm1238, %v2460, 0.0
        %2499 = vadd.xlane.f32.xlu0 %v2498
        %v2500 = vpop.xlane.xlu0 %2499
        %v2501 = vsel %vm1238, %v2462, 0.0
        %2502 = vadd.xlane.f32.xlu0 %v2501
        %v2503 = vpop.xlane.xlu0 %2502
        %v2504 = vsel %vm1238, %v2464, 0.0
        %2505 = vadd.xlane.f32.xlu0 %v2504
        %v2506 = vpop.xlane.xlu0 %2505
        %v2507 = vsel %vm1238, %v2466, 0.0
        %2508 = vadd.xlane.f32.xlu0 %v2507
        %v2509 = vpop.xlane.xlu0 %2508
        %v2510 = vsel %vm1238, %v2468, 0.0
        %2511 = vadd.xlane.f32.xlu0 %v2510
        %v2512 = vpop.xlane.xlu0 %2511
        %v2513 = vsel %vm1238, %v2470, 0.0
        %2514 = vadd.xlane.f32.xlu0 %v2513
        %v2515 = vpop.xlane.xlu0 %2514
        %v2516 = vsel %vm1238, %v2472, 0.0
        %2517 = vadd.xlane.f32.xlu0 %v2516
        %v2518 = vpop.xlane.xlu0 %2517
        %v2519 = vsel %vm1238, %v2474, 0.0
        %2520 = vadd.xlane.f32.xlu0 %v2519
        %v2521 = vpop.xlane.xlu0 %2520
        %v2522 = vsel %vm1238, %v2476, 0.0
        %2523 = vadd.xlane.f32.xlu0 %v2522
        %v2524 = vpop.xlane.xlu0 %2523
        %v2525 = vrcp.pop %v2479
        %v2526 = vrcp.pop %v2482
        %v2527 = vrcp.pop %v2485
        %v2528 = vrcp.pop %v2488
        %v2529 = vrcp.pop %v2491
        %v2530 = vrcp.pop %v2494
        %v2531 = vrcp.pop %v2497
        %v2532 = vrcp.pop %v2500
        %v2533 = vrcp.pop %v2503
        %v2534 = vrcp.pop %v2506
        %v2535 = vrcp.pop %v2509
        %v2536 = vrcp.pop %v2512
        %v2537 = vrcp.pop %v2515
        %v2538 = vrcp.pop %v2518
        %v2539 = vrcp.pop %v2521
        %v2540 = vrcp.pop %v2524
        %v2541 = vmul.f32 %v2446, %v2525
        %v2542 = vmul.f32 %v2448, %v2526
        %v2543 = vmul.f32 %v2450, %v2527
        %v2544 = vmul.f32 %v2452, %v2528
        %v2545 = vmul.f32 %v2454, %v2529
        %v2546 = vmul.f32 %v2456, %v2530
        %v2547 = vmul.f32 %v2458, %v2531
        %v2548 = vmul.f32 %v2460, %v2532
        %v2549 = vmul.f32 %v2462, %v2533
        %v2550 = vmul.f32 %v2464, %v2534
        %v2551 = vmul.f32 %v2466, %v2535
        %v2552 = vmul.f32 %v2468, %v2536
        %v2553 = vmul.f32 %v2470, %v2537
        %v2554 = vmul.f32 %v2472, %v2538
        %v2555 = vmul.f32 %v2474, %v2539
        %v2556 = vmul.f32 %v2476, %v2540
        %v2557 = vpack.c.bf16 %v2542, %v2541
        %v2558 = vpack.c.bf16 %v2544, %v2543
        %v2559 = vpack.c.bf16 %v2546, %v2545
        %v2560 = vpack.c.bf16 %v2548, %v2547
        %v2561 = vpack.c.bf16 %v2550, %v2549
        %v2562 = vpack.c.bf16 %v2552, %v2551
        %v2563 = vpack.c.bf16 %v2554, %v2553
        %v2564 = vpack.c.bf16 %v2556, %v2555
        %v2566 = vsel %vm1238, %v2557, 0
        %v2569 = vsel %vm1238, %v2558, 0
        %v2572 = vsel %vm1238, %v2559, 0
        %v2575 = vsel %vm1238, %v2560, 0
        %2577 = vmatprep.subr.bf16.mxu0 0
        %2578 = vmatpush1.bf16.msra.mxu0 0
        %2579 = vmatprep.subr.bf16.mxu0 0
        %2580 = vmatpush1.bf16.msra.mxu0 0
        %2581 = vmatprep.subr.bf16.mxu0 0
        %2582 = vmatpush1.bf16.msra.mxu0 0
        %2583 = vmatprep.subr.bf16.mxu0 0
        %2584 = vmatpush1.bf16.msra.mxu0 0
        %2585 = vmatprep.subr.bf16.mxu0 0
        %2586 = vmatpush1.bf16.msra.mxu0 %v1009
        %2587 = vmatprep.subr.bf16.mxu0 0
        %2588 = vmatpush1.bf16.msra.mxu0 %v1008
        %2589 = vmatprep.subr.bf16.mxu0 0
        %2590 = vmatpush1.bf16.msra.mxu0 %v1007
        %2591 = vmatprep.subr.bf16.mxu0 0
        %2592 = vmatpush1.bf16.msra.mxu0 %v1006
        %2593 = vmatprep.subr.bf16.mxu0 0
        %2594 = vmatpush2.bf16.msra.mxu0 0
        %2595 = vmatprep.subr.bf16.mxu0 0
        %2596 = vmatpush2.bf16.msra.mxu0 0
        %2597 = vmatprep.subr.bf16.mxu0 0
        %2598 = vmatpush2.bf16.msra.mxu0 0
        %2599 = vmatprep.subr.bf16.mxu0 0
        %2600 = vmatpush2.bf16.msra.mxu0 0
        %2601 = vmatprep.subr.bf16.mxu0 0
        %2602 = vmatpush2.bf16.msra.mxu0 0
        %2603 = vmatprep.subr.bf16.mxu0 0
        %2604 = vmatpush2.bf16.msra.mxu0 0
        %2605 = vmatprep.subr.bf16.mxu0 0
        %2606 = vmatpush2.bf16.msra.mxu0 0
        %2607 = vmatprep.subr.bf16.mxu0 0
        %2608 = vmatpush2.bf16.msra.mxu0 0
        %2609 = vmatprep.mubr.bf16.mxu0 0
        %2610 = vmatmul.mubr.bf16.gmra.mxu0 %v2566
        %v2611 = vpop.f32.mrf.mxu0
        %v2612 = vadd.f32 0.0, %v2611
        %v2613 = vpop.f32.mrf.mxu0
        %v2614 = vpop.f32.mrf.mxu0
        %v2615 = vadd.f32 0.0, %v2614
        %v2616 = vpop.f32.mrf.mxu0
        %2617 = vmatprep.mubr.bf16.mxu0 0
        %2618 = vmatmul.mubr.bf16.gmra.mxu0 %v2569
        %v2619 = vpop.f32.mrf.mxu0
        %v2620 = vadd.f32 0.0, %v2619
        %v2621 = vpop.f32.mrf.mxu0
        %v2622 = vpop.f32.mrf.mxu0
        %v2623 = vadd.f32 0.0, %v2622
        %v2624 = vpop.f32.mrf.mxu0
        %2625 = vmatprep.mubr.bf16.mxu0 0
        %2626 = vmatmul.mubr.bf16.gmra.mxu0 %v2572
        %v2627 = vpop.f32.mrf.mxu0
        %v2628 = vadd.f32 0.0, %v2627
        %v2629 = vpop.f32.mrf.mxu0
        %v2630 = vpop.f32.mrf.mxu0
        %v2631 = vadd.f32 0.0, %v2630
        %v2632 = vpop.f32.mrf.mxu0
        %2633 = vmatprep.mubr.bf16.mxu0 0
        %2634 = vmatmul.mubr.bf16.gmra.mxu0 %v2575
        %v2635 = vpop.f32.mrf.mxu0
        %v2636 = vadd.f32 0.0, %v2635
        %v2637 = vpop.f32.mrf.mxu0
        %v2638 = vpop.f32.mrf.mxu0
        %v2639 = vadd.f32 0.0, %v2638
        %v2640 = vpop.f32.mrf.mxu0
        %2641 = vdwg.mxu0
        %v2643 = vsel %vm1238, %v2561, 0
        %v2646 = vsel %vm1238, %v2562, 0
        %v2649 = vsel %vm1238, %v2563, 0
        %v2652 = vsel %vm1238, %v2564, 0
        %2654 = vmatprep.subr.bf16.mxu0 0
        %2655 = vmatpush1.bf16.msra.mxu0 0
        %2656 = vmatprep.subr.bf16.mxu0 0
        %2657 = vmatpush1.bf16.msra.mxu0 0
        %2658 = vmatprep.subr.bf16.mxu0 0
        %2659 = vmatpush1.bf16.msra.mxu0 0
        %2660 = vmatprep.subr.bf16.mxu0 0
        %2661 = vmatpush1.bf16.msra.mxu0 0
        %2662 = vmatprep.subr.bf16.mxu0 0
        %2663 = vmatpush1.bf16.msra.mxu0 %v1013
        %2664 = vmatprep.subr.bf16.mxu0 0
        %2665 = vmatpush1.bf16.msra.mxu0 %v1012
        %2666 = vmatprep.subr.bf16.mxu0 0
        %2667 = vmatpush1.bf16.msra.mxu0 %v1011
        %2668 = vmatprep.subr.bf16.mxu0 0
        %2669 = vmatpush1.bf16.msra.mxu0 %v1010
        %2670 = vmatprep.subr.bf16.mxu0 0
        %2671 = vmatpush2.bf16.msra.mxu0 0
        %2672 = vmatprep.subr.bf16.mxu0 0
        %2673 = vmatpush2.bf16.msra.mxu0 0
        %2674 = vmatprep.subr.bf16.mxu0 0
        %2675 = vmatpush2.bf16.msra.mxu0 0
        %2676 = vmatprep.subr.bf16.mxu0 0
        %2677 = vmatpush2.bf16.msra.mxu0 0
        %2678 = vmatprep.subr.bf16.mxu0 0
        %2679 = vmatpush2.bf16.msra.mxu0 0
        %2680 = vmatprep.subr.bf16.mxu0 0
        %2681 = vmatpush2.bf16.msra.mxu0 0
        %2682 = vmatprep.subr.bf16.mxu0 0
        %2683 = vmatpush2.bf16.msra.mxu0 0
        %2684 = vmatprep.subr.bf16.mxu0 0
        %2685 = vmatpush2.bf16.msra.mxu0 0
        %2686 = vmatprep.mubr.bf16.mxu0 0
        %2687 = vmatmul.mubr.bf16.gmra.mxu0 %v2643
        %v2688 = vpop.f32.mrf.mxu0
        %v2689 = vadd.f32 0.0, %v2688
        %v2690 = vpop.f32.mrf.mxu0
        %v2691 = vpop.f32.mrf.mxu0
        %v2692 = vadd.f32 0.0, %v2691
        %v2693 = vpop.f32.mrf.mxu0
        %2694 = vmatprep.mubr.bf16.mxu0 0
        %2695 = vmatmul.mubr.bf16.gmra.mxu0 %v2646
        %v2696 = vpop.f32.mrf.mxu0
        %v2697 = vadd.f32 0.0, %v2696
        %v2698 = vpop.f32.mrf.mxu0
        %v2699 = vpop.f32.mrf.mxu0
        %v2700 = vadd.f32 0.0, %v2699
        %v2701 = vpop.f32.mrf.mxu0
        %2702 = vmatprep.mubr.bf16.mxu0 0
        %2703 = vmatmul.mubr.bf16.gmra.mxu0 %v2649
        %v2704 = vpop.f32.mrf.mxu0
        %v2705 = vadd.f32 0.0, %v2704
        %v2706 = vpop.f32.mrf.mxu0
        %v2707 = vpop.f32.mrf.mxu0
        %v2708 = vadd.f32 0.0, %v2707
        %v2709 = vpop.f32.mrf.mxu0
        %2710 = vmatprep.mubr.bf16.mxu0 0
        %2711 = vmatmul.mubr.bf16.gmra.mxu0 %v2652
        %v2712 = vpop.f32.mrf.mxu0
        %v2713 = vadd.f32 0.0, %v2712
        %v2714 = vpop.f32.mrf.mxu0
        %v2715 = vpop.f32.mrf.mxu0
        %v2716 = vadd.f32 0.0, %v2715
        %v2717 = vpop.f32.mrf.mxu0
        %2718 = vdwg.mxu0
        %v2719 = vmul.f32 %v2612, %v2184
        %v2720 = vmul.f32 %v2615, %v2184
        %v2721 = vmul.f32 %v2620, %v2184
        %v2722 = vmul.f32 %v2623, %v2184
        %v2723 = vmul.f32 %v2628, %v2184
        %v2724 = vmul.f32 %v2631, %v2184
        %v2725 = vmul.f32 %v2636, %v2184
        %v2726 = vmul.f32 %v2639, %v2184
        %v2727 = vmul.f32 %v2689, %v2184
        %v2728 = vmul.f32 %v2692, %v2184
        %v2729 = vmul.f32 %v2697, %v2184
        %v2730 = vmul.f32 %v2700, %v2184
        %v2731 = vmul.f32 %v2705, %v2184
        %v2732 = vmul.f32 %v2708, %v2184
        %v2733 = vmul.f32 %v2713, %v2184
        %v2734 = vmul.f32 %v2716, %v2184
        %v2735 = vadd.f32 %v2164, %v2719
        %v2736 = vadd.f32 %v2165, %v2720
        %v2737 = vadd.f32 %v2166, %v2721
        %v2738 = vadd.f32 %v2167, %v2722
        %v2739 = vadd.f32 %v2168, %v2723
        %v2740 = vadd.f32 %v2169, %v2724
        %v2741 = vadd.f32 %v2170, %v2725
        %v2742 = vadd.f32 %v2171, %v2726
        %v2743 = vadd.f32 %v2172, %v2727
        %v2744 = vadd.f32 %v2173, %v2728
        %v2745 = vadd.f32 %v2174, %v2729
        %v2746 = vadd.f32 %v2175, %v2730
        %v2747 = vadd.f32 %v2176, %v2731
        %v2748 = vadd.f32 %v2177, %v2732
        %v2749 = vadd.f32 %v2178, %v2733
        %v2750 = vadd.f32 %v2179, %v2734
        %v2752 = vlaneseq
        %v2753 = vshrl.u32 %v2752, 7
        %v2754 = vsub.s32 0, %v2753
        %v2755 = vrot.slane %v997, %v2754
        %v2757 = vmul.f32 %v496, %v2755
        %v2758 = vmul.f32 %v504, %v2755
        %v2759 = vmul.f32 %v512, %v2755
        %v2760 = vmul.f32 %v520, %v2755
        %v2761 = vmul.f32 %v528, %v2755
        %v2762 = vmul.f32 %v536, %v2755
        %v2763 = vmul.f32 %v544, %v2755
        %v2764 = vmul.f32 %v552, %v2755
        %v2765 = vmul.f32 %v560, %v2755
        %v2766 = vmul.f32 %v568, %v2755
        %v2767 = vmul.f32 %v576, %v2755
        %v2768 = vmul.f32 %v584, %v2755
        %v2769 = vmul.f32 %v592, %v2755
        %v2770 = vmul.f32 %v600, %v2755
        %v2771 = vmul.f32 %v608, %v2755
        %v2772 = vmul.f32 %v616, %v2755
        %v2773 = vpack.c.bf16 %v2758, %v2757
        %v2774 = vpack.c.bf16 %v2760, %v2759
        %v2775 = vpack.c.bf16 %v2762, %v2761
        %v2776 = vpack.c.bf16 %v2764, %v2763
        %v2777 = vpack.c.bf16 %v2766, %v2765
        %v2778 = vpack.c.bf16 %v2768, %v2767
        %v2779 = vpack.c.bf16 %v2770, %v2769
        %v2780 = vpack.c.bf16 %v2772, %v2771
        %s2781 = scalar_lea.vmem %s306, 192 [#allocation8]
        %v2782 = vld [vmem:[%s2781] sm:$0xf]
        %v2783 = vld [vmem:[%s2781 + $0x4] sm:$0xf]
        %v2784 = vld [vmem:[%s2781 + $0x8] sm:$0xf]
        %v2785 = vld [vmem:[%s2781 + $0xc] sm:$0xf]
        %v2786 = vld [vmem:[%s2781 + $0x10] sm:$0xf]
        %v2787 = vld [vmem:[%s2781 + $0x14] sm:$0xf]
        %v2788 = vld [vmem:[%s2781 + $0x18] sm:$0xf]
        %v2789 = vld [vmem:[%s2781 + $0x1c] sm:$0xf]
        %v2790 = vunpack.c.l.bf16 %v2782
        %v2791 = vunpack.c.l.bf16 %v2783
        %v2792 = vunpack.c.l.bf16 %v2784
        %v2793 = vunpack.c.l.bf16 %v2785
        %v2794 = vunpack.c.l.bf16 %v2786
        %v2795 = vunpack.c.l.bf16 %v2787
        %v2796 = vunpack.c.l.bf16 %v2788
        %v2797 = vunpack.c.l.bf16 %v2789
        %v2799 = vsel %vm412, %v2773, 0
        %v2802 = vsel %vm412, %v2774, 0
        %v2805 = vsel %vm412, %v2775, 0
        %v2808 = vsel %vm412, %v2776, 0
        %2810 = vmatprep.subr.bf16.mxu0 0
        %2811 = vmatpush1.bf16.xpose.msra.mxu0 0
        %2812 = vmatprep.subr.bf16.mxu0 0
        %2813 = vmatpush1.bf16.xpose.msra.mxu0 0
        %2814 = vmatprep.subr.bf16.mxu0 0
        %2815 = vmatpush1.bf16.xpose.msra.mxu0 0
        %2816 = vmatprep.subr.bf16.mxu0 0
        %2817 = vmatpush1.bf16.xpose.msra.mxu0 0
        %2818 = vmatprep.subr.bf16.mxu0 0
        %2819 = vmatpush1.bf16.xpose.msra.mxu0 %v1082
        %2820 = vmatprep.subr.bf16.mxu0 0
        %2821 = vmatpush1.bf16.xpose.msra.mxu0 %v1079
        %2822 = vmatprep.subr.bf16.mxu0 0
        %2823 = vmatpush1.bf16.xpose.msra.mxu0 %v1076
        %2824 = vmatprep.subr.bf16.mxu0 0
        %2825 = vmatpush1.bf16.xpose.msra.mxu0 %v1073
        %2826 = vmatprep.subr.bf16.mxu0 0
        %2827 = vmatpush2.bf16.xpose.msra.mxu0 0
        %2828 = vmatprep.subr.bf16.mxu0 0
        %2829 = vmatpush2.bf16.xpose.msra.mxu0 0
        %2830 = vmatprep.subr.bf16.mxu0 0
        %2831 = vmatpush2.bf16.xpose.msra.mxu0 0
        %2832 = vmatprep.subr.bf16.mxu0 0
        %2833 = vmatpush2.bf16.xpose.msra.mxu0 0
        %2834 = vmatprep.subr.bf16.mxu0 0
        %2835 = vmatpush2.bf16.xpose.msra.mxu0 0
        %2836 = vmatprep.subr.bf16.mxu0 0
        %2837 = vmatpush2.bf16.xpose.msra.mxu0 0
        %2838 = vmatprep.subr.bf16.mxu0 0
        %2839 = vmatpush2.bf16.xpose.msra.mxu0 0
        %2840 = vmatprep.subr.bf16.mxu0 0
        %2841 = vmatpush2.bf16.xpose.msra.mxu0 0
        %2842 = vmatprep.mubr.bf16.mxu0 0
        %2843 = vmatmul.mubr.bf16.gmra.mxu0 %v2799
        %v2844 = vpop.f32.mrf.mxu0
        %v2845 = vadd.f32 %v2790, %v2844
        %v2846 = vpop.f32.mrf.mxu0
        %v2847 = vpop.f32.mrf.mxu0
        %v2848 = vadd.f32 %v2791, %v2847
        %v2849 = vpop.f32.mrf.mxu0
        %2850 = vmatprep.mubr.bf16.mxu0 0
        %2851 = vmatmul.mubr.bf16.gmra.mxu0 %v2802
        %v2852 = vpop.f32.mrf.mxu0
        %v2853 = vadd.f32 %v2792, %v2852
        %v2854 = vpop.f32.mrf.mxu0
        %v2855 = vpop.f32.mrf.mxu0
        %v2856 = vadd.f32 %v2793, %v2855
        %v2857 = vpop.f32.mrf.mxu0
        %2858 = vmatprep.mubr.bf16.mxu0 0
        %2859 = vmatmul.mubr.bf16.gmra.mxu0 %v2805
        %v2860 = vpop.f32.mrf.mxu0
        %v2861 = vadd.f32 %v2794, %v2860
        %v2862 = vpop.f32.mrf.mxu0
        %v2863 = vpop.f32.mrf.mxu0
        %v2864 = vadd.f32 %v2795, %v2863
        %v2865 = vpop.f32.mrf.mxu0
        %2866 = vmatprep.mubr.bf16.mxu0 0
        %2867 = vmatmul.mubr.bf16.gmra.mxu0 %v2808
        %v2868 = vpop.f32.mrf.mxu0
        %v2869 = vadd.f32 %v2796, %v2868
        %v2870 = vpop.f32.mrf.mxu0
        %v2871 = vpop.f32.mrf.mxu0
        %v2872 = vadd.f32 %v2797, %v2871
        %v2873 = vpop.f32.mrf.mxu0
        %2874 = vdwg.mxu0
        %v2876 = vsel %vm412, %v2777, 0
        %v2879 = vsel %vm412, %v2778, 0
        %v2882 = vsel %vm412, %v2779, 0
        %v2885 = vsel %vm412, %v2780, 0
        %2887 = vmatprep.subr.bf16.mxu0 0
        %2888 = vmatpush1.bf16.xpose.msra.mxu0 0
        %2889 = vmatprep.subr.bf16.mxu0 0
        %2890 = vmatpush1.bf16.xpose.msra.mxu0 0
        %2891 = vmatprep.subr.bf16.mxu0 0
        %2892 = vmatpush1.bf16.xpose.msra.mxu0 0
        %2893 = vmatprep.subr.bf16.mxu0 0
        %2894 = vmatpush1.bf16.xpose.msra.mxu0 0
        %2895 = vmatprep.subr.bf16.mxu0 0
        %2896 = vmatpush1.bf16.xpose.msra.mxu0 %v1171
        %2897 = vmatprep.subr.bf16.mxu0 0
        %2898 = vmatpush1.bf16.xpose.msra.mxu0 %v1168
        %2899 = vmatprep.subr.bf16.mxu0 0
        %2900 = vmatpush1.bf16.xpose.msra.mxu0 %v1165
        %2901 = vmatprep.subr.bf16.mxu0 0
        %2902 = vmatpush1.bf16.xpose.msra.mxu0 %v1162
        %2903 = vmatprep.subr.bf16.mxu0 0
        %2904 = vmatpush2.bf16.xpose.msra.mxu0 0
        %2905 = vmatprep.subr.bf16.mxu0 0
        %2906 = vmatpush2.bf16.xpose.msra.mxu0 0
        %2907 = vmatprep.subr.bf16.mxu0 0
        %2908 = vmatpush2.bf16.xpose.msra.mxu0 0
        %2909 = vmatprep.subr.bf16.mxu0 0
        %2910 = vmatpush2.bf16.xpose.msra.mxu0 0
        %2911 = vmatprep.subr.bf16.mxu0 0
        %2912 = vmatpush2.bf16.xpose.msra.mxu0 0
        %2913 = vmatprep.subr.bf16.mxu0 0
        %2914 = vmatpush2.bf16.xpose.msra.mxu0 0
        %2915 = vmatprep.subr.bf16.mxu0 0
        %2916 = vmatpush2.bf16.xpose.msra.mxu0 0
        %2917 = vmatprep.subr.bf16.mxu0 0
        %2918 = vmatpush2.bf16.xpose.msra.mxu0 0
        %2919 = vmatprep.mubr.bf16.mxu0 0
        %2920 = vmatmul.mubr.bf16.gmra.mxu0 %v2876
        %v2921 = vpop.f32.mrf.mxu0
        %v2922 = vadd.f32 %v2790, %v2921
        %v2923 = vpop.f32.mrf.mxu0
        %v2924 = vpop.f32.mrf.mxu0
        %v2925 = vadd.f32 %v2791, %v2924
        %v2926 = vpop.f32.mrf.mxu0
        %2927 = vmatprep.mubr.bf16.mxu0 0
        %2928 = vmatmul.mubr.bf16.gmra.mxu0 %v2879
        %v2929 = vpop.f32.mrf.mxu0
        %v2930 = vadd.f32 %v2792, %v2929
        %v2931 = vpop.f32.mrf.mxu0
        %v2932 = vpop.f32.mrf.mxu0
        %v2933 = vadd.f32 %v2793, %v2932
        %v2934 = vpop.f32.mrf.mxu0
        %2935 = vmatprep.mubr.bf16.mxu0 0
        %2936 = vmatmul.mubr.bf16.gmra.mxu0 %v2882
        %v2937 = vpop.f32.mrf.mxu0
        %v2938 = vadd.f32 %v2794, %v2937
        %v2939 = vpop.f32.mrf.mxu0
        %v2940 = vpop.f32.mrf.mxu0
        %v2941 = vadd.f32 %v2795, %v2940
        %v2942 = vpop.f32.mrf.mxu0
        %2943 = vmatprep.mubr.bf16.mxu0 0
        %2944 = vmatmul.mubr.bf16.gmra.mxu0 %v2885
        %v2945 = vpop.f32.mrf.mxu0
        %v2946 = vadd.f32 %v2796, %v2945
        %v2947 = vpop.f32.mrf.mxu0
        %v2948 = vpop.f32.mrf.mxu0
        %v2949 = vadd.f32 %v2797, %v2948
        %v2950 = vpop.f32.mrf.mxu0
        %2951 = vdwg.mxu0
        %v2952 = vsel %vm1238, %v2845, -inf
        %2953 = vmax.xlane.f32.xlu0 %v2952
        %v2954 = vpop.xlane.xlu0 %2953
        %v2955 = vsel %vm1238, %v2848, -inf
        %2956 = vmax.xlane.f32.xlu0 %v2955
        %v2957 = vpop.xlane.xlu0 %2956
        %v2958 = vsel %vm1238, %v2853, -inf
        %2959 = vmax.xlane.f32.xlu0 %v2958
        %v2960 = vpop.xlane.xlu0 %2959
        %v2961 = vsel %vm1238, %v2856, -inf
        %2962 = vmax.xlane.f32.xlu0 %v2961
        %v2963 = vpop.xlane.xlu0 %2962
        %v2964 = vsel %vm1238, %v2861, -inf
        %2965 = vmax.xlane.f32.xlu0 %v2964
        %v2966 = vpop.xlane.xlu0 %2965
        %v2967 = vsel %vm1238, %v2864, -inf
        %2968 = vmax.xlane.f32.xlu0 %v2967
        %v2969 = vpop.xlane.xlu0 %2968
        %v2970 = vsel %vm1238, %v2869, -inf
        %2971 = vmax.xlane.f32.xlu0 %v2970
        %v2972 = vpop.xlane.xlu0 %2971
        %v2973 = vsel %vm1238, %v2872, -inf
        %2974 = vmax.xlane.f32.xlu0 %v2973
        %v2975 = vpop.xlane.xlu0 %2974
        %v2976 = vsel %vm1238, %v2922, -inf
        %2977 = vmax.xlane.f32.xlu0 %v2976
        %v2978 = vpop.xlane.xlu0 %2977
        %v2979 = vsel %vm1238, %v2925, -inf
        %2980 = vmax.xlane.f32.xlu0 %v2979
        %v2981 = vpop.xlane.xlu0 %2980
        %v2982 = vsel %vm1238, %v2930, -inf
        %2983 = vmax.xlane.f32.xlu0 %v2982
        %v2984 = vpop.xlane.xlu0 %2983
        %v2985 = vsel %vm1238, %v2933, -inf
        %2986 = vmax.xlane.f32.xlu0 %v2985
        %v2987 = vpop.xlane.xlu0 %2986
        %v2988 = vsel %vm1238, %v2938, -inf
        %2989 = vmax.xlane.f32.xlu0 %v2988
        %v2990 = vpop.xlane.xlu0 %2989
        %v2991 = vsel %vm1238, %v2941, -inf
        %2992 = vmax.xlane.f32.xlu0 %v2991
        %v2993 = vpop.xlane.xlu0 %2992
        %v2994 = vsel %vm1238, %v2946, -inf
        %2995 = vmax.xlane.f32.xlu0 %v2994
        %v2996 = vpop.xlane.xlu0 %2995
        %v2997 = vsel %vm1238, %v2949, -inf
        %2998 = vmax.xlane.f32.xlu0 %v2997
        %v2999 = vpop.xlane.xlu0 %2998
        %v3000 = vsub.f32 %v2845, %v2954
        %v3001 = vsub.f32 %v2848, %v2957
        %v3002 = vsub.f32 %v2853, %v2960
        %v3003 = vsub.f32 %v2856, %v2963
        %v3004 = vsub.f32 %v2861, %v2966
        %v3005 = vsub.f32 %v2864, %v2969
        %v3006 = vsub.f32 %v2869, %v2972
        %v3007 = vsub.f32 %v2872, %v2975
        %v3008 = vsub.f32 %v2922, %v2978
        %v3009 = vsub.f32 %v2925, %v2981
        %v3010 = vsub.f32 %v2930, %v2984
        %v3011 = vsub.f32 %v2933, %v2987
        %v3012 = vsub.f32 %v2938, %v2990
        %v3013 = vsub.f32 %v2941, %v2993
        %v3014 = vsub.f32 %v2946, %v2996
        %v3015 = vsub.f32 %v2949, %v2999
        %v3016 = vmul.f32 %v3000, 1.442695
        %v3017 = vpow.pop %v3016
        %v3018 = vmul.f32 %v3001, 1.442695
        %v3019 = vpow.pop %v3018
        %v3020 = vmul.f32 %v3002, 1.442695
        %v3021 = vpow.pop %v3020
        %v3022 = vmul.f32 %v3003, 1.442695
        %v3023 = vpow.pop %v3022
        %v3024 = vmul.f32 %v3004, 1.442695
        %v3025 = vpow.pop %v3024
        %v3026 = vmul.f32 %v3005, 1.442695
        %v3027 = vpow.pop %v3026
        %v3028 = vmul.f32 %v3006, 1.442695
        %v3029 = vpow.pop %v3028
        %v3030 = vmul.f32 %v3007, 1.442695
        %v3031 = vpow.pop %v3030
        %v3032 = vmul.f32 %v3008, 1.442695
        %v3033 = vpow.pop %v3032
        %v3034 = vmul.f32 %v3009, 1.442695
        %v3035 = vpow.pop %v3034
        %v3036 = vmul.f32 %v3010, 1.442695
        %v3037 = vpow.pop %v3036
        %v3038 = vmul.f32 %v3011, 1.442695
        %v3039 = vpow.pop %v3038
        %v3040 = vmul.f32 %v3012, 1.442695
        %v3041 = vpow.pop %v3040
        %v3042 = vmul.f32 %v3013, 1.442695
        %v3043 = vpow.pop %v3042
        %v3044 = vmul.f32 %v3014, 1.442695
        %v3045 = vpow.pop %v3044
        %v3046 = vmul.f32 %v3015, 1.442695
        %v3047 = vpow.pop %v3046
        %v3048 = vsel %vm1238, %v3017, 0.0
        %3049 = vadd.xlane.f32.xlu0 %v3048
        %v3050 = vpop.xlane.xlu0 %3049
        %v3051 = vsel %vm1238, %v3019, 0.0
        %3052 = vadd.xlane.f32.xlu0 %v3051
        %v3053 = vpop.xlane.xlu0 %3052
        %v3054 = vsel %vm1238, %v3021, 0.0
        %3055 = vadd.xlane.f32.xlu0 %v3054
        %v3056 = vpop.xlane.xlu0 %3055
        %v3057 = vsel %vm1238, %v3023, 0.0
        %3058 = vadd.xlane.f32.xlu0 %v3057
        %v3059 = vpop.xlane.xlu0 %3058
        %v3060 = vsel %vm1238, %v3025, 0.0
        %3061 = vadd.xlane.f32.xlu0 %v3060
        %v3062 = vpop.xlane.xlu0 %3061
        %v3063 = vsel %vm1238, %v3027, 0.0
        %3064 = vadd.xlane.f32.xlu0 %v3063
        %v3065 = vpop.xlane.xlu0 %3064
        %v3066 = vsel %vm1238, %v3029, 0.0
        %3067 = vadd.xlane.f32.xlu0 %v3066
        %v3068 = vpop.xlane.xlu0 %3067
        %v3069 = vsel %vm1238, %v3031, 0.0
        %3070 = vadd.xlane.f32.xlu0 %v3069
        %v3071 = vpop.xlane.xlu0 %3070
        %v3072 = vsel %vm1238, %v3033, 0.0
        %3073 = vadd.xlane.f32.xlu0 %v3072
        %v3074 = vpop.xlane.xlu0 %3073
        %v3075 = vsel %vm1238, %v3035, 0.0
        %3076 = vadd.xlane.f32.xlu0 %v3075
        %v3077 = vpop.xlane.xlu0 %3076
        %v3078 = vsel %vm1238, %v3037, 0.0
        %3079 = vadd.xlane.f32.xlu0 %v3078
        %v3080 = vpop.xlane.xlu0 %3079
        %v3081 = vsel %vm1238, %v3039, 0.0
        %3082 = vadd.xlane.f32.xlu0 %v3081
        %v3083 = vpop.xlane.xlu0 %3082
        %v3084 = vsel %vm1238, %v3041, 0.0
        %3085 = vadd.xlane.f32.xlu0 %v3084
        %v3086 = vpop.xlane.xlu0 %3085
        %v3087 = vsel %vm1238, %v3043, 0.0
        %3088 = vadd.xlane.f32.xlu0 %v3087
        %v3089 = vpop.xlane.xlu0 %3088
        %v3090 = vsel %vm1238, %v3045, 0.0
        %3091 = vadd.xlane.f32.xlu0 %v3090
        %v3092 = vpop.xlane.xlu0 %3091
        %v3093 = vsel %vm1238, %v3047, 0.0
        %3094 = vadd.xlane.f32.xlu0 %v3093
        %v3095 = vpop.xlane.xlu0 %3094
        %v3096 = vrcp.pop %v3050
        %v3097 = vrcp.pop %v3053
        %v3098 = vrcp.pop %v3056
        %v3099 = vrcp.pop %v3059
        %v3100 = vrcp.pop %v3062
        %v3101 = vrcp.pop %v3065
        %v3102 = vrcp.pop %v3068
        %v3103 = vrcp.pop %v3071
        %v3104 = vrcp.pop %v3074
        %v3105 = vrcp.pop %v3077
        %v3106 = vrcp.pop %v3080
        %v3107 = vrcp.pop %v3083
        %v3108 = vrcp.pop %v3086
        %v3109 = vrcp.pop %v3089
        %v3110 = vrcp.pop %v3092
        %v3111 = vrcp.pop %v3095
        %v3112 = vmul.f32 %v3017, %v3096
        %v3113 = vmul.f32 %v3019, %v3097
        %v3114 = vmul.f32 %v3021, %v3098
        %v3115 = vmul.f32 %v3023, %v3099
        %v3116 = vmul.f32 %v3025, %v3100
        %v3117 = vmul.f32 %v3027, %v3101
        %v3118 = vmul.f32 %v3029, %v3102
        %v3119 = vmul.f32 %v3031, %v3103
        %v3120 = vmul.f32 %v3033, %v3104
        %v3121 = vmul.f32 %v3035, %v3105
        %v3122 = vmul.f32 %v3037, %v3106
        %v3123 = vmul.f32 %v3039, %v3107
        %v3124 = vmul.f32 %v3041, %v3108
        %v3125 = vmul.f32 %v3043, %v3109
        %v3126 = vmul.f32 %v3045, %v3110
        %v3127 = vmul.f32 %v3047, %v3111
        %v3128 = vpack.c.bf16 %v3113, %v3112
        %v3129 = vpack.c.bf16 %v3115, %v3114
        %v3130 = vpack.c.bf16 %v3117, %v3116
        %v3131 = vpack.c.bf16 %v3119, %v3118
        %v3132 = vpack.c.bf16 %v3121, %v3120
        %v3133 = vpack.c.bf16 %v3123, %v3122
        %v3134 = vpack.c.bf16 %v3125, %v3124
        %v3135 = vpack.c.bf16 %v3127, %v3126
        %v3137 = vsel %vm1238, %v3128, 0
        %v3140 = vsel %vm1238, %v3129, 0
        %v3143 = vsel %vm1238, %v3130, 0
        %v3146 = vsel %vm1238, %v3131, 0
        %3148 = vmatprep.subr.bf16.mxu0 0
        %3149 = vmatpush1.bf16.msra.mxu0 0
        %3150 = vmatprep.subr.bf16.mxu0 0
        %3151 = vmatpush1.bf16.msra.mxu0 0
        %3152 = vmatprep.subr.bf16.mxu0 0
        %3153 = vmatpush1.bf16.msra.mxu0 0
        %3154 = vmatprep.subr.bf16.mxu0 0
        %3155 = vmatpush1.bf16.msra.mxu0 0
        %3156 = vmatprep.subr.bf16.mxu0 0
        %3157 = vmatpush1.bf16.msra.mxu0 %v1009
        %3158 = vmatprep.subr.bf16.mxu0 0
        %3159 = vmatpush1.bf16.msra.mxu0 %v1008
        %3160 = vmatprep.subr.bf16.mxu0 0
        %3161 = vmatpush1.bf16.msra.mxu0 %v1007
        %3162 = vmatprep.subr.bf16.mxu0 0
        %3163 = vmatpush1.bf16.msra.mxu0 %v1006
        %3164 = vmatprep.subr.bf16.mxu0 0
        %3165 = vmatpush2.bf16.msra.mxu0 0
        %3166 = vmatprep.subr.bf16.mxu0 0
        %3167 = vmatpush2.bf16.msra.mxu0 0
        %3168 = vmatprep.subr.bf16.mxu0 0
        %3169 = vmatpush2.bf16.msra.mxu0 0
        %3170 = vmatprep.subr.bf16.mxu0 0
        %3171 = vmatpush2.bf16.msra.mxu0 0
        %3172 = vmatprep.subr.bf16.mxu0 0
        %3173 = vmatpush2.bf16.msra.mxu0 0
        %3174 = vmatprep.subr.bf16.mxu0 0
        %3175 = vmatpush2.bf16.msra.mxu0 0
        %3176 = vmatprep.subr.bf16.mxu0 0
        %3177 = vmatpush2.bf16.msra.mxu0 0
        %3178 = vmatprep.subr.bf16.mxu0 0
        %3179 = vmatpush2.bf16.msra.mxu0 0
        %3180 = vmatprep.mubr.bf16.mxu0 0
        %3181 = vmatmul.mubr.bf16.gmra.mxu0 %v3137
        %v3182 = vpop.f32.mrf.mxu0
        %v3183 = vadd.f32 0.0, %v3182
        %v3184 = vpop.f32.mrf.mxu0
        %v3185 = vpop.f32.mrf.mxu0
        %v3186 = vadd.f32 0.0, %v3185
        %v3187 = vpop.f32.mrf.mxu0
        %3188 = vmatprep.mubr.bf16.mxu0 0
        %3189 = vmatmul.mubr.bf16.gmra.mxu0 %v3140
        %v3190 = vpop.f32.mrf.mxu0
        %v3191 = vadd.f32 0.0, %v3190
        %v3192 = vpop.f32.mrf.mxu0
        %v3193 = vpop.f32.mrf.mxu0
        %v3194 = vadd.f32 0.0, %v3193
        %v3195 = vpop.f32.mrf.mxu0
        %3196 = vmatprep.mubr.bf16.mxu0 0
        %3197 = vmatmul.mubr.bf16.gmra.mxu0 %v3143
        %v3198 = vpop.f32.mrf.mxu0
        %v3199 = vadd.f32 0.0, %v3198
        %v3200 = vpop.f32.mrf.mxu0
        %v3201 = vpop.f32.mrf.mxu0
        %v3202 = vadd.f32 0.0, %v3201
        %v3203 = vpop.f32.mrf.mxu0
        %3204 = vmatprep.mubr.bf16.mxu0 0
        %3205 = vmatmul.mubr.bf16.gmra.mxu0 %v3146
        %v3206 = vpop.f32.mrf.mxu0
        %v3207 = vadd.f32 0.0, %v3206
        %v3208 = vpop.f32.mrf.mxu0
        %v3209 = vpop.f32.mrf.mxu0
        %v3210 = vadd.f32 0.0, %v3209
        %v3211 = vpop.f32.mrf.mxu0
        %3212 = vdwg.mxu0
        %v3214 = vsel %vm1238, %v3132, 0
        %v3217 = vsel %vm1238, %v3133, 0
        %v3220 = vsel %vm1238, %v3134, 0
        %v3223 = vsel %vm1238, %v3135, 0
        %3225 = vmatprep.subr.bf16.mxu0 0
        %3226 = vmatpush1.bf16.msra.mxu0 0
        %3227 = vmatprep.subr.bf16.mxu0 0
        %3228 = vmatpush1.bf16.msra.mxu0 0
        %3229 = vmatprep.subr.bf16.mxu0 0
        %3230 = vmatpush1.bf16.msra.mxu0 0
        %3231 = vmatprep.subr.bf16.mxu0 0
        %3232 = vmatpush1.bf16.msra.mxu0 0
        %3233 = vmatprep.subr.bf16.mxu0 0
        %3234 = vmatpush1.bf16.msra.mxu0 %v1013
        %3235 = vmatprep.subr.bf16.mxu0 0
        %3236 = vmatpush1.bf16.msra.mxu0 %v1012
        %3237 = vmatprep.subr.bf16.mxu0 0
        %3238 = vmatpush1.bf16.msra.mxu0 %v1011
        %3239 = vmatprep.subr.bf16.mxu0 0
        %3240 = vmatpush1.bf16.msra.mxu0 %v1010
        %3241 = vmatprep.subr.bf16.mxu0 0
        %3242 = vmatpush2.bf16.msra.mxu0 0
        %3243 = vmatprep.subr.bf16.mxu0 0
        %3244 = vmatpush2.bf16.msra.mxu0 0
        %3245 = vmatprep.subr.bf16.mxu0 0
        %3246 = vmatpush2.bf16.msra.mxu0 0
        %3247 = vmatprep.subr.bf16.mxu0 0
        %3248 = vmatpush2.bf16.msra.mxu0 0
        %3249 = vmatprep.subr.bf16.mxu0 0
        %3250 = vmatpush2.bf16.msra.mxu0 0
        %3251 = vmatprep.subr.bf16.mxu0 0
        %3252 = vmatpush2.bf16.msra.mxu0 0
        %3253 = vmatprep.subr.bf16.mxu0 0
        %3254 = vmatpush2.bf16.msra.mxu0 0
        %3255 = vmatprep.subr.bf16.mxu0 0
        %3256 = vmatpush2.bf16.msra.mxu0 0
        %3257 = vmatprep.mubr.bf16.mxu0 0
        %3258 = vmatmul.mubr.bf16.gmra.mxu0 %v3214
        %v3259 = vpop.f32.mrf.mxu0
        %v3260 = vadd.f32 0.0, %v3259
        %v3261 = vpop.f32.mrf.mxu0
        %v3262 = vpop.f32.mrf.mxu0
        %v3263 = vadd.f32 0.0, %v3262
        %v3264 = vpop.f32.mrf.mxu0
        %3265 = vmatprep.mubr.bf16.mxu0 0
        %3266 = vmatmul.mubr.bf16.gmra.mxu0 %v3217
        %v3267 = vpop.f32.mrf.mxu0
        %v3268 = vadd.f32 0.0, %v3267
        %v3269 = vpop.f32.mrf.mxu0
        %v3270 = vpop.f32.mrf.mxu0
        %v3271 = vadd.f32 0.0, %v3270
        %v3272 = vpop.f32.mrf.mxu0
        %3273 = vmatprep.mubr.bf16.mxu0 0
        %3274 = vmatmul.mubr.bf16.gmra.mxu0 %v3220
        %v3275 = vpop.f32.mrf.mxu0
        %v3276 = vadd.f32 0.0, %v3275
        %v3277 = vpop.f32.mrf.mxu0
        %v3278 = vpop.f32.mrf.mxu0
        %v3279 = vadd.f32 0.0, %v3278
        %v3280 = vpop.f32.mrf.mxu0
        %3281 = vmatprep.mubr.bf16.mxu0 0
        %3282 = vmatmul.mubr.bf16.gmra.mxu0 %v3223
        %v3283 = vpop.f32.mrf.mxu0
        %v3284 = vadd.f32 0.0, %v3283
        %v3285 = vpop.f32.mrf.mxu0
        %v3286 = vpop.f32.mrf.mxu0
        %v3287 = vadd.f32 0.0, %v3286
        %v3288 = vpop.f32.mrf.mxu0
        %3289 = vdwg.mxu0
        %v3290 = vmul.f32 %v3183, %v2755
        %v3291 = vmul.f32 %v3186, %v2755
        %v3292 = vmul.f32 %v3191, %v2755
        %v3293 = vmul.f32 %v3194, %v2755
        %v3294 = vmul.f32 %v3199, %v2755
        %v3295 = vmul.f32 %v3202, %v2755
        %v3296 = vmul.f32 %v3207, %v2755
        %v3297 = vmul.f32 %v3210, %v2755
        %v3298 = vmul.f32 %v3260, %v2755
        %v3299 = vmul.f32 %v3263, %v2755
        %v3300 = vmul.f32 %v3268, %v2755
        %v3301 = vmul.f32 %v3271, %v2755
        %v3302 = vmul.f32 %v3276, %v2755
        %v3303 = vmul.f32 %v3279, %v2755
        %v3304 = vmul.f32 %v3284, %v2755
        %v3305 = vmul.f32 %v3287, %v2755
        %v3306 = vadd.f32 %v2735, %v3290
        %v3307 = vadd.f32 %v2736, %v3291
        %v3308 = vadd.f32 %v2737, %v3292
        %v3309 = vadd.f32 %v2738, %v3293
        %v3310 = vadd.f32 %v2739, %v3294
        %v3311 = vadd.f32 %v2740, %v3295
        %v3312 = vadd.f32 %v2741, %v3296
        %v3313 = vadd.f32 %v2742, %v3297
        %v3314 = vadd.f32 %v2743, %v3298
        %v3315 = vadd.f32 %v2744, %v3299
        %v3316 = vadd.f32 %v2745, %v3300
        %v3317 = vadd.f32 %v2746, %v3301
        %v3318 = vadd.f32 %v2747, %v3302
        %v3319 = vadd.f32 %v2748, %v3303
        %v3320 = vadd.f32 %v2749, %v3304
        %v3321 = vadd.f32 %v2750, %v3305
        %3322 = vst.msk [vmem:[%s337] sm:$0xff] %vm412, %v3306
        %3323 = vst.msk [vmem:[%s337 + $0x10] sm:$0xff] %vm412, %v3307
        %3324 = vst.msk [vmem:[%s337 + $0x20] sm:$0xff] %vm412, %v3308
        %3325 = vst.msk [vmem:[%s337 + $0x30] sm:$0xff] %vm412, %v3309
        %3326 = vst.msk [vmem:[%s337 + $0x40] sm:$0xff] %vm412, %v3310
        %3327 = vst.msk [vmem:[%s337 + $0x50] sm:$0xff] %vm412, %v3311
        %3328 = vst.msk [vmem:[%s337 + $0x60] sm:$0xff] %vm412, %v3312
        %3329 = vst.msk [vmem:[%s337 + $0x70] sm:$0xff] %vm412, %v3313
        %3330 = vst.msk [vmem:[%s337 + $0x80] sm:$0xff] %vm412, %v3314
        %3331 = vst.msk [vmem:[%s337 + $0x90] sm:$0xff] %vm412, %v3315
        %3332 = vst.msk [vmem:[%s337 + $0xa0] sm:$0xff] %vm412, %v3316
        %3333 = vst.msk [vmem:[%s337 + $0xb0] sm:$0xff] %vm412, %v3317
        %3334 = vst.msk [vmem:[%s337 + $0xc0] sm:$0xff] %vm412, %v3318
        %3335 = vst.msk [vmem:[%s337 + $0xd0] sm:$0xff] %vm412, %v3319
        %3336 = vst.msk [vmem:[%s337 + $0xe0] sm:$0xff] %vm412, %v3320
        %3337 = vst.msk [vmem:[%s337 + $0xf0] sm:$0xff] %vm412, %v3321
        %v3338 = vpack.c.bf16 %v693, %v685
        %v3339 = vpack.c.bf16 %v709, %v701
        %v3340 = vpack.c.bf16 %v725, %v717
        %v3341 = vpack.c.bf16 %v741, %v733
        %v3342 = vpack.c.bf16 %v757, %v749
        %v3343 = vpack.c.bf16 %v773, %v765
        %v3344 = vpack.c.bf16 %v789, %v781
        %v3345 = vpack.c.bf16 %v805, %v797
        %v3346 = vpack.c.bf16 %v879, %v871
        %v3347 = vpack.c.bf16 %v895, %v887
        %v3348 = vpack.c.bf16 %v911, %v903
        %v3349 = vpack.c.bf16 %v927, %v919
        %v3350 = vpack.c.bf16 %v943, %v935
        %v3351 = vpack.c.bf16 %v959, %v951
        %v3352 = vpack.c.bf16 %v975, %v967
        %v3353 = vpack.c.bf16 %v991, %v983
        %v3354 = vmul.f32 %v499, %v1018
        %v3355 = vmul.f32 %v507, %v1018
        %v3356 = vmul.f32 %v515, %v1018
        %v3357 = vmul.f32 %v523, %v1018
        %v3358 = vmul.f32 %v531, %v1018
        %v3359 = vmul.f32 %v539, %v1018
        %v3360 = vmul.f32 %v547, %v1018
        %v3361 = vmul.f32 %v555, %v1018
        %v3362 = vmul.f32 %v563, %v1018
        %v3363 = vmul.f32 %v571, %v1018
        %v3364 = vmul.f32 %v579, %v1018
        %v3365 = vmul.f32 %v587, %v1018
        %v3366 = vmul.f32 %v595, %v1018
        %v3367 = vmul.f32 %v603, %v1018
        %v3368 = vmul.f32 %v611, %v1018
        %v3369 = vmul.f32 %v619, %v1018
        %v3370 = vpack.c.bf16 %v3355, %v3354
        %v3371 = vpack.c.bf16 %v3357, %v3356
        %v3372 = vpack.c.bf16 %v3359, %v3358
        %v3373 = vpack.c.bf16 %v3361, %v3360
        %v3374 = vpack.c.bf16 %v3363, %v3362
        %v3375 = vpack.c.bf16 %v3365, %v3364
        %v3376 = vpack.c.bf16 %v3367, %v3366
        %v3377 = vpack.c.bf16 %v3369, %v3368
        %s3378 = scalar_lea.vmem %s306, 32 [#allocation8]
        %v3379 = vld [vmem:[%s3378] sm:$0xf]
        %v3380 = vld [vmem:[%s3378 + $0x4] sm:$0xf]
        %v3381 = vld [vmem:[%s3378 + $0x8] sm:$0xf]
        %v3382 = vld [vmem:[%s3378 + $0xc] sm:$0xf]
        %v3383 = vld [vmem:[%s3378 + $0x10] sm:$0xf]
        %v3384 = vld [vmem:[%s3378 + $0x14] sm:$0xf]
        %v3385 = vld [vmem:[%s3378 + $0x18] sm:$0xf]
        %v3386 = vld [vmem:[%s3378 + $0x1c] sm:$0xf]
        %v3387 = vunpack.c.l.bf16 %v3379
        %v3388 = vunpack.c.l.bf16 %v3380
        %v3389 = vunpack.c.l.bf16 %v3381
        %v3390 = vunpack.c.l.bf16 %v3382
        %v3391 = vunpack.c.l.bf16 %v3383
        %v3392 = vunpack.c.l.bf16 %v3384
        %v3393 = vunpack.c.l.bf16 %v3385
        %v3394 = vunpack.c.l.bf16 %v3386
        %v3396 = vsel %vm412, %v3370, 0
        %v3399 = vsel %vm412, %v3371, 0
        %v3402 = vsel %vm412, %v3372, 0
        %v3405 = vsel %vm412, %v3373, 0
        %v3408 = vsel %vm412, %v3338, 0
        %v3411 = vsel %vm412, %v3339, 0
        %v3414 = vsel %vm412, %v3340, 0
        %v3417 = vsel %vm412, %v3341, 0
        %3419 = vmatprep.subr.bf16.mxu0 0
        %3420 = vmatpush1.bf16.xpose.msra.mxu0 0
        %3421 = vmatprep.subr.bf16.mxu0 0
        %3422 = vmatpush1.bf16.xpose.msra.mxu0 0
        %3423 = vmatprep.subr.bf16.mxu0 0
        %3424 = vmatpush1.bf16.xpose.msra.mxu0 0
        %3425 = vmatprep.subr.bf16.mxu0 0
        %3426 = vmatpush1.bf16.xpose.msra.mxu0 0
        %3427 = vmatprep.subr.bf16.mxu0 0
        %3428 = vmatpush1.bf16.xpose.msra.mxu0 %v3417
        %3429 = vmatprep.subr.bf16.mxu0 0
        %3430 = vmatpush1.bf16.xpose.msra.mxu0 %v3414
        %3431 = vmatprep.subr.bf16.mxu0 0
        %3432 = vmatpush1.bf16.xpose.msra.mxu0 %v3411
        %3433 = vmatprep.subr.bf16.mxu0 0
        %3434 = vmatpush1.bf16.xpose.msra.mxu0 %v3408
        %3435 = vmatprep.subr.bf16.mxu0 0
        %3436 = vmatpush2.bf16.xpose.msra.mxu0 0
        %3437 = vmatprep.subr.bf16.mxu0 0
        %3438 = vmatpush2.bf16.xpose.msra.mxu0 0
        %3439 = vmatprep.subr.bf16.mxu0 0
        %3440 = vmatpush2.bf16.xpose.msra.mxu0 0
        %3441 = vmatprep.subr.bf16.mxu0 0
        %3442 = vmatpush2.bf16.xpose.msra.mxu0 0
        %3443 = vmatprep.subr.bf16.mxu0 0
        %3444 = vmatpush2.bf16.xpose.msra.mxu0 0
        %3445 = vmatprep.subr.bf16.mxu0 0
        %3446 = vmatpush2.bf16.xpose.msra.mxu0 0
        %3447 = vmatprep.subr.bf16.mxu0 0
        %3448 = vmatpush2.bf16.xpose.msra.mxu0 0
        %3449 = vmatprep.subr.bf16.mxu0 0
        %3450 = vmatpush2.bf16.xpose.msra.mxu0 0
        %3451 = vmatprep.mubr.bf16.mxu0 0
        %3452 = vmatmul.mubr.bf16.gmra.mxu0 %v3396
        %v3453 = vpop.f32.mrf.mxu0
        %v3454 = vadd.f32 %v3387, %v3453
        %v3455 = vpop.f32.mrf.mxu0
        %v3456 = vpop.f32.mrf.mxu0
        %v3457 = vadd.f32 %v3388, %v3456
        %v3458 = vpop.f32.mrf.mxu0
        %3459 = vmatprep.mubr.bf16.mxu0 0
        %3460 = vmatmul.mubr.bf16.gmra.mxu0 %v3399
        %v3461 = vpop.f32.mrf.mxu0
        %v3462 = vadd.f32 %v3389, %v3461
        %v3463 = vpop.f32.mrf.mxu0
        %v3464 = vpop.f32.mrf.mxu0
        %v3465 = vadd.f32 %v3390, %v3464
        %v3466 = vpop.f32.mrf.mxu0
        %3467 = vmatprep.mubr.bf16.mxu0 0
        %3468 = vmatmul.mubr.bf16.gmra.mxu0 %v3402
        %v3469 = vpop.f32.mrf.mxu0
        %v3470 = vadd.f32 %v3391, %v3469
        %v3471 = vpop.f32.mrf.mxu0
        %v3472 = vpop.f32.mrf.mxu0
        %v3473 = vadd.f32 %v3392, %v3472
        %v3474 = vpop.f32.mrf.mxu0
        %3475 = vmatprep.mubr.bf16.mxu0 0
        %3476 = vmatmul.mubr.bf16.gmra.mxu0 %v3405
        %v3477 = vpop.f32.mrf.mxu0
        %v3478 = vadd.f32 %v3393, %v3477
        %v3479 = vpop.f32.mrf.mxu0
        %v3480 = vpop.f32.mrf.mxu0
        %v3481 = vadd.f32 %v3394, %v3480
        %v3482 = vpop.f32.mrf.mxu0
        %3483 = vdwg.mxu0
        %v3485 = vsel %vm412, %v3374, 0
        %v3488 = vsel %vm412, %v3375, 0
        %v3491 = vsel %vm412, %v3376, 0
        %v3494 = vsel %vm412, %v3377, 0
        %v3497 = vsel %vm412, %v3342, 0
        %v3500 = vsel %vm412, %v3343, 0
        %v3503 = vsel %vm412, %v3344, 0
        %v3506 = vsel %vm412, %v3345, 0
        %3508 = vmatprep.subr.bf16.mxu0 0
        %3509 = vmatpush1.bf16.xpose.msra.mxu0 0
        %3510 = vmatprep.subr.bf16.mxu0 0
        %3511 = vmatpush1.bf16.xpose.msra.mxu0 0
        %3512 = vmatprep.subr.bf16.mxu0 0
        %3513 = vmatpush1.bf16.xpose.msra.mxu0 0
        %3514 = vmatprep.subr.bf16.mxu0 0
        %3515 = vmatpush1.bf16.xpose.msra.mxu0 0
        %3516 = vmatprep.subr.bf16.mxu0 0
        %3517 = vmatpush1.bf16.xpose.msra.mxu0 %v3506
        %3518 = vmatprep.subr.bf16.mxu0 0
        %3519 = vmatpush1.bf16.xpose.msra.mxu0 %v3503
        %3520 = vmatprep.subr.bf16.mxu0 0
        %3521 = vmatpush1.bf16.xpose.msra.mxu0 %v3500
        %3522 = vmatprep.subr.bf16.mxu0 0
        %3523 = vmatpush1.bf16.xpose.msra.mxu0 %v3497
        %3524 = vmatprep.subr.bf16.mxu0 0
        %3525 = vmatpush2.bf16.xpose.msra.mxu0 0
        %3526 = vmatprep.subr.bf16.mxu0 0
        %3527 = vmatpush2.bf16.xpose.msra.mxu0 0
        %3528 = vmatprep.subr.bf16.mxu0 0
        %3529 = vmatpush2.bf16.xpose.msra.mxu0 0
        %3530 = vmatprep.subr.bf16.mxu0 0
        %3531 = vmatpush2.bf16.xpose.msra.mxu0 0
        %3532 = vmatprep.subr.bf16.mxu0 0
        %3533 = vmatpush2.bf16.xpose.msra.mxu0 0
        %3534 = vmatprep.subr.bf16.mxu0 0
        %3535 = vmatpush2.bf16.xpose.msra.mxu0 0
        %3536 = vmatprep.subr.bf16.mxu0 0
        %3537 = vmatpush2.bf16.xpose.msra.mxu0 0
        %3538 = vmatprep.subr.bf16.mxu0 0
        %3539 = vmatpush2.bf16.xpose.msra.mxu0 0
        %3540 = vmatprep.mubr.bf16.mxu0 0
        %3541 = vmatmul.mubr.bf16.gmra.mxu0 %v3485
        %v3542 = vpop.f32.mrf.mxu0
        %v3543 = vadd.f32 %v3387, %v3542
        %v3544 = vpop.f32.mrf.mxu0
        %v3545 = vpop.f32.mrf.mxu0
        %v3546 = vadd.f32 %v3388, %v3545
        %v3547 = vpop.f32.mrf.mxu0
        %3548 = vmatprep.mubr.bf16.mxu0 0
        %3549 = vmatmul.mubr.bf16.gmra.mxu0 %v3488
        %v3550 = vpop.f32.mrf.mxu0
        %v3551 = vadd.f32 %v3389, %v3550
        %v3552 = vpop.f32.mrf.mxu0
        %v3553 = vpop.f32.mrf.mxu0
        %v3554 = vadd.f32 %v3390, %v3553
        %v3555 = vpop.f32.mrf.mxu0
        %3556 = vmatprep.mubr.bf16.mxu0 0
        %3557 = vmatmul.mubr.bf16.gmra.mxu0 %v3491
        %v3558 = vpop.f32.mrf.mxu0
        %v3559 = vadd.f32 %v3391, %v3558
        %v3560 = vpop.f32.mrf.mxu0
        %v3561 = vpop.f32.mrf.mxu0
        %v3562 = vadd.f32 %v3392, %v3561
        %v3563 = vpop.f32.mrf.mxu0
        %3564 = vmatprep.mubr.bf16.mxu0 0
        %3565 = vmatmul.mubr.bf16.gmra.mxu0 %v3494
        %v3566 = vpop.f32.mrf.mxu0
        %v3567 = vadd.f32 %v3393, %v3566
        %v3568 = vpop.f32.mrf.mxu0
        %v3569 = vpop.f32.mrf.mxu0
        %v3570 = vadd.f32 %v3394, %v3569
        %v3571 = vpop.f32.mrf.mxu0
        %3572 = vdwg.mxu0
        %v3573 = vsel %vm1238, %v3454, -inf
        %3574 = vmax.xlane.f32.xlu0 %v3573
        %v3575 = vpop.xlane.xlu0 %3574
        %v3576 = vsel %vm1238, %v3457, -inf
        %3577 = vmax.xlane.f32.xlu0 %v3576
        %v3578 = vpop.xlane.xlu0 %3577
        %v3579 = vsel %vm1238, %v3462, -inf
        %3580 = vmax.xlane.f32.xlu0 %v3579
        %v3581 = vpop.xlane.xlu0 %3580
        %v3582 = vsel %vm1238, %v3465, -inf
        %3583 = vmax.xlane.f32.xlu0 %v3582
        %v3584 = vpop.xlane.xlu0 %3583
        %v3585 = vsel %vm1238, %v3470, -inf
        %3586 = vmax.xlane.f32.xlu0 %v3585
        %v3587 = vpop.xlane.xlu0 %3586
        %v3588 = vsel %vm1238, %v3473, -inf
        %3589 = vmax.xlane.f32.xlu0 %v3588
        %v3590 = vpop.xlane.xlu0 %3589
        %v3591 = vsel %vm1238, %v3478, -inf
        %3592 = vmax.xlane.f32.xlu0 %v3591
        %v3593 = vpop.xlane.xlu0 %3592
        %v3594 = vsel %vm1238, %v3481, -inf
        %3595 = vmax.xlane.f32.xlu0 %v3594
        %v3596 = vpop.xlane.xlu0 %3595
        %v3597 = vsel %vm1238, %v3543, -inf
        %3598 = vmax.xlane.f32.xlu0 %v3597
        %v3599 = vpop.xlane.xlu0 %3598
        %v3600 = vsel %vm1238, %v3546, -inf
        %3601 = vmax.xlane.f32.xlu0 %v3600
        %v3602 = vpop.xlane.xlu0 %3601
        %v3603 = vsel %vm1238, %v3551, -inf
        %3604 = vmax.xlane.f32.xlu0 %v3603
        %v3605 = vpop.xlane.xlu0 %3604
        %v3606 = vsel %vm1238, %v3554, -inf
        %3607 = vmax.xlane.f32.xlu0 %v3606
        %v3608 = vpop.xlane.xlu0 %3607
        %v3609 = vsel %vm1238, %v3559, -inf
        %3610 = vmax.xlane.f32.xlu0 %v3609
        %v3611 = vpop.xlane.xlu0 %3610
        %v3612 = vsel %vm1238, %v3562, -inf
        %3613 = vmax.xlane.f32.xlu0 %v3612
        %v3614 = vpop.xlane.xlu0 %3613
        %v3615 = vsel %vm1238, %v3567, -inf
        %3616 = vmax.xlane.f32.xlu0 %v3615
        %v3617 = vpop.xlane.xlu0 %3616
        %v3618 = vsel %vm1238, %v3570, -inf
        %3619 = vmax.xlane.f32.xlu0 %v3618
        %v3620 = vpop.xlane.xlu0 %3619
        %v3621 = vsub.f32 %v3454, %v3575
        %v3622 = vsub.f32 %v3457, %v3578
        %v3623 = vsub.f32 %v3462, %v3581
        %v3624 = vsub.f32 %v3465, %v3584
        %v3625 = vsub.f32 %v3470, %v3587
        %v3626 = vsub.f32 %v3473, %v3590
        %v3627 = vsub.f32 %v3478, %v3593
        %v3628 = vsub.f32 %v3481, %v3596
        %v3629 = vsub.f32 %v3543, %v3599
        %v3630 = vsub.f32 %v3546, %v3602
        %v3631 = vsub.f32 %v3551, %v3605
        %v3632 = vsub.f32 %v3554, %v3608
        %v3633 = vsub.f32 %v3559, %v3611
        %v3634 = vsub.f32 %v3562, %v3614
        %v3635 = vsub.f32 %v3567, %v3617
        %v3636 = vsub.f32 %v3570, %v3620
        %v3637 = vmul.f32 %v3621, 1.442695
        %v3638 = vpow.pop %v3637
        %v3639 = vmul.f32 %v3622, 1.442695
        %v3640 = vpow.pop %v3639
        %v3641 = vmul.f32 %v3623, 1.442695
        %v3642 = vpow.pop %v3641
        %v3643 = vmul.f32 %v3624, 1.442695
        %v3644 = vpow.pop %v3643
        %v3645 = vmul.f32 %v3625, 1.442695
        %v3646 = vpow.pop %v3645
        %v3647 = vmul.f32 %v3626, 1.442695
        %v3648 = vpow.pop %v3647
        %v3649 = vmul.f32 %v3627, 1.442695
        %v3650 = vpow.pop %v3649
        %v3651 = vmul.f32 %v3628, 1.442695
        %v3652 = vpow.pop %v3651
        %v3653 = vmul.f32 %v3629, 1.442695
        %v3654 = vpow.pop %v3653
        %v3655 = vmul.f32 %v3630, 1.442695
        %v3656 = vpow.pop %v3655
        %v3657 = vmul.f32 %v3631, 1.442695
        %v3658 = vpow.pop %v3657
        %v3659 = vmul.f32 %v3632, 1.442695
        %v3660 = vpow.pop %v3659
        %v3661 = vmul.f32 %v3633, 1.442695
        %v3662 = vpow.pop %v3661
        %v3663 = vmul.f32 %v3634, 1.442695
        %v3664 = vpow.pop %v3663
        %v3665 = vmul.f32 %v3635, 1.442695
        %v3666 = vpow.pop %v3665
        %v3667 = vmul.f32 %v3636, 1.442695
        %v3668 = vpow.pop %v3667
        %v3669 = vsel %vm1238, %v3638, 0.0
        %3670 = vadd.xlane.f32.xlu0 %v3669
        %v3671 = vpop.xlane.xlu0 %3670
        %v3672 = vsel %vm1238, %v3640, 0.0
        %3673 = vadd.xlane.f32.xlu0 %v3672
        %v3674 = vpop.xlane.xlu0 %3673
        %v3675 = vsel %vm1238, %v3642, 0.0
        %3676 = vadd.xlane.f32.xlu0 %v3675
        %v3677 = vpop.xlane.xlu0 %3676
        %v3678 = vsel %vm1238, %v3644, 0.0
        %3679 = vadd.xlane.f32.xlu0 %v3678
        %v3680 = vpop.xlane.xlu0 %3679
        %v3681 = vsel %vm1238, %v3646, 0.0
        %3682 = vadd.xlane.f32.xlu0 %v3681
        %v3683 = vpop.xlane.xlu0 %3682
        %v3684 = vsel %vm1238, %v3648, 0.0
        %3685 = vadd.xlane.f32.xlu0 %v3684
        %v3686 = vpop.xlane.xlu0 %3685
        %v3687 = vsel %vm1238, %v3650, 0.0
        %3688 = vadd.xlane.f32.xlu0 %v3687
        %v3689 = vpop.xlane.xlu0 %3688
        %v3690 = vsel %vm1238, %v3652, 0.0
        %3691 = vadd.xlane.f32.xlu0 %v3690
        %v3692 = vpop.xlane.xlu0 %3691
        %v3693 = vsel %vm1238, %v3654, 0.0
        %3694 = vadd.xlane.f32.xlu0 %v3693
        %v3695 = vpop.xlane.xlu0 %3694
        %v3696 = vsel %vm1238, %v3656, 0.0
        %3697 = vadd.xlane.f32.xlu0 %v3696
        %v3698 = vpop.xlane.xlu0 %3697
        %v3699 = vsel %vm1238, %v3658, 0.0
        %3700 = vadd.xlane.f32.xlu0 %v3699
        %v3701 = vpop.xlane.xlu0 %3700
        %v3702 = vsel %vm1238, %v3660, 0.0
        %3703 = vadd.xlane.f32.xlu0 %v3702
        %v3704 = vpop.xlane.xlu0 %3703
        %v3705 = vsel %vm1238, %v3662, 0.0
        %3706 = vadd.xlane.f32.xlu0 %v3705
        %v3707 = vpop.xlane.xlu0 %3706
        %v3708 = vsel %vm1238, %v3664, 0.0
        %3709 = vadd.xlane.f32.xlu0 %v3708
        %v3710 = vpop.xlane.xlu0 %3709
        %v3711 = vsel %vm1238, %v3666, 0.0
        %3712 = vadd.xlane.f32.xlu0 %v3711
        %v3713 = vpop.xlane.xlu0 %3712
        %v3714 = vsel %vm1238, %v3668, 0.0
        %3715 = vadd.xlane.f32.xlu0 %v3714
        %v3716 = vpop.xlane.xlu0 %3715
        %v3717 = vrcp.pop %v3671
        %v3718 = vrcp.pop %v3674
        %v3719 = vrcp.pop %v3677
        %v3720 = vrcp.pop %v3680
        %v3721 = vrcp.pop %v3683
        %v3722 = vrcp.pop %v3686
        %v3723 = vrcp.pop %v3689
        %v3724 = vrcp.pop %v3692
        %v3725 = vrcp.pop %v3695
        %v3726 = vrcp.pop %v3698
        %v3727 = vrcp.pop %v3701
        %v3728 = vrcp.pop %v3704
        %v3729 = vrcp.pop %v3707
        %v3730 = vrcp.pop %v3710
        %v3731 = vrcp.pop %v3713
        %v3732 = vrcp.pop %v3716
        %v3733 = vmul.f32 %v3638, %v3717
        %v3734 = vmul.f32 %v3640, %v3718
        %v3735 = vmul.f32 %v3642, %v3719
        %v3736 = vmul.f32 %v3644, %v3720
        %v3737 = vmul.f32 %v3646, %v3721
        %v3738 = vmul.f32 %v3648, %v3722
        %v3739 = vmul.f32 %v3650, %v3723
        %v3740 = vmul.f32 %v3652, %v3724
        %v3741 = vmul.f32 %v3654, %v3725
        %v3742 = vmul.f32 %v3656, %v3726
        %v3743 = vmul.f32 %v3658, %v3727
        %v3744 = vmul.f32 %v3660, %v3728
        %v3745 = vmul.f32 %v3662, %v3729
        %v3746 = vmul.f32 %v3664, %v3730
        %v3747 = vmul.f32 %v3666, %v3731
        %v3748 = vmul.f32 %v3668, %v3732
        %v3749 = vpack.c.bf16 %v3734, %v3733
        %v3750 = vpack.c.bf16 %v3736, %v3735
        %v3751 = vpack.c.bf16 %v3738, %v3737
        %v3752 = vpack.c.bf16 %v3740, %v3739
        %v3753 = vpack.c.bf16 %v3742, %v3741
        %v3754 = vpack.c.bf16 %v3744, %v3743
        %v3755 = vpack.c.bf16 %v3746, %v3745
        %v3756 = vpack.c.bf16 %v3748, %v3747
        %v3758 = vsel %vm1238, %v3749, 0
        %v3761 = vsel %vm1238, %v3750, 0
        %v3764 = vsel %vm1238, %v3751, 0
        %v3767 = vsel %vm1238, %v3752, 0
        %3769 = vmatprep.subr.bf16.mxu0 0
        %3770 = vmatpush1.bf16.msra.mxu0 0
        %3771 = vmatprep.subr.bf16.mxu0 0
        %3772 = vmatpush1.bf16.msra.mxu0 0
        %3773 = vmatprep.subr.bf16.mxu0 0
        %3774 = vmatpush1.bf16.msra.mxu0 0
        %3775 = vmatprep.subr.bf16.mxu0 0
        %3776 = vmatpush1.bf16.msra.mxu0 0
        %3777 = vmatprep.subr.bf16.mxu0 0
        %3778 = vmatpush1.bf16.msra.mxu0 %v3349
        %3779 = vmatprep.subr.bf16.mxu0 0
        %3780 = vmatpush1.bf16.msra.mxu0 %v3348
        %3781 = vmatprep.subr.bf16.mxu0 0
        %3782 = vmatpush1.bf16.msra.mxu0 %v3347
        %3783 = vmatprep.subr.bf16.mxu0 0
        %3784 = vmatpush1.bf16.msra.mxu0 %v3346
        %3785 = vmatprep.subr.bf16.mxu0 0
        %3786 = vmatpush2.bf16.msra.mxu0 0
        %3787 = vmatprep.subr.bf16.mxu0 0
        %3788 = vmatpush2.bf16.msra.mxu0 0
        %3789 = vmatprep.subr.bf16.mxu0 0
        %3790 = vmatpush2.bf16.msra.mxu0 0
        %3791 = vmatprep.subr.bf16.mxu0 0
        %3792 = vmatpush2.bf16.msra.mxu0 0
        %3793 = vmatprep.subr.bf16.mxu0 0
        %3794 = vmatpush2.bf16.msra.mxu0 0
        %3795 = vmatprep.subr.bf16.mxu0 0
        %3796 = vmatpush2.bf16.msra.mxu0 0
        %3797 = vmatprep.subr.bf16.mxu0 0
        %3798 = vmatpush2.bf16.msra.mxu0 0
        %3799 = vmatprep.subr.bf16.mxu0 0
        %3800 = vmatpush2.bf16.msra.mxu0 0
        %3801 = vmatprep.mubr.bf16.mxu0 0
        %3802 = vmatmul.mubr.bf16.gmra.mxu0 %v3758
        %v3803 = vpop.f32.mrf.mxu0
        %v3804 = vadd.f32 0.0, %v3803
        %v3805 = vpop.f32.mrf.mxu0
        %v3806 = vpop.f32.mrf.mxu0
        %v3807 = vadd.f32 0.0, %v3806
        %v3808 = vpop.f32.mrf.mxu0
        %3809 = vmatprep.mubr.bf16.mxu0 0
        %3810 = vmatmul.mubr.bf16.gmra.mxu0 %v3761
        %v3811 = vpop.f32.mrf.mxu0
        %v3812 = vadd.f32 0.0, %v3811
        %v3813 = vpop.f32.mrf.mxu0
        %v3814 = vpop.f32.mrf.mxu0
        %v3815 = vadd.f32 0.0, %v3814
        %v3816 = vpop.f32.mrf.mxu0
        %3817 = vmatprep.mubr.bf16.mxu0 0
        %3818 = vmatmul.mubr.bf16.gmra.mxu0 %v3764
        %v3819 = vpop.f32.mrf.mxu0
        %v3820 = vadd.f32 0.0, %v3819
        %v3821 = vpop.f32.mrf.mxu0
        %v3822 = vpop.f32.mrf.mxu0
        %v3823 = vadd.f32 0.0, %v3822
        %v3824 = vpop.f32.mrf.mxu0
        %3825 = vmatprep.mubr.bf16.mxu0 0
        %3826 = vmatmul.mubr.bf16.gmra.mxu0 %v3767
        %v3827 = vpop.f32.mrf.mxu0
        %v3828 = vadd.f32 0.0, %v3827
        %v3829 = vpop.f32.mrf.mxu0
        %v3830 = vpop.f32.mrf.mxu0
        %v3831 = vadd.f32 0.0, %v3830
        %v3832 = vpop.f32.mrf.mxu0
        %3833 = vdwg.mxu0
        %v3835 = vsel %vm1238, %v3753, 0
        %v3838 = vsel %vm1238, %v3754, 0
        %v3841 = vsel %vm1238, %v3755, 0
        %v3844 = vsel %vm1238, %v3756, 0
        %3846 = vmatprep.subr.bf16.mxu0 0
        %3847 = vmatpush1.bf16.msra.mxu0 0
        %3848 = vmatprep.subr.bf16.mxu0 0
        %3849 = vmatpush1.bf16.msra.mxu0 0
        %3850 = vmatprep.subr.bf16.mxu0 0
        %3851 = vmatpush1.bf16.msra.mxu0 0
        %3852 = vmatprep.subr.bf16.mxu0 0
        %3853 = vmatpush1.bf16.msra.mxu0 0
        %3854 = vmatprep.subr.bf16.mxu0 0
        %3855 = vmatpush1.bf16.msra.mxu0 %v3353
        %3856 = vmatprep.subr.bf16.mxu0 0
        %3857 = vmatpush1.bf16.msra.mxu0 %v3352
        %3858 = vmatprep.subr.bf16.mxu0 0
        %3859 = vmatpush1.bf16.msra.mxu0 %v3351
        %3860 = vmatprep.subr.bf16.mxu0 0
        %3861 = vmatpush1.bf16.msra.mxu0 %v3350
        %3862 = vmatprep.subr.bf16.mxu0 0
        %3863 = vmatpush2.bf16.msra.mxu0 0
        %3864 = vmatprep.subr.bf16.mxu0 0
        %3865 = vmatpush2.bf16.msra.mxu0 0
        %3866 = vmatprep.subr.bf16.mxu0 0
        %3867 = vmatpush2.bf16.msra.mxu0 0
        %3868 = vmatprep.subr.bf16.mxu0 0
        %3869 = vmatpush2.bf16.msra.mxu0 0
        %3870 = vmatprep.subr.bf16.mxu0 0
        %3871 = vmatpush2.bf16.msra.mxu0 0
        %3872 = vmatprep.subr.bf16.mxu0 0
        %3873 = vmatpush2.bf16.msra.mxu0 0
        %3874 = vmatprep.subr.bf16.mxu0 0
        %3875 = vmatpush2.bf16.msra.mxu0 0
        %3876 = vmatprep.subr.bf16.mxu0 0
        %3877 = vmatpush2.bf16.msra.mxu0 0
        %3878 = vmatprep.mubr.bf16.mxu0 0
        %3879 = vmatmul.mubr.bf16.gmra.mxu0 %v3835
        %v3880 = vpop.f32.mrf.mxu0
        %v3881 = vadd.f32 0.0, %v3880
        %v3882 = vpop.f32.mrf.mxu0
        %v3883 = vpop.f32.mrf.mxu0
        %v3884 = vadd.f32 0.0, %v3883
        %v3885 = vpop.f32.mrf.mxu0
        %3886 = vmatprep.mubr.bf16.mxu0 0
        %3887 = vmatmul.mubr.bf16.gmra.mxu0 %v3838
        %v3888 = vpop.f32.mrf.mxu0
        %v3889 = vadd.f32 0.0, %v3888
        %v3890 = vpop.f32.mrf.mxu0
        %v3891 = vpop.f32.mrf.mxu0
        %v3892 = vadd.f32 0.0, %v3891
        %v3893 = vpop.f32.mrf.mxu0
        %3894 = vmatprep.mubr.bf16.mxu0 0
        %3895 = vmatmul.mubr.bf16.gmra.mxu0 %v3841
        %v3896 = vpop.f32.mrf.mxu0
        %v3897 = vadd.f32 0.0, %v3896
        %v3898 = vpop.f32.mrf.mxu0
        %v3899 = vpop.f32.mrf.mxu0
        %v3900 = vadd.f32 0.0, %v3899
        %v3901 = vpop.f32.mrf.mxu0
        %3902 = vmatprep.mubr.bf16.mxu0 0
        %3903 = vmatmul.mubr.bf16.gmra.mxu0 %v3844
        %v3904 = vpop.f32.mrf.mxu0
        %v3905 = vadd.f32 0.0, %v3904
        %v3906 = vpop.f32.mrf.mxu0
        %v3907 = vpop.f32.mrf.mxu0
        %v3908 = vadd.f32 0.0, %v3907
        %v3909 = vpop.f32.mrf.mxu0
        %3910 = vdwg.mxu0
        %v3911 = vmul.f32 %v3804, %v1018
        %v3912 = vmul.f32 %v3807, %v1018
        %v3913 = vmul.f32 %v3812, %v1018
        %v3914 = vmul.f32 %v3815, %v1018
        %v3915 = vmul.f32 %v3820, %v1018
        %v3916 = vmul.f32 %v3823, %v1018
        %v3917 = vmul.f32 %v3828, %v1018
        %v3918 = vmul.f32 %v3831, %v1018
        %v3919 = vmul.f32 %v3881, %v1018
        %v3920 = vmul.f32 %v3884, %v1018
        %v3921 = vmul.f32 %v3889, %v1018
        %v3922 = vmul.f32 %v3892, %v1018
        %v3923 = vmul.f32 %v3897, %v1018
        %v3924 = vmul.f32 %v3900, %v1018
        %v3925 = vmul.f32 %v3905, %v1018
        %v3926 = vmul.f32 %v3908, %v1018
        %v3927 = vadd.f32 %v3911, 0.0
        %v3928 = vadd.f32 %v3912, 0.0
        %v3929 = vadd.f32 %v3913, 0.0
        %v3930 = vadd.f32 %v3914, 0.0
        %v3931 = vadd.f32 %v3915, 0.0
        %v3932 = vadd.f32 %v3916, 0.0
        %v3933 = vadd.f32 %v3917, 0.0
        %v3934 = vadd.f32 %v3918, 0.0
        %v3935 = vadd.f32 %v3919, 0.0
        %v3936 = vadd.f32 %v3920, 0.0
        %v3937 = vadd.f32 %v3921, 0.0
        %v3938 = vadd.f32 %v3922, 0.0
        %v3939 = vadd.f32 %v3923, 0.0
        %v3940 = vadd.f32 %v3924, 0.0
        %v3941 = vadd.f32 %v3925, 0.0
        %v3942 = vadd.f32 %v3926, 0.0
        %v3943 = vmul.f32 %v499, %v1613
        %v3944 = vmul.f32 %v507, %v1613
        %v3945 = vmul.f32 %v515, %v1613
        %v3946 = vmul.f32 %v523, %v1613
        %v3947 = vmul.f32 %v531, %v1613
        %v3948 = vmul.f32 %v539, %v1613
        %v3949 = vmul.f32 %v547, %v1613
        %v3950 = vmul.f32 %v555, %v1613
        %v3951 = vmul.f32 %v563, %v1613
        %v3952 = vmul.f32 %v571, %v1613
        %v3953 = vmul.f32 %v579, %v1613
        %v3954 = vmul.f32 %v587, %v1613
        %v3955 = vmul.f32 %v595, %v1613
        %v3956 = vmul.f32 %v603, %v1613
        %v3957 = vmul.f32 %v611, %v1613
        %v3958 = vmul.f32 %v619, %v1613
        %v3959 = vpack.c.bf16 %v3944, %v3943
        %v3960 = vpack.c.bf16 %v3946, %v3945
        %v3961 = vpack.c.bf16 %v3948, %v3947
        %v3962 = vpack.c.bf16 %v3950, %v3949
        %v3963 = vpack.c.bf16 %v3952, %v3951
        %v3964 = vpack.c.bf16 %v3954, %v3953
        %v3965 = vpack.c.bf16 %v3956, %v3955
        %v3966 = vpack.c.bf16 %v3958, %v3957
        %s3967 = scalar_lea.vmem %s306, 96 [#allocation8]
        %v3968 = vld [vmem:[%s3967] sm:$0xf]
        %v3969 = vld [vmem:[%s3967 + $0x4] sm:$0xf]
        %v3970 = vld [vmem:[%s3967 + $0x8] sm:$0xf]
        %v3971 = vld [vmem:[%s3967 + $0xc] sm:$0xf]
        %v3972 = vld [vmem:[%s3967 + $0x10] sm:$0xf]
        %v3973 = vld [vmem:[%s3967 + $0x14] sm:$0xf]
        %v3974 = vld [vmem:[%s3967 + $0x18] sm:$0xf]
        %v3975 = vld [vmem:[%s3967 + $0x1c] sm:$0xf]
        %v3976 = vunpack.c.l.bf16 %v3968
        %v3977 = vunpack.c.l.bf16 %v3969
        %v3978 = vunpack.c.l.bf16 %v3970
        %v3979 = vunpack.c.l.bf16 %v3971
        %v3980 = vunpack.c.l.bf16 %v3972
        %v3981 = vunpack.c.l.bf16 %v3973
        %v3982 = vunpack.c.l.bf16 %v3974
        %v3983 = vunpack.c.l.bf16 %v3975
        %v3985 = vsel %vm412, %v3959, 0
        %v3988 = vsel %vm412, %v3960, 0
        %v3991 = vsel %vm412, %v3961, 0
        %v3994 = vsel %vm412, %v3962, 0
        %3996 = vmatprep.subr.bf16.mxu0 0
        %3997 = vmatpush1.bf16.xpose.msra.mxu0 0
        %3998 = vmatprep.subr.bf16.mxu0 0
        %3999 = vmatpush1.bf16.xpose.msra.mxu0 0
        %4000 = vmatprep.subr.bf16.mxu0 0
        %4001 = vmatpush1.bf16.xpose.msra.mxu0 0
        %4002 = vmatprep.subr.bf16.mxu0 0
        %4003 = vmatpush1.bf16.xpose.msra.mxu0 0
        %4004 = vmatprep.subr.bf16.mxu0 0
        %4005 = vmatpush1.bf16.xpose.msra.mxu0 %v3417
        %4006 = vmatprep.subr.bf16.mxu0 0
        %4007 = vmatpush1.bf16.xpose.msra.mxu0 %v3414
        %4008 = vmatprep.subr.bf16.mxu0 0
        %4009 = vmatpush1.bf16.xpose.msra.mxu0 %v3411
        %4010 = vmatprep.subr.bf16.mxu0 0
        %4011 = vmatpush1.bf16.xpose.msra.mxu0 %v3408
        %4012 = vmatprep.subr.bf16.mxu0 0
        %4013 = vmatpush2.bf16.xpose.msra.mxu0 0
        %4014 = vmatprep.subr.bf16.mxu0 0
        %4015 = vmatpush2.bf16.xpose.msra.mxu0 0
        %4016 = vmatprep.subr.bf16.mxu0 0
        %4017 = vmatpush2.bf16.xpose.msra.mxu0 0
        %4018 = vmatprep.subr.bf16.mxu0 0
        %4019 = vmatpush2.bf16.xpose.msra.mxu0 0
        %4020 = vmatprep.subr.bf16.mxu0 0
        %4021 = vmatpush2.bf16.xpose.msra.mxu0 0
        %4022 = vmatprep.subr.bf16.mxu0 0
        %4023 = vmatpush2.bf16.xpose.msra.mxu0 0
        %4024 = vmatprep.subr.bf16.mxu0 0
        %4025 = vmatpush2.bf16.xpose.msra.mxu0 0
        %4026 = vmatprep.subr.bf16.mxu0 0
        %4027 = vmatpush2.bf16.xpose.msra.mxu0 0
        %4028 = vmatprep.mubr.bf16.mxu0 0
        %4029 = vmatmul.mubr.bf16.gmra.mxu0 %v3985
        %v4030 = vpop.f32.mrf.mxu0
        %v4031 = vadd.f32 %v3976, %v4030
        %v4032 = vpop.f32.mrf.mxu0
        %v4033 = vpop.f32.mrf.mxu0
        %v4034 = vadd.f32 %v3977, %v4033
        %v4035 = vpop.f32.mrf.mxu0
        %4036 = vmatprep.mubr.bf16.mxu0 0
        %4037 = vmatmul.mubr.bf16.gmra.mxu0 %v3988
        %v4038 = vpop.f32.mrf.mxu0
        %v4039 = vadd.f32 %v3978, %v4038
        %v4040 = vpop.f32.mrf.mxu0
        %v4041 = vpop.f32.mrf.mxu0
        %v4042 = vadd.f32 %v3979, %v4041
        %v4043 = vpop.f32.mrf.mxu0
        %4044 = vmatprep.mubr.bf16.mxu0 0
        %4045 = vmatmul.mubr.bf16.gmra.mxu0 %v3991
        %v4046 = vpop.f32.mrf.mxu0
        %v4047 = vadd.f32 %v3980, %v4046
        %v4048 = vpop.f32.mrf.mxu0
        %v4049 = vpop.f32.mrf.mxu0
        %v4050 = vadd.f32 %v3981, %v4049
        %v4051 = vpop.f32.mrf.mxu0
        %4052 = vmatprep.mubr.bf16.mxu0 0
        %4053 = vmatmul.mubr.bf16.gmra.mxu0 %v3994
        %v4054 = vpop.f32.mrf.mxu0
        %v4055 = vadd.f32 %v3982, %v4054
        %v4056 = vpop.f32.mrf.mxu0
        %v4057 = vpop.f32.mrf.mxu0
        %v4058 = vadd.f32 %v3983, %v4057
        %v4059 = vpop.f32.mrf.mxu0
        %4060 = vdwg.mxu0
        %v4062 = vsel %vm412, %v3963, 0
        %v4065 = vsel %vm412, %v3964, 0
        %v4068 = vsel %vm412, %v3965, 0
        %v4071 = vsel %vm412, %v3966, 0
        %4073 = vmatprep.subr.bf16.mxu0 0
        %4074 = vmatpush1.bf16.xpose.msra.mxu0 0
        %4075 = vmatprep.subr.bf16.mxu0 0
        %4076 = vmatpush1.bf16.xpose.msra.mxu0 0
        %4077 = vmatprep.subr.bf16.mxu0 0
        %4078 = vmatpush1.bf16.xpose.msra.mxu0 0
        %4079 = vmatprep.subr.bf16.mxu0 0
        %4080 = vmatpush1.bf16.xpose.msra.mxu0 0
        %4081 = vmatprep.subr.bf16.mxu0 0
        %4082 = vmatpush1.bf16.xpose.msra.mxu0 %v3506
        %4083 = vmatprep.subr.bf16.mxu0 0
        %4084 = vmatpush1.bf16.xpose.msra.mxu0 %v3503
        %4085 = vmatprep.subr.bf16.mxu0 0
        %4086 = vmatpush1.bf16.xpose.msra.mxu0 %v3500
        %4087 = vmatprep.subr.bf16.mxu0 0
        %4088 = vmatpush1.bf16.xpose.msra.mxu0 %v3497
        %4089 = vmatprep.subr.bf16.mxu0 0
        %4090 = vmatpush2.bf16.xpose.msra.mxu0 0
        %4091 = vmatprep.subr.bf16.mxu0 0
        %4092 = vmatpush2.bf16.xpose.msra.mxu0 0
        %4093 = vmatprep.subr.bf16.mxu0 0
        %4094 = vmatpush2.bf16.xpose.msra.mxu0 0
        %4095 = vmatprep.subr.bf16.mxu0 0
        %4096 = vmatpush2.bf16.xpose.msra.mxu0 0
        %4097 = vmatprep.subr.bf16.mxu0 0
        %4098 = vmatpush2.bf16.xpose.msra.mxu0 0
        %4099 = vmatprep.subr.bf16.mxu0 0
        %4100 = vmatpush2.bf16.xpose.msra.mxu0 0
        %4101 = vmatprep.subr.bf16.mxu0 0
        %4102 = vmatpush2.bf16.xpose.msra.mxu0 0
        %4103 = vmatprep.subr.bf16.mxu0 0
        %4104 = vmatpush2.bf16.xpose.msra.mxu0 0
        %4105 = vmatprep.mubr.bf16.mxu0 0
        %4106 = vmatmul.mubr.bf16.gmra.mxu0 %v4062
        %v4107 = vpop.f32.mrf.mxu0
        %v4108 = vadd.f32 %v3976, %v4107
        %v4109 = vpop.f32.mrf.mxu0
        %v4110 = vpop.f32.mrf.mxu0
        %v4111 = vadd.f32 %v3977, %v4110
        %v4112 = vpop.f32.mrf.mxu0
        %4113 = vmatprep.mubr.bf16.mxu0 0
        %4114 = vmatmul.mubr.bf16.gmra.mxu0 %v4065
        %v4115 = vpop.f32.mrf.mxu0
        %v4116 = vadd.f32 %v3978, %v4115
        %v4117 = vpop.f32.mrf.mxu0
        %v4118 = vpop.f32.mrf.mxu0
        %v4119 = vadd.f32 %v3979, %v4118
        %v4120 = vpop.f32.mrf.mxu0
        %4121 = vmatprep.mubr.bf16.mxu0 0
        %4122 = vmatmul.mubr.bf16.gmra.mxu0 %v4068
        %v4123 = vpop.f32.mrf.mxu0
        %v4124 = vadd.f32 %v3980, %v4123
        %v4125 = vpop.f32.mrf.mxu0
        %v4126 = vpop.f32.mrf.mxu0
        %v4127 = vadd.f32 %v3981, %v4126
        %v4128 = vpop.f32.mrf.mxu0
        %4129 = vmatprep.mubr.bf16.mxu0 0
        %4130 = vmatmul.mubr.bf16.gmra.mxu0 %v4071
        %v4131 = vpop.f32.mrf.mxu0
        %v4132 = vadd.f32 %v3982, %v4131
        %v4133 = vpop.f32.mrf.mxu0
        %v4134 = vpop.f32.mrf.mxu0
        %v4135 = vadd.f32 %v3983, %v4134
        %v4136 = vpop.f32.mrf.mxu0
        %4137 = vdwg.mxu0
        %v4138 = vsel %vm1238, %v4031, -inf
        %4139 = vmax.xlane.f32.xlu0 %v4138
        %v4140 = vpop.xlane.xlu0 %4139
        %v4141 = vsel %vm1238, %v4034, -inf
        %4142 = vmax.xlane.f32.xlu0 %v4141
        %v4143 = vpop.xlane.xlu0 %4142
        %v4144 = vsel %vm1238, %v4039, -inf
        %4145 = vmax.xlane.f32.xlu0 %v4144
        %v4146 = vpop.xlane.xlu0 %4145
        %v4147 = vsel %vm1238, %v4042, -inf
        %4148 = vmax.xlane.f32.xlu0 %v4147
        %v4149 = vpop.xlane.xlu0 %4148
        %v4150 = vsel %vm1238, %v4047, -inf
        %4151 = vmax.xlane.f32.xlu0 %v4150
        %v4152 = vpop.xlane.xlu0 %4151
        %v4153 = vsel %vm1238, %v4050, -inf
        %4154 = vmax.xlane.f32.xlu0 %v4153
        %v4155 = vpop.xlane.xlu0 %4154
        %v4156 = vsel %vm1238, %v4055, -inf
        %4157 = vmax.xlane.f32.xlu0 %v4156
        %v4158 = vpop.xlane.xlu0 %4157
        %v4159 = vsel %vm1238, %v4058, -inf
        %4160 = vmax.xlane.f32.xlu0 %v4159
        %v4161 = vpop.xlane.xlu0 %4160
        %v4162 = vsel %vm1238, %v4108, -inf
        %4163 = vmax.xlane.f32.xlu0 %v4162
        %v4164 = vpop.xlane.xlu0 %4163
        %v4165 = vsel %vm1238, %v4111, -inf
        %4166 = vmax.xlane.f32.xlu0 %v4165
        %v4167 = vpop.xlane.xlu0 %4166
        %v4168 = vsel %vm1238, %v4116, -inf
        %4169 = vmax.xlane.f32.xlu0 %v4168
        %v4170 = vpop.xlane.xlu0 %4169
        %v4171 = vsel %vm1238, %v4119, -inf
        %4172 = vmax.xlane.f32.xlu0 %v4171
        %v4173 = vpop.xlane.xlu0 %4172
        %v4174 = vsel %vm1238, %v4124, -inf
        %4175 = vmax.xlane.f32.xlu0 %v4174
        %v4176 = vpop.xlane.xlu0 %4175
        %v4177 = vsel %vm1238, %v4127, -inf
        %4178 = vmax.xlane.f32.xlu0 %v4177
        %v4179 = vpop.xlane.xlu0 %4178
        %v4180 = vsel %vm1238, %v4132, -inf
        %4181 = vmax.xlane.f32.xlu0 %v4180
        %v4182 = vpop.xlane.xlu0 %4181
        %v4183 = vsel %vm1238, %v4135, -inf
        %4184 = vmax.xlane.f32.xlu0 %v4183
        %v4185 = vpop.xlane.xlu0 %4184
        %v4186 = vsub.f32 %v4031, %v4140
        %v4187 = vsub.f32 %v4034, %v4143
        %v4188 = vsub.f32 %v4039, %v4146
        %v4189 = vsub.f32 %v4042, %v4149
        %v4190 = vsub.f32 %v4047, %v4152
        %v4191 = vsub.f32 %v4050, %v4155
        %v4192 = vsub.f32 %v4055, %v4158
        %v4193 = vsub.f32 %v4058, %v4161
        %v4194 = vsub.f32 %v4108, %v4164
        %v4195 = vsub.f32 %v4111, %v4167
        %v4196 = vsub.f32 %v4116, %v4170
        %v4197 = vsub.f32 %v4119, %v4173
        %v4198 = vsub.f32 %v4124, %v4176
        %v4199 = vsub.f32 %v4127, %v4179
        %v4200 = vsub.f32 %v4132, %v4182
        %v4201 = vsub.f32 %v4135, %v4185
        %v4202 = vmul.f32 %v4186, 1.442695
        %v4203 = vpow.pop %v4202
        %v4204 = vmul.f32 %v4187, 1.442695
        %v4205 = vpow.pop %v4204
        %v4206 = vmul.f32 %v4188, 1.442695
        %v4207 = vpow.pop %v4206
        %v4208 = vmul.f32 %v4189, 1.442695
        %v4209 = vpow.pop %v4208
        %v4210 = vmul.f32 %v4190, 1.442695
        %v4211 = vpow.pop %v4210
        %v4212 = vmul.f32 %v4191, 1.442695
        %v4213 = vpow.pop %v4212
        %v4214 = vmul.f32 %v4192, 1.442695
        %v4215 = vpow.pop %v4214
        %v4216 = vmul.f32 %v4193, 1.442695
        %v4217 = vpow.pop %v4216
        %v4218 = vmul.f32 %v4194, 1.442695
        %v4219 = vpow.pop %v4218
        %v4220 = vmul.f32 %v4195, 1.442695
        %v4221 = vpow.pop %v4220
        %v4222 = vmul.f32 %v4196, 1.442695
        %v4223 = vpow.pop %v4222
        %v4224 = vmul.f32 %v4197, 1.442695
        %v4225 = vpow.pop %v4224
        %v4226 = vmul.f32 %v4198, 1.442695
        %v4227 = vpow.pop %v4226
        %v4228 = vmul.f32 %v4199, 1.442695
        %v4229 = vpow.pop %v4228
        %v4230 = vmul.f32 %v4200, 1.442695
        %v4231 = vpow.pop %v4230
        %v4232 = vmul.f32 %v4201, 1.442695
        %v4233 = vpow.pop %v4232
        %v4234 = vsel %vm1238, %v4203, 0.0
        %4235 = vadd.xlane.f32.xlu0 %v4234
        %v4236 = vpop.xlane.xlu0 %4235
        %v4237 = vsel %vm1238, %v4205, 0.0
        %4238 = vadd.xlane.f32.xlu0 %v4237
        %v4239 = vpop.xlane.xlu0 %4238
        %v4240 = vsel %vm1238, %v4207, 0.0
        %4241 = vadd.xlane.f32.xlu0 %v4240
        %v4242 = vpop.xlane.xlu0 %4241
        %v4243 = vsel %vm1238, %v4209, 0.0
        %4244 = vadd.xlane.f32.xlu0 %v4243
        %v4245 = vpop.xlane.xlu0 %4244
        %v4246 = vsel %vm1238, %v4211, 0.0
        %4247 = vadd.xlane.f32.xlu0 %v4246
        %v4248 = vpop.xlane.xlu0 %4247
        %v4249 = vsel %vm1238, %v4213, 0.0
        %4250 = vadd.xlane.f32.xlu0 %v4249
        %v4251 = vpop.xlane.xlu0 %4250
        %v4252 = vsel %vm1238, %v4215, 0.0
        %4253 = vadd.xlane.f32.xlu0 %v4252
        %v4254 = vpop.xlane.xlu0 %4253
        %v4255 = vsel %vm1238, %v4217, 0.0
        %4256 = vadd.xlane.f32.xlu0 %v4255
        %v4257 = vpop.xlane.xlu0 %4256
        %v4258 = vsel %vm1238, %v4219, 0.0
        %4259 = vadd.xlane.f32.xlu0 %v4258
        %v4260 = vpop.xlane.xlu0 %4259
        %v4261 = vsel %vm1238, %v4221, 0.0
        %4262 = vadd.xlane.f32.xlu0 %v4261
        %v4263 = vpop.xlane.xlu0 %4262
        %v4264 = vsel %vm1238, %v4223, 0.0
        %4265 = vadd.xlane.f32.xlu0 %v4264
        %v4266 = vpop.xlane.xlu0 %4265
        %v4267 = vsel %vm1238, %v4225, 0.0
        %4268 = vadd.xlane.f32.xlu0 %v4267
        %v4269 = vpop.xlane.xlu0 %4268
        %v4270 = vsel %vm1238, %v4227, 0.0
        %4271 = vadd.xlane.f32.xlu0 %v4270
        %v4272 = vpop.xlane.xlu0 %4271
        %v4273 = vsel %vm1238, %v4229, 0.0
        %4274 = vadd.xlane.f32.xlu0 %v4273
        %v4275 = vpop.xlane.xlu0 %4274
        %v4276 = vsel %vm1238, %v4231, 0.0
        %4277 = vadd.xlane.f32.xlu0 %v4276
        %v4278 = vpop.xlane.xlu0 %4277
        %v4279 = vsel %vm1238, %v4233, 0.0
        %4280 = vadd.xlane.f32.xlu0 %v4279
        %v4281 = vpop.xlane.xlu0 %4280
        %v4282 = vrcp.pop %v4236
        %v4283 = vrcp.pop %v4239
        %v4284 = vrcp.pop %v4242
        %v4285 = vrcp.pop %v4245
        %v4286 = vrcp.pop %v4248
        %v4287 = vrcp.pop %v4251
        %v4288 = vrcp.pop %v4254
        %v4289 = vrcp.pop %v4257
        %v4290 = vrcp.pop %v4260
        %v4291 = vrcp.pop %v4263
        %v4292 = vrcp.pop %v4266
        %v4293 = vrcp.pop %v4269
        %v4294 = vrcp.pop %v4272
        %v4295 = vrcp.pop %v4275
        %v4296 = vrcp.pop %v4278
        %v4297 = vrcp.pop %v4281
        %v4298 = vmul.f32 %v4203, %v4282
        %v4299 = vmul.f32 %v4205, %v4283
        %v4300 = vmul.f32 %v4207, %v4284
        %v4301 = vmul.f32 %v4209, %v4285
        %v4302 = vmul.f32 %v4211, %v4286
        %v4303 = vmul.f32 %v4213, %v4287
        %v4304 = vmul.f32 %v4215, %v4288
        %v4305 = vmul.f32 %v4217, %v4289
        %v4306 = vmul.f32 %v4219, %v4290
        %v4307 = vmul.f32 %v4221, %v4291
        %v4308 = vmul.f32 %v4223, %v4292
        %v4309 = vmul.f32 %v4225, %v4293
        %v4310 = vmul.f32 %v4227, %v4294
        %v4311 = vmul.f32 %v4229, %v4295
        %v4312 = vmul.f32 %v4231, %v4296
        %v4313 = vmul.f32 %v4233, %v4297
        %v4314 = vpack.c.bf16 %v4299, %v4298
        %v4315 = vpack.c.bf16 %v4301, %v4300
        %v4316 = vpack.c.bf16 %v4303, %v4302
        %v4317 = vpack.c.bf16 %v4305, %v4304
        %v4318 = vpack.c.bf16 %v4307, %v4306
        %v4319 = vpack.c.bf16 %v4309, %v4308
        %v4320 = vpack.c.bf16 %v4311, %v4310
        %v4321 = vpack.c.bf16 %v4313, %v4312
        %v4323 = vsel %vm1238, %v4314, 0
        %v4326 = vsel %vm1238, %v4315, 0
        %v4329 = vsel %vm1238, %v4316, 0
        %v4332 = vsel %vm1238, %v4317, 0
        %4334 = vmatprep.subr.bf16.mxu0 0
        %4335 = vmatpush1.bf16.msra.mxu0 0
        %4336 = vmatprep.subr.bf16.mxu0 0
        %4337 = vmatpush1.bf16.msra.mxu0 0
        %4338 = vmatprep.subr.bf16.mxu0 0
        %4339 = vmatpush1.bf16.msra.mxu0 0
        %4340 = vmatprep.subr.bf16.mxu0 0
        %4341 = vmatpush1.bf16.msra.mxu0 0
        %4342 = vmatprep.subr.bf16.mxu0 0
        %4343 = vmatpush1.bf16.msra.mxu0 %v3349
        %4344 = vmatprep.subr.bf16.mxu0 0
        %4345 = vmatpush1.bf16.msra.mxu0 %v3348
        %4346 = vmatprep.subr.bf16.mxu0 0
        %4347 = vmatpush1.bf16.msra.mxu0 %v3347
        %4348 = vmatprep.subr.bf16.mxu0 0
        %4349 = vmatpush1.bf16.msra.mxu0 %v3346
        %4350 = vmatprep.subr.bf16.mxu0 0
        %4351 = vmatpush2.bf16.msra.mxu0 0
        %4352 = vmatprep.subr.bf16.mxu0 0
        %4353 = vmatpush2.bf16.msra.mxu0 0
        %4354 = vmatprep.subr.bf16.mxu0 0
        %4355 = vmatpush2.bf16.msra.mxu0 0
        %4356 = vmatprep.subr.bf16.mxu0 0
        %4357 = vmatpush2.bf16.msra.mxu0 0
        %4358 = vmatprep.subr.bf16.mxu0 0
        %4359 = vmatpush2.bf16.msra.mxu0 0
        %4360 = vmatprep.subr.bf16.mxu0 0
        %4361 = vmatpush2.bf16.msra.mxu0 0
        %4362 = vmatprep.subr.bf16.mxu0 0
        %4363 = vmatpush2.bf16.msra.mxu0 0
        %4364 = vmatprep.subr.bf16.mxu0 0
        %4365 = vmatpush2.bf16.msra.mxu0 0
        %4366 = vmatprep.mubr.bf16.mxu0 0
        %4367 = vmatmul.mubr.bf16.gmra.mxu0 %v4323
        %v4368 = vpop.f32.mrf.mxu0
        %v4369 = vadd.f32 0.0, %v4368
        %v4370 = vpop.f32.mrf.mxu0
        %v4371 = vpop.f32.mrf.mxu0
        %v4372 = vadd.f32 0.0, %v4371
        %v4373 = vpop.f32.mrf.mxu0
        %4374 = vmatprep.mubr.bf16.mxu0 0
        %4375 = vmatmul.mubr.bf16.gmra.mxu0 %v4326
        %v4376 = vpop.f32.mrf.mxu0
        %v4377 = vadd.f32 0.0, %v4376
        %v4378 = vpop.f32.mrf.mxu0
        %v4379 = vpop.f32.mrf.mxu0
        %v4380 = vadd.f32 0.0, %v4379
        %v4381 = vpop.f32.mrf.mxu0
        %4382 = vmatprep.mubr.bf16.mxu0 0
        %4383 = vmatmul.mubr.bf16.gmra.mxu0 %v4329
        %v4384 = vpop.f32.mrf.mxu0
        %v4385 = vadd.f32 0.0, %v4384
        %v4386 = vpop.f32.mrf.mxu0
        %v4387 = vpop.f32.mrf.mxu0
        %v4388 = vadd.f32 0.0, %v4387
        %v4389 = vpop.f32.mrf.mxu0
        %4390 = vmatprep.mubr.bf16.mxu0 0
        %4391 = vmatmul.mubr.bf16.gmra.mxu0 %v4332
        %v4392 = vpop.f32.mrf.mxu0
        %v4393 = vadd.f32 0.0, %v4392
        %v4394 = vpop.f32.mrf.mxu0
        %v4395 = vpop.f32.mrf.mxu0
        %v4396 = vadd.f32 0.0, %v4395
        %v4397 = vpop.f32.mrf.mxu0
        %4398 = vdwg.mxu0
        %v4400 = vsel %vm1238, %v4318, 0
        %v4403 = vsel %vm1238, %v4319, 0
        %v4406 = vsel %vm1238, %v4320, 0
        %v4409 = vsel %vm1238, %v4321, 0
        %4411 = vmatprep.subr.bf16.mxu0 0
        %4412 = vmatpush1.bf16.msra.mxu0 0
        %4413 = vmatprep.subr.bf16.mxu0 0
        %4414 = vmatpush1.bf16.msra.mxu0 0
        %4415 = vmatprep.subr.bf16.mxu0 0
        %4416 = vmatpush1.bf16.msra.mxu0 0
        %4417 = vmatprep.subr.bf16.mxu0 0
        %4418 = vmatpush1.bf16.msra.mxu0 0
        %4419 = vmatprep.subr.bf16.mxu0 0
        %4420 = vmatpush1.bf16.msra.mxu0 %v3353
        %4421 = vmatprep.subr.bf16.mxu0 0
        %4422 = vmatpush1.bf16.msra.mxu0 %v3352
        %4423 = vmatprep.subr.bf16.mxu0 0
        %4424 = vmatpush1.bf16.msra.mxu0 %v3351
        %4425 = vmatprep.subr.bf16.mxu0 0
        %4426 = vmatpush1.bf16.msra.mxu0 %v3350
        %4427 = vmatprep.subr.bf16.mxu0 0
        %4428 = vmatpush2.bf16.msra.mxu0 0
        %4429 = vmatprep.subr.bf16.mxu0 0
        %4430 = vmatpush2.bf16.msra.mxu0 0
        %4431 = vmatprep.subr.bf16.mxu0 0
        %4432 = vmatpush2.bf16.msra.mxu0 0
        %4433 = vmatprep.subr.bf16.mxu0 0
        %4434 = vmatpush2.bf16.msra.mxu0 0
        %4435 = vmatprep.subr.bf16.mxu0 0
        %4436 = vmatpush2.bf16.msra.mxu0 0
        %4437 = vmatprep.subr.bf16.mxu0 0
        %4438 = vmatpush2.bf16.msra.mxu0 0
        %4439 = vmatprep.subr.bf16.mxu0 0
        %4440 = vmatpush2.bf16.msra.mxu0 0
        %4441 = vmatprep.subr.bf16.mxu0 0
        %4442 = vmatpush2.bf16.msra.mxu0 0
        %4443 = vmatprep.mubr.bf16.mxu0 0
        %4444 = vmatmul.mubr.bf16.gmra.mxu0 %v4400
        %v4445 = vpop.f32.mrf.mxu0
        %v4446 = vadd.f32 0.0, %v4445
        %v4447 = vpop.f32.mrf.mxu0
        %v4448 = vpop.f32.mrf.mxu0
        %v4449 = vadd.f32 0.0, %v4448
        %v4450 = vpop.f32.mrf.mxu0
        %4451 = vmatprep.mubr.bf16.mxu0 0
        %4452 = vmatmul.mubr.bf16.gmra.mxu0 %v4403
        %v4453 = vpop.f32.mrf.mxu0
        %v4454 = vadd.f32 0.0, %v4453
        %v4455 = vpop.f32.mrf.mxu0
        %v4456 = vpop.f32.mrf.mxu0
        %v4457 = vadd.f32 0.0, %v4456
        %v4458 = vpop.f32.mrf.mxu0
        %4459 = vmatprep.mubr.bf16.mxu0 0
        %4460 = vmatmul.mubr.bf16.gmra.mxu0 %v4406
        %v4461 = vpop.f32.mrf.mxu0
        %v4462 = vadd.f32 0.0, %v4461
        %v4463 = vpop.f32.mrf.mxu0
        %v4464 = vpop.f32.mrf.mxu0
        %v4465 = vadd.f32 0.0, %v4464
        %v4466 = vpop.f32.mrf.mxu0
        %4467 = vmatprep.mubr.bf16.mxu0 0
        %4468 = vmatmul.mubr.bf16.gmra.mxu0 %v4409
        %v4469 = vpop.f32.mrf.mxu0
        %v4470 = vadd.f32 0.0, %v4469
        %v4471 = vpop.f32.mrf.mxu0
        %v4472 = vpop.f32.mrf.mxu0
        %v4473 = vadd.f32 0.0, %v4472
        %v4474 = vpop.f32.mrf.mxu0
        %4475 = vdwg.mxu0
        %v4476 = vmul.f32 %v4369, %v1613
        %v4477 = vmul.f32 %v4372, %v1613
        %v4478 = vmul.f32 %v4377, %v1613
        %v4479 = vmul.f32 %v4380, %v1613
        %v4480 = vmul.f32 %v4385, %v1613
        %v4481 = vmul.f32 %v4388, %v1613
        %v4482 = vmul.f32 %v4393, %v1613
        %v4483 = vmul.f32 %v4396, %v1613
        %v4484 = vmul.f32 %v4446, %v1613
        %v4485 = vmul.f32 %v4449, %v1613
        %v4486 = vmul.f32 %v4454, %v1613
        %v4487 = vmul.f32 %v4457, %v1613
        %v4488 = vmul.f32 %v4462, %v1613
        %v4489 = vmul.f32 %v4465, %v1613
        %v4490 = vmul.f32 %v4470, %v1613
        %v4491 = vmul.f32 %v4473, %v1613
        %v4492 = vadd.f32 %v3927, %v4476
        %v4493 = vadd.f32 %v3928, %v4477
        %v4494 = vadd.f32 %v3929, %v4478
        %v4495 = vadd.f32 %v3930, %v4479
        %v4496 = vadd.f32 %v3931, %v4480
        %v4497 = vadd.f32 %v3932, %v4481
        %v4498 = vadd.f32 %v3933, %v4482
        %v4499 = vadd.f32 %v3934, %v4483
        %v4500 = vadd.f32 %v3935, %v4484
        %v4501 = vadd.f32 %v3936, %v4485
        %v4502 = vadd.f32 %v3937, %v4486
        %v4503 = vadd.f32 %v3938, %v4487
        %v4504 = vadd.f32 %v3939, %v4488
        %v4505 = vadd.f32 %v3940, %v4489
        %v4506 = vadd.f32 %v3941, %v4490
        %v4507 = vadd.f32 %v3942, %v4491
        %v4508 = vmul.f32 %v499, %v2184
        %v4509 = vmul.f32 %v507, %v2184
        %v4510 = vmul.f32 %v515, %v2184
        %v4511 = vmul.f32 %v523, %v2184
        %v4512 = vmul.f32 %v531, %v2184
        %v4513 = vmul.f32 %v539, %v2184
        %v4514 = vmul.f32 %v547, %v2184
        %v4515 = vmul.f32 %v555, %v2184
        %v4516 = vmul.f32 %v563, %v2184
        %v4517 = vmul.f32 %v571, %v2184
        %v4518 = vmul.f32 %v579, %v2184
        %v4519 = vmul.f32 %v587, %v2184
        %v4520 = vmul.f32 %v595, %v2184
        %v4521 = vmul.f32 %v603, %v2184
        %v4522 = vmul.f32 %v611, %v2184
        %v4523 = vmul.f32 %v619, %v2184
        %v4524 = vpack.c.bf16 %v4509, %v4508
        %v4525 = vpack.c.bf16 %v4511, %v4510
        %v4526 = vpack.c.bf16 %v4513, %v4512
        %v4527 = vpack.c.bf16 %v4515, %v4514
        %v4528 = vpack.c.bf16 %v4517, %v4516
        %v4529 = vpack.c.bf16 %v4519, %v4518
        %v4530 = vpack.c.bf16 %v4521, %v4520
        %v4531 = vpack.c.bf16 %v4523, %v4522
        %s4532 = scalar_lea.vmem %s306, 160 [#allocation8]
        %v4533 = vld [vmem:[%s4532] sm:$0xf]
        %v4534 = vld [vmem:[%s4532 + $0x4] sm:$0xf]
        %v4535 = vld [vmem:[%s4532 + $0x8] sm:$0xf]
        %v4536 = vld [vmem:[%s4532 + $0xc] sm:$0xf]
        %v4537 = vld [vmem:[%s4532 + $0x10] sm:$0xf]
        %v4538 = vld [vmem:[%s4532 + $0x14] sm:$0xf]
        %v4539 = vld [vmem:[%s4532 + $0x18] sm:$0xf]
        %v4540 = vld [vmem:[%s4532 + $0x1c] sm:$0xf]
        %v4541 = vunpack.c.l.bf16 %v4533
        %v4542 = vunpack.c.l.bf16 %v4534
        %v4543 = vunpack.c.l.bf16 %v4535
        %v4544 = vunpack.c.l.bf16 %v4536
        %v4545 = vunpack.c.l.bf16 %v4537
        %v4546 = vunpack.c.l.bf16 %v4538
        %v4547 = vunpack.c.l.bf16 %v4539
        %v4548 = vunpack.c.l.bf16 %v4540
        %v4550 = vsel %vm412, %v4524, 0
        %v4553 = vsel %vm412, %v4525, 0
        %v4556 = vsel %vm412, %v4526, 0
        %v4559 = vsel %vm412, %v4527, 0
        %4561 = vmatprep.subr.bf16.mxu0 0
        %4562 = vmatpush1.bf16.xpose.msra.mxu0 0
        %4563 = vmatprep.subr.bf16.mxu0 0
        %4564 = vmatpush1.bf16.xpose.msra.mxu0 0
        %4565 = vmatprep.subr.bf16.mxu0 0
        %4566 = vmatpush1.bf16.xpose.msra.mxu0 0
        %4567 = vmatprep.subr.bf16.mxu0 0
        %4568 = vmatpush1.bf16.xpose.msra.mxu0 0
        %4569 = vmatprep.subr.bf16.mxu0 0
        %4570 = vmatpush1.bf16.xpose.msra.mxu0 %v3417
        %4571 = vmatprep.subr.bf16.mxu0 0
        %4572 = vmatpush1.bf16.xpose.msra.mxu0 %v3414
        %4573 = vmatprep.subr.bf16.mxu0 0
        %4574 = vmatpush1.bf16.xpose.msra.mxu0 %v3411
        %4575 = vmatprep.subr.bf16.mxu0 0
        %4576 = vmatpush1.bf16.xpose.msra.mxu0 %v3408
        %4577 = vmatprep.subr.bf16.mxu0 0
        %4578 = vmatpush2.bf16.xpose.msra.mxu0 0
        %4579 = vmatprep.subr.bf16.mxu0 0
        %4580 = vmatpush2.bf16.xpose.msra.mxu0 0
        %4581 = vmatprep.subr.bf16.mxu0 0
        %4582 = vmatpush2.bf16.xpose.msra.mxu0 0
        %4583 = vmatprep.subr.bf16.mxu0 0
        %4584 = vmatpush2.bf16.xpose.msra.mxu0 0
        %4585 = vmatprep.subr.bf16.mxu0 0
        %4586 = vmatpush2.bf16.xpose.msra.mxu0 0
        %4587 = vmatprep.subr.bf16.mxu0 0
        %4588 = vmatpush2.bf16.xpose.msra.mxu0 0
        %4589 = vmatprep.subr.bf16.mxu0 0
        %4590 = vmatpush2.bf16.xpose.msra.mxu0 0
        %4591 = vmatprep.subr.bf16.mxu0 0
        %4592 = vmatpush2.bf16.xpose.msra.mxu0 0
        %4593 = vmatprep.mubr.bf16.mxu0 0
        %4594 = vmatmul.mubr.bf16.gmra.mxu0 %v4550
        %v4595 = vpop.f32.mrf.mxu0
        %v4596 = vadd.f32 %v4541, %v4595
        %v4597 = vpop.f32.mrf.mxu0
        %v4598 = vpop.f32.mrf.mxu0
        %v4599 = vadd.f32 %v4542, %v4598
        %v4600 = vpop.f32.mrf.mxu0
        %4601 = vmatprep.mubr.bf16.mxu0 0
        %4602 = vmatmul.mubr.bf16.gmra.mxu0 %v4553
        %v4603 = vpop.f32.mrf.mxu0
        %v4604 = vadd.f32 %v4543, %v4603
        %v4605 = vpop.f32.mrf.mxu0
        %v4606 = vpop.f32.mrf.mxu0
        %v4607 = vadd.f32 %v4544, %v4606
        %v4608 = vpop.f32.mrf.mxu0
        %4609 = vmatprep.mubr.bf16.mxu0 0
        %4610 = vmatmul.mubr.bf16.gmra.mxu0 %v4556
        %v4611 = vpop.f32.mrf.mxu0
        %v4612 = vadd.f32 %v4545, %v4611
        %v4613 = vpop.f32.mrf.mxu0
        %v4614 = vpop.f32.mrf.mxu0
        %v4615 = vadd.f32 %v4546, %v4614
        %v4616 = vpop.f32.mrf.mxu0
        %4617 = vmatprep.mubr.bf16.mxu0 0
        %4618 = vmatmul.mubr.bf16.gmra.mxu0 %v4559
        %v4619 = vpop.f32.mrf.mxu0
        %v4620 = vadd.f32 %v4547, %v4619
        %v4621 = vpop.f32.mrf.mxu0
        %v4622 = vpop.f32.mrf.mxu0
        %v4623 = vadd.f32 %v4548, %v4622
        %v4624 = vpop.f32.mrf.mxu0
        %4625 = vdwg.mxu0
        %v4627 = vsel %vm412, %v4528, 0
        %v4630 = vsel %vm412, %v4529, 0
        %v4633 = vsel %vm412, %v4530, 0
        %v4636 = vsel %vm412, %v4531, 0
        %4638 = vmatprep.subr.bf16.mxu0 0
        %4639 = vmatpush1.bf16.xpose.msra.mxu0 0
        %4640 = vmatprep.subr.bf16.mxu0 0
        %4641 = vmatpush1.bf16.xpose.msra.mxu0 0
        %4642 = vmatprep.subr.bf16.mxu0 0
        %4643 = vmatpush1.bf16.xpose.msra.mxu0 0
        %4644 = vmatprep.subr.bf16.mxu0 0
        %4645 = vmatpush1.bf16.xpose.msra.mxu0 0
        %4646 = vmatprep.subr.bf16.mxu0 0
        %4647 = vmatpush1.bf16.xpose.msra.mxu0 %v3506
        %4648 = vmatprep.subr.bf16.mxu0 0
        %4649 = vmatpush1.bf16.xpose.msra.mxu0 %v3503
        %4650 = vmatprep.subr.bf16.mxu0 0
        %4651 = vmatpush1.bf16.xpose.msra.mxu0 %v3500
        %4652 = vmatprep.subr.bf16.mxu0 0
        %4653 = vmatpush1.bf16.xpose.msra.mxu0 %v3497
        %4654 = vmatprep.subr.bf16.mxu0 0
        %4655 = vmatpush2.bf16.xpose.msra.mxu0 0
        %4656 = vmatprep.subr.bf16.mxu0 0
        %4657 = vmatpush2.bf16.xpose.msra.mxu0 0
        %4658 = vmatprep.subr.bf16.mxu0 0
        %4659 = vmatpush2.bf16.xpose.msra.mxu0 0
        %4660 = vmatprep.subr.bf16.mxu0 0
        %4661 = vmatpush2.bf16.xpose.msra.mxu0 0
        %4662 = vmatprep.subr.bf16.mxu0 0
        %4663 = vmatpush2.bf16.xpose.msra.mxu0 0
        %4664 = vmatprep.subr.bf16.mxu0 0
        %4665 = vmatpush2.bf16.xpose.msra.mxu0 0
        %4666 = vmatprep.subr.bf16.mxu0 0
        %4667 = vmatpush2.bf16.xpose.msra.mxu0 0
        %4668 = vmatprep.subr.bf16.mxu0 0
        %4669 = vmatpush2.bf16.xpose.msra.mxu0 0
        %4670 = vmatprep.mubr.bf16.mxu0 0
        %4671 = vmatmul.mubr.bf16.gmra.mxu0 %v4627
        %v4672 = vpop.f32.mrf.mxu0
        %v4673 = vadd.f32 %v4541, %v4672
        %v4674 = vpop.f32.mrf.mxu0
        %v4675 = vpop.f32.mrf.mxu0
        %v4676 = vadd.f32 %v4542, %v4675
        %v4677 = vpop.f32.mrf.mxu0
        %4678 = vmatprep.mubr.bf16.mxu0 0
        %4679 = vmatmul.mubr.bf16.gmra.mxu0 %v4630
        %v4680 = vpop.f32.mrf.mxu0
        %v4681 = vadd.f32 %v4543, %v4680
        %v4682 = vpop.f32.mrf.mxu0
        %v4683 = vpop.f32.mrf.mxu0
        %v4684 = vadd.f32 %v4544, %v4683
        %v4685 = vpop.f32.mrf.mxu0
        %4686 = vmatprep.mubr.bf16.mxu0 0
        %4687 = vmatmul.mubr.bf16.gmra.mxu0 %v4633
        %v4688 = vpop.f32.mrf.mxu0
        %v4689 = vadd.f32 %v4545, %v4688
        %v4690 = vpop.f32.mrf.mxu0
        %v4691 = vpop.f32.mrf.mxu0
        %v4692 = vadd.f32 %v4546, %v4691
        %v4693 = vpop.f32.mrf.mxu0
        %4694 = vmatprep.mubr.bf16.mxu0 0
        %4695 = vmatmul.mubr.bf16.gmra.mxu0 %v4636
        %v4696 = vpop.f32.mrf.mxu0
        %v4697 = vadd.f32 %v4547, %v4696
        %v4698 = vpop.f32.mrf.mxu0
        %v4699 = vpop.f32.mrf.mxu0
        %v4700 = vadd.f32 %v4548, %v4699
        %v4701 = vpop.f32.mrf.mxu0
        %4702 = vdwg.mxu0
        %v4703 = vsel %vm1238, %v4596, -inf
        %4704 = vmax.xlane.f32.xlu0 %v4703
        %v4705 = vpop.xlane.xlu0 %4704
        %v4706 = vsel %vm1238, %v4599, -inf
        %4707 = vmax.xlane.f32.xlu0 %v4706
        %v4708 = vpop.xlane.xlu0 %4707
        %v4709 = vsel %vm1238, %v4604, -inf
        %4710 = vmax.xlane.f32.xlu0 %v4709
        %v4711 = vpop.xlane.xlu0 %4710
        %v4712 = vsel %vm1238, %v4607, -inf
        %4713 = vmax.xlane.f32.xlu0 %v4712
        %v4714 = vpop.xlane.xlu0 %4713
        %v4715 = vsel %vm1238, %v4612, -inf
        %4716 = vmax.xlane.f32.xlu0 %v4715
        %v4717 = vpop.xlane.xlu0 %4716
        %v4718 = vsel %vm1238, %v4615, -inf
        %4719 = vmax.xlane.f32.xlu0 %v4718
        %v4720 = vpop.xlane.xlu0 %4719
        %v4721 = vsel %vm1238, %v4620, -inf
        %4722 = vmax.xlane.f32.xlu0 %v4721
        %v4723 = vpop.xlane.xlu0 %4722
        %v4724 = vsel %vm1238, %v4623, -inf
        %4725 = vmax.xlane.f32.xlu0 %v4724
        %v4726 = vpop.xlane.xlu0 %4725
        %v4727 = vsel %vm1238, %v4673, -inf
        %4728 = vmax.xlane.f32.xlu0 %v4727
        %v4729 = vpop.xlane.xlu0 %4728
        %v4730 = vsel %vm1238, %v4676, -inf
        %4731 = vmax.xlane.f32.xlu0 %v4730
        %v4732 = vpop.xlane.xlu0 %4731
        %v4733 = vsel %vm1238, %v4681, -inf
        %4734 = vmax.xlane.f32.xlu0 %v4733
        %v4735 = vpop.xlane.xlu0 %4734
        %v4736 = vsel %vm1238, %v4684, -inf
        %4737 = vmax.xlane.f32.xlu0 %v4736
        %v4738 = vpop.xlane.xlu0 %4737
        %v4739 = vsel %vm1238, %v4689, -inf
        %4740 = vmax.xlane.f32.xlu0 %v4739
        %v4741 = vpop.xlane.xlu0 %4740
        %v4742 = vsel %vm1238, %v4692, -inf
        %4743 = vmax.xlane.f32.xlu0 %v4742
        %v4744 = vpop.xlane.xlu0 %4743
        %v4745 = vsel %vm1238, %v4697, -inf
        %4746 = vmax.xlane.f32.xlu0 %v4745
        %v4747 = vpop.xlane.xlu0 %4746
        %v4748 = vsel %vm1238, %v4700, -inf
        %4749 = vmax.xlane.f32.xlu0 %v4748
        %v4750 = vpop.xlane.xlu0 %4749
        %v4751 = vsub.f32 %v4596, %v4705
        %v4752 = vsub.f32 %v4599, %v4708
        %v4753 = vsub.f32 %v4604, %v4711
        %v4754 = vsub.f32 %v4607, %v4714
        %v4755 = vsub.f32 %v4612, %v4717
        %v4756 = vsub.f32 %v4615, %v4720
        %v4757 = vsub.f32 %v4620, %v4723
        %v4758 = vsub.f32 %v4623, %v4726
        %v4759 = vsub.f32 %v4673, %v4729
        %v4760 = vsub.f32 %v4676, %v4732
        %v4761 = vsub.f32 %v4681, %v4735
        %v4762 = vsub.f32 %v4684, %v4738
        %v4763 = vsub.f32 %v4689, %v4741
        %v4764 = vsub.f32 %v4692, %v4744
        %v4765 = vsub.f32 %v4697, %v4747
        %v4766 = vsub.f32 %v4700, %v4750
        %v4767 = vmul.f32 %v4751, 1.442695
        %v4768 = vpow.pop %v4767
        %v4769 = vmul.f32 %v4752, 1.442695
        %v4770 = vpow.pop %v4769
        %v4771 = vmul.f32 %v4753, 1.442695
        %v4772 = vpow.pop %v4771
        %v4773 = vmul.f32 %v4754, 1.442695
        %v4774 = vpow.pop %v4773
        %v4775 = vmul.f32 %v4755, 1.442695
        %v4776 = vpow.pop %v4775
        %v4777 = vmul.f32 %v4756, 1.442695
        %v4778 = vpow.pop %v4777
        %v4779 = vmul.f32 %v4757, 1.442695
        %v4780 = vpow.pop %v4779
        %v4781 = vmul.f32 %v4758, 1.442695
        %v4782 = vpow.pop %v4781
        %v4783 = vmul.f32 %v4759, 1.442695
        %v4784 = vpow.pop %v4783
        %v4785 = vmul.f32 %v4760, 1.442695
        %v4786 = vpow.pop %v4785
        %v4787 = vmul.f32 %v4761, 1.442695
        %v4788 = vpow.pop %v4787
        %v4789 = vmul.f32 %v4762, 1.442695
        %v4790 = vpow.pop %v4789
        %v4791 = vmul.f32 %v4763, 1.442695
        %v4792 = vpow.pop %v4791
        %v4793 = vmul.f32 %v4764, 1.442695
        %v4794 = vpow.pop %v4793
        %v4795 = vmul.f32 %v4765, 1.442695
        %v4796 = vpow.pop %v4795
        %v4797 = vmul.f32 %v4766, 1.442695
        %v4798 = vpow.pop %v4797
        %v4799 = vsel %vm1238, %v4768, 0.0
        %4800 = vadd.xlane.f32.xlu0 %v4799
        %v4801 = vpop.xlane.xlu0 %4800
        %v4802 = vsel %vm1238, %v4770, 0.0
        %4803 = vadd.xlane.f32.xlu0 %v4802
        %v4804 = vpop.xlane.xlu0 %4803
        %v4805 = vsel %vm1238, %v4772, 0.0
        %4806 = vadd.xlane.f32.xlu0 %v4805
        %v4807 = vpop.xlane.xlu0 %4806
        %v4808 = vsel %vm1238, %v4774, 0.0
        %4809 = vadd.xlane.f32.xlu0 %v4808
        %v4810 = vpop.xlane.xlu0 %4809
        %v4811 = vsel %vm1238, %v4776, 0.0
        %4812 = vadd.xlane.f32.xlu0 %v4811
        %v4813 = vpop.xlane.xlu0 %4812
        %v4814 = vsel %vm1238, %v4778, 0.0
        %4815 = vadd.xlane.f32.xlu0 %v4814
        %v4816 = vpop.xlane.xlu0 %4815
        %v4817 = vsel %vm1238, %v4780, 0.0
        %4818 = vadd.xlane.f32.xlu0 %v4817
        %v4819 = vpop.xlane.xlu0 %4818
        %v4820 = vsel %vm1238, %v4782, 0.0
        %4821 = vadd.xlane.f32.xlu0 %v4820
        %v4822 = vpop.xlane.xlu0 %4821
        %v4823 = vsel %vm1238, %v4784, 0.0
        %4824 = vadd.xlane.f32.xlu0 %v4823
        %v4825 = vpop.xlane.xlu0 %4824
        %v4826 = vsel %vm1238, %v4786, 0.0
        %4827 = vadd.xlane.f32.xlu0 %v4826
        %v4828 = vpop.xlane.xlu0 %4827
        %v4829 = vsel %vm1238, %v4788, 0.0
        %4830 = vadd.xlane.f32.xlu0 %v4829
        %v4831 = vpop.xlane.xlu0 %4830
        %v4832 = vsel %vm1238, %v4790, 0.0
        %4833 = vadd.xlane.f32.xlu0 %v4832
        %v4834 = vpop.xlane.xlu0 %4833
        %v4835 = vsel %vm1238, %v4792, 0.0
        %4836 = vadd.xlane.f32.xlu0 %v4835
        %v4837 = vpop.xlane.xlu0 %4836
        %v4838 = vsel %vm1238, %v4794, 0.0
        %4839 = vadd.xlane.f32.xlu0 %v4838
        %v4840 = vpop.xlane.xlu0 %4839
        %v4841 = vsel %vm1238, %v4796, 0.0
        %4842 = vadd.xlane.f32.xlu0 %v4841
        %v4843 = vpop.xlane.xlu0 %4842
        %v4844 = vsel %vm1238, %v4798, 0.0
        %4845 = vadd.xlane.f32.xlu0 %v4844
        %v4846 = vpop.xlane.xlu0 %4845
        %v4847 = vrcp.pop %v4801
        %v4848 = vrcp.pop %v4804
        %v4849 = vrcp.pop %v4807
        %v4850 = vrcp.pop %v4810
        %v4851 = vrcp.pop %v4813
        %v4852 = vrcp.pop %v4816
        %v4853 = vrcp.pop %v4819
        %v4854 = vrcp.pop %v4822
        %v4855 = vrcp.pop %v4825
        %v4856 = vrcp.pop %v4828
        %v4857 = vrcp.pop %v4831
        %v4858 = vrcp.pop %v4834
        %v4859 = vrcp.pop %v4837
        %v4860 = vrcp.pop %v4840
        %v4861 = vrcp.pop %v4843
        %v4862 = vrcp.pop %v4846
        %v4863 = vmul.f32 %v4768, %v4847
        %v4864 = vmul.f32 %v4770, %v4848
        %v4865 = vmul.f32 %v4772, %v4849
        %v4866 = vmul.f32 %v4774, %v4850
        %v4867 = vmul.f32 %v4776, %v4851
        %v4868 = vmul.f32 %v4778, %v4852
        %v4869 = vmul.f32 %v4780, %v4853
        %v4870 = vmul.f32 %v4782, %v4854
        %v4871 = vmul.f32 %v4784, %v4855
        %v4872 = vmul.f32 %v4786, %v4856
        %v4873 = vmul.f32 %v4788, %v4857
        %v4874 = vmul.f32 %v4790, %v4858
        %v4875 = vmul.f32 %v4792, %v4859
        %v4876 = vmul.f32 %v4794, %v4860
        %v4877 = vmul.f32 %v4796, %v4861
        %v4878 = vmul.f32 %v4798, %v4862
        %v4879 = vpack.c.bf16 %v4864, %v4863
        %v4880 = vpack.c.bf16 %v4866, %v4865
        %v4881 = vpack.c.bf16 %v4868, %v4867
        %v4882 = vpack.c.bf16 %v4870, %v4869
        %v4883 = vpack.c.bf16 %v4872, %v4871
        %v4884 = vpack.c.bf16 %v4874, %v4873
        %v4885 = vpack.c.bf16 %v4876, %v4875
        %v4886 = vpack.c.bf16 %v4878, %v4877
        %v4888 = vsel %vm1238, %v4879, 0
        %v4891 = vsel %vm1238, %v4880, 0
        %v4894 = vsel %vm1238, %v4881, 0
        %v4897 = vsel %vm1238, %v4882, 0
        %4899 = vmatprep.subr.bf16.mxu0 0
        %4900 = vmatpush1.bf16.msra.mxu0 0
        %4901 = vmatprep.subr.bf16.mxu0 0
        %4902 = vmatpush1.bf16.msra.mxu0 0
        %4903 = vmatprep.subr.bf16.mxu0 0
        %4904 = vmatpush1.bf16.msra.mxu0 0
        %4905 = vmatprep.subr.bf16.mxu0 0
        %4906 = vmatpush1.bf16.msra.mxu0 0
        %4907 = vmatprep.subr.bf16.mxu0 0
        %4908 = vmatpush1.bf16.msra.mxu0 %v3349
        %4909 = vmatprep.subr.bf16.mxu0 0
        %4910 = vmatpush1.bf16.msra.mxu0 %v3348
        %4911 = vmatprep.subr.bf16.mxu0 0
        %4912 = vmatpush1.bf16.msra.mxu0 %v3347
        %4913 = vmatprep.subr.bf16.mxu0 0
        %4914 = vmatpush1.bf16.msra.mxu0 %v3346
        %4915 = vmatprep.subr.bf16.mxu0 0
        %4916 = vmatpush2.bf16.msra.mxu0 0
        %4917 = vmatprep.subr.bf16.mxu0 0
        %4918 = vmatpush2.bf16.msra.mxu0 0
        %4919 = vmatprep.subr.bf16.mxu0 0
        %4920 = vmatpush2.bf16.msra.mxu0 0
        %4921 = vmatprep.subr.bf16.mxu0 0
        %4922 = vmatpush2.bf16.msra.mxu0 0
        %4923 = vmatprep.subr.bf16.mxu0 0
        %4924 = vmatpush2.bf16.msra.mxu0 0
        %4925 = vmatprep.subr.bf16.mxu0 0
        %4926 = vmatpush2.bf16.msra.mxu0 0
        %4927 = vmatprep.subr.bf16.mxu0 0
        %4928 = vmatpush2.bf16.msra.mxu0 0
        %4929 = vmatprep.subr.bf16.mxu0 0
        %4930 = vmatpush2.bf16.msra.mxu0 0
        %4931 = vmatprep.mubr.bf16.mxu0 0
        %4932 = vmatmul.mubr.bf16.gmra.mxu0 %v4888
        %v4933 = vpop.f32.mrf.mxu0
        %v4934 = vadd.f32 0.0, %v4933
        %v4935 = vpop.f32.mrf.mxu0
        %v4936 = vpop.f32.mrf.mxu0
        %v4937 = vadd.f32 0.0, %v4936
        %v4938 = vpop.f32.mrf.mxu0
        %4939 = vmatprep.mubr.bf16.mxu0 0
        %4940 = vmatmul.mubr.bf16.gmra.mxu0 %v4891
        %v4941 = vpop.f32.mrf.mxu0
        %v4942 = vadd.f32 0.0, %v4941
        %v4943 = vpop.f32.mrf.mxu0
        %v4944 = vpop.f32.mrf.mxu0
        %v4945 = vadd.f32 0.0, %v4944
        %v4946 = vpop.f32.mrf.mxu0
        %4947 = vmatprep.mubr.bf16.mxu0 0
        %4948 = vmatmul.mubr.bf16.gmra.mxu0 %v4894
        %v4949 = vpop.f32.mrf.mxu0
        %v4950 = vadd.f32 0.0, %v4949
        %v4951 = vpop.f32.mrf.mxu0
        %v4952 = vpop.f32.mrf.mxu0
        %v4953 = vadd.f32 0.0, %v4952
        %v4954 = vpop.f32.mrf.mxu0
        %4955 = vmatprep.mubr.bf16.mxu0 0
        %4956 = vmatmul.mubr.bf16.gmra.mxu0 %v4897
        %v4957 = vpop.f32.mrf.mxu0
        %v4958 = vadd.f32 0.0, %v4957
        %v4959 = vpop.f32.mrf.mxu0
        %v4960 = vpop.f32.mrf.mxu0
        %v4961 = vadd.f32 0.0, %v4960
        %v4962 = vpop.f32.mrf.mxu0
        %4963 = vdwg.mxu0
        %v4965 = vsel %vm1238, %v4883, 0
        %v4968 = vsel %vm1238, %v4884, 0
        %v4971 = vsel %vm1238, %v4885, 0
        %v4974 = vsel %vm1238, %v4886, 0
        %4976 = vmatprep.subr.bf16.mxu0 0
        %4977 = vmatpush1.bf16.msra.mxu0 0
        %4978 = vmatprep.subr.bf16.mxu0 0
        %4979 = vmatpush1.bf16.msra.mxu0 0
        %4980 = vmatprep.subr.bf16.mxu0 0
        %4981 = vmatpush1.bf16.msra.mxu0 0
        %4982 = vmatprep.subr.bf16.mxu0 0
        %4983 = vmatpush1.bf16.msra.mxu0 0
        %4984 = vmatprep.subr.bf16.mxu0 0
        %4985 = vmatpush1.bf16.msra.mxu0 %v3353
        %4986 = vmatprep.subr.bf16.mxu0 0
        %4987 = vmatpush1.bf16.msra.mxu0 %v3352
        %4988 = vmatprep.subr.bf16.mxu0 0
        %4989 = vmatpush1.bf16.msra.mxu0 %v3351
        %4990 = vmatprep.subr.bf16.mxu0 0
        %4991 = vmatpush1.bf16.msra.mxu0 %v3350
        %4992 = vmatprep.subr.bf16.mxu0 0
        %4993 = vmatpush2.bf16.msra.mxu0 0
        %4994 = vmatprep.subr.bf16.mxu0 0
        %4995 = vmatpush2.bf16.msra.mxu0 0
        %4996 = vmatprep.subr.bf16.mxu0 0
        %4997 = vmatpush2.bf16.msra.mxu0 0
        %4998 = vmatprep.subr.bf16.mxu0 0
        %4999 = vmatpush2.bf16.msra.mxu0 0
        %5000 = vmatprep.subr.bf16.mxu0 0
        %5001 = vmatpush2.bf16.msra.mxu0 0
        %5002 = vmatprep.subr.bf16.mxu0 0
        %5003 = vmatpush2.bf16.msra.mxu0 0
        %5004 = vmatprep.subr.bf16.mxu0 0
        %5005 = vmatpush2.bf16.msra.mxu0 0
        %5006 = vmatprep.subr.bf16.mxu0 0
        %5007 = vmatpush2.bf16.msra.mxu0 0
        %5008 = vmatprep.mubr.bf16.mxu0 0
        %5009 = vmatmul.mubr.bf16.gmra.mxu0 %v4965
        %v5010 = vpop.f32.mrf.mxu0
        %v5011 = vadd.f32 0.0, %v5010
        %v5012 = vpop.f32.mrf.mxu0
        %v5013 = vpop.f32.mrf.mxu0
        %v5014 = vadd.f32 0.0, %v5013
        %v5015 = vpop.f32.mrf.mxu0
        %5016 = vmatprep.mubr.bf16.mxu0 0
        %5017 = vmatmul.mubr.bf16.gmra.mxu0 %v4968
        %v5018 = vpop.f32.mrf.mxu0
        %v5019 = vadd.f32 0.0, %v5018
        %v5020 = vpop.f32.mrf.mxu0
        %v5021 = vpop.f32.mrf.mxu0
        %v5022 = vadd.f32 0.0, %v5021
        %v5023 = vpop.f32.mrf.mxu0
        %5024 = vmatprep.mubr.bf16.mxu0 0
        %5025 = vmatmul.mubr.bf16.gmra.mxu0 %v4971
        %v5026 = vpop.f32.mrf.mxu0
        %v5027 = vadd.f32 0.0, %v5026
        %v5028 = vpop.f32.mrf.mxu0
        %v5029 = vpop.f32.mrf.mxu0
        %v5030 = vadd.f32 0.0, %v5029
        %v5031 = vpop.f32.mrf.mxu0
        %5032 = vmatprep.mubr.bf16.mxu0 0
        %5033 = vmatmul.mubr.bf16.gmra.mxu0 %v4974
        %v5034 = vpop.f32.mrf.mxu0
        %v5035 = vadd.f32 0.0, %v5034
        %v5036 = vpop.f32.mrf.mxu0
        %v5037 = vpop.f32.mrf.mxu0
        %v5038 = vadd.f32 0.0, %v5037
        %v5039 = vpop.f32.mrf.mxu0
        %5040 = vdwg.mxu0
        %v5041 = vmul.f32 %v4934, %v2184
        %v5042 = vmul.f32 %v4937, %v2184
        %v5043 = vmul.f32 %v4942, %v2184
        %v5044 = vmul.f32 %v4945, %v2184
        %v5045 = vmul.f32 %v4950, %v2184
        %v5046 = vmul.f32 %v4953, %v2184
        %v5047 = vmul.f32 %v4958, %v2184
        %v5048 = vmul.f32 %v4961, %v2184
        %v5049 = vmul.f32 %v5011, %v2184
        %v5050 = vmul.f32 %v5014, %v2184
        %v5051 = vmul.f32 %v5019, %v2184
        %v5052 = vmul.f32 %v5022, %v2184
        %v5053 = vmul.f32 %v5027, %v2184
        %v5054 = vmul.f32 %v5030, %v2184
        %v5055 = vmul.f32 %v5035, %v2184
        %v5056 = vmul.f32 %v5038, %v2184
        %v5057 = vadd.f32 %v4492, %v5041
        %v5058 = vadd.f32 %v4493, %v5042
        %v5059 = vadd.f32 %v4494, %v5043
        %v5060 = vadd.f32 %v4495, %v5044
        %v5061 = vadd.f32 %v4496, %v5045
        %v5062 = vadd.f32 %v4497, %v5046
        %v5063 = vadd.f32 %v4498, %v5047
        %v5064 = vadd.f32 %v4499, %v5048
        %v5065 = vadd.f32 %v4500, %v5049
        %v5066 = vadd.f32 %v4501, %v5050
        %v5067 = vadd.f32 %v4502, %v5051
        %v5068 = vadd.f32 %v4503, %v5052
        %v5069 = vadd.f32 %v4504, %v5053
        %v5070 = vadd.f32 %v4505, %v5054
        %v5071 = vadd.f32 %v4506, %v5055
        %v5072 = vadd.f32 %v4507, %v5056
        %v5073 = vmul.f32 %v499, %v2755
        %v5074 = vmul.f32 %v507, %v2755
        %v5075 = vmul.f32 %v515, %v2755
        %v5076 = vmul.f32 %v523, %v2755
        %v5077 = vmul.f32 %v531, %v2755
        %v5078 = vmul.f32 %v539, %v2755
        %v5079 = vmul.f32 %v547, %v2755
        %v5080 = vmul.f32 %v555, %v2755
        %v5081 = vmul.f32 %v563, %v2755
        %v5082 = vmul.f32 %v571, %v2755
        %v5083 = vmul.f32 %v579, %v2755
        %v5084 = vmul.f32 %v587, %v2755
        %v5085 = vmul.f32 %v595, %v2755
        %v5086 = vmul.f32 %v603, %v2755
        %v5087 = vmul.f32 %v611, %v2755
        %v5088 = vmul.f32 %v619, %v2755
        %v5089 = vpack.c.bf16 %v5074, %v5073
        %v5090 = vpack.c.bf16 %v5076, %v5075
        %v5091 = vpack.c.bf16 %v5078, %v5077
        %v5092 = vpack.c.bf16 %v5080, %v5079
        %v5093 = vpack.c.bf16 %v5082, %v5081
        %v5094 = vpack.c.bf16 %v5084, %v5083
        %v5095 = vpack.c.bf16 %v5086, %v5085
        %v5096 = vpack.c.bf16 %v5088, %v5087
        %s5097 = scalar_lea.vmem %s306, 224 [#allocation8]
        %v5098 = vld [vmem:[%s5097] sm:$0xf]
        %v5099 = vld [vmem:[%s5097 + $0x4] sm:$0xf]
        %v5100 = vld [vmem:[%s5097 + $0x8] sm:$0xf]
        %v5101 = vld [vmem:[%s5097 + $0xc] sm:$0xf]
        %v5102 = vld [vmem:[%s5097 + $0x10] sm:$0xf]
        %v5103 = vld [vmem:[%s5097 + $0x14] sm:$0xf]
        %v5104 = vld [vmem:[%s5097 + $0x18] sm:$0xf]
        %v5105 = vld [vmem:[%s5097 + $0x1c] sm:$0xf]
        %v5106 = vunpack.c.l.bf16 %v5098
        %v5107 = vunpack.c.l.bf16 %v5099
        %v5108 = vunpack.c.l.bf16 %v5100
        %v5109 = vunpack.c.l.bf16 %v5101
        %v5110 = vunpack.c.l.bf16 %v5102
        %v5111 = vunpack.c.l.bf16 %v5103
        %v5112 = vunpack.c.l.bf16 %v5104
        %v5113 = vunpack.c.l.bf16 %v5105
        %v5115 = vsel %vm412, %v5089, 0
        %v5118 = vsel %vm412, %v5090, 0
        %v5121 = vsel %vm412, %v5091, 0
        %v5124 = vsel %vm412, %v5092, 0
        %5126 = vmatprep.subr.bf16.mxu0 0
        %5127 = vmatpush1.bf16.xpose.msra.mxu0 0
        %5128 = vmatprep.subr.bf16.mxu0 0
        %5129 = vmatpush1.bf16.xpose.msra.mxu0 0
        %5130 = vmatprep.subr.bf16.mxu0 0
        %5131 = vmatpush1.bf16.xpose.msra.mxu0 0
        %5132 = vmatprep.subr.bf16.mxu0 0
        %5133 = vmatpush1.bf16.xpose.msra.mxu0 0
        %5134 = vmatprep.subr.bf16.mxu0 0
        %5135 = vmatpush1.bf16.xpose.msra.mxu0 %v3417
        %5136 = vmatprep.subr.bf16.mxu0 0
        %5137 = vmatpush1.bf16.xpose.msra.mxu0 %v3414
        %5138 = vmatprep.subr.bf16.mxu0 0
        %5139 = vmatpush1.bf16.xpose.msra.mxu0 %v3411
        %5140 = vmatprep.subr.bf16.mxu0 0
        %5141 = vmatpush1.bf16.xpose.msra.mxu0 %v3408
        %5142 = vmatprep.subr.bf16.mxu0 0
        %5143 = vmatpush2.bf16.xpose.msra.mxu0 0
        %5144 = vmatprep.subr.bf16.mxu0 0
        %5145 = vmatpush2.bf16.xpose.msra.mxu0 0
        %5146 = vmatprep.subr.bf16.mxu0 0
        %5147 = vmatpush2.bf16.xpose.msra.mxu0 0
        %5148 = vmatprep.subr.bf16.mxu0 0
        %5149 = vmatpush2.bf16.xpose.msra.mxu0 0
        %5150 = vmatprep.subr.bf16.mxu0 0
        %5151 = vmatpush2.bf16.xpose.msra.mxu0 0
        %5152 = vmatprep.subr.bf16.mxu0 0
        %5153 = vmatpush2.bf16.xpose.msra.mxu0 0
        %5154 = vmatprep.subr.bf16.mxu0 0
        %5155 = vmatpush2.bf16.xpose.msra.mxu0 0
        %5156 = vmatprep.subr.bf16.mxu0 0
        %5157 = vmatpush2.bf16.xpose.msra.mxu0 0
        %5158 = vmatprep.mubr.bf16.mxu0 0
        %5159 = vmatmul.mubr.bf16.gmra.mxu0 %v5115
        %v5160 = vpop.f32.mrf.mxu0
        %v5161 = vadd.f32 %v5106, %v5160
        %v5162 = vpop.f32.mrf.mxu0
        %v5163 = vpop.f32.mrf.mxu0
        %v5164 = vadd.f32 %v5107, %v5163
        %v5165 = vpop.f32.mrf.mxu0
        %5166 = vmatprep.mubr.bf16.mxu0 0
        %5167 = vmatmul.mubr.bf16.gmra.mxu0 %v5118
        %v5168 = vpop.f32.mrf.mxu0
        %v5169 = vadd.f32 %v5108, %v5168
        %v5170 = vpop.f32.mrf.mxu0
        %v5171 = vpop.f32.mrf.mxu0
        %v5172 = vadd.f32 %v5109, %v5171
        %v5173 = vpop.f32.mrf.mxu0
        %5174 = vmatprep.mubr.bf16.mxu0 0
        %5175 = vmatmul.mubr.bf16.gmra.mxu0 %v5121
        %v5176 = vpop.f32.mrf.mxu0
        %v5177 = vadd.f32 %v5110, %v5176
        %v5178 = vpop.f32.mrf.mxu0
        %v5179 = vpop.f32.mrf.mxu0
        %v5180 = vadd.f32 %v5111, %v5179
        %v5181 = vpop.f32.mrf.mxu0
        %5182 = vmatprep.mubr.bf16.mxu0 0
        %5183 = vmatmul.mubr.bf16.gmra.mxu0 %v5124
        %v5184 = vpop.f32.mrf.mxu0
        %v5185 = vadd.f32 %v5112, %v5184
        %v5186 = vpop.f32.mrf.mxu0
        %v5187 = vpop.f32.mrf.mxu0
        %v5188 = vadd.f32 %v5113, %v5187
        %v5189 = vpop.f32.mrf.mxu0
        %5190 = vdwg.mxu0
        %v5192 = vsel %vm412, %v5093, 0
        %v5195 = vsel %vm412, %v5094, 0
        %v5198 = vsel %vm412, %v5095, 0
        %v5201 = vsel %vm412, %v5096, 0
        %5203 = vmatprep.subr.bf16.mxu0 0
        %5204 = vmatpush1.bf16.xpose.msra.mxu0 0
        %5205 = vmatprep.subr.bf16.mxu0 0
        %5206 = vmatpush1.bf16.xpose.msra.mxu0 0
        %5207 = vmatprep.subr.bf16.mxu0 0
        %5208 = vmatpush1.bf16.xpose.msra.mxu0 0
        %5209 = vmatprep.subr.bf16.mxu0 0
        %5210 = vmatpush1.bf16.xpose.msra.mxu0 0
        %5211 = vmatprep.subr.bf16.mxu0 0
        %5212 = vmatpush1.bf16.xpose.msra.mxu0 %v3506
        %5213 = vmatprep.subr.bf16.mxu0 0
        %5214 = vmatpush1.bf16.xpose.msra.mxu0 %v3503
        %5215 = vmatprep.subr.bf16.mxu0 0
        %5216 = vmatpush1.bf16.xpose.msra.mxu0 %v3500
        %5217 = vmatprep.subr.bf16.mxu0 0
        %5218 = vmatpush1.bf16.xpose.msra.mxu0 %v3497
        %5219 = vmatprep.subr.bf16.mxu0 0
        %5220 = vmatpush2.bf16.xpose.msra.mxu0 0
        %5221 = vmatprep.subr.bf16.mxu0 0
        %5222 = vmatpush2.bf16.xpose.msra.mxu0 0
        %5223 = vmatprep.subr.bf16.mxu0 0
        %5224 = vmatpush2.bf16.xpose.msra.mxu0 0
        %5225 = vmatprep.subr.bf16.mxu0 0
        %5226 = vmatpush2.bf16.xpose.msra.mxu0 0
        %5227 = vmatprep.subr.bf16.mxu0 0
        %5228 = vmatpush2.bf16.xpose.msra.mxu0 0
        %5229 = vmatprep.subr.bf16.mxu0 0
        %5230 = vmatpush2.bf16.xpose.msra.mxu0 0
        %5231 = vmatprep.subr.bf16.mxu0 0
        %5232 = vmatpush2.bf16.xpose.msra.mxu0 0
        %5233 = vmatprep.subr.bf16.mxu0 0
        %5234 = vmatpush2.bf16.xpose.msra.mxu0 0
        %5235 = vmatprep.mubr.bf16.mxu0 0
        %5236 = vmatmul.mubr.bf16.gmra.mxu0 %v5192
        %v5237 = vpop.f32.mrf.mxu0
        %v5238 = vadd.f32 %v5106, %v5237
        %v5239 = vpop.f32.mrf.mxu0
        %v5240 = vpop.f32.mrf.mxu0
        %v5241 = vadd.f32 %v5107, %v5240
        %v5242 = vpop.f32.mrf.mxu0
        %5243 = vmatprep.mubr.bf16.mxu0 0
        %5244 = vmatmul.mubr.bf16.gmra.mxu0 %v5195
        %v5245 = vpop.f32.mrf.mxu0
        %v5246 = vadd.f32 %v5108, %v5245
        %v5247 = vpop.f32.mrf.mxu0
        %v5248 = vpop.f32.mrf.mxu0
        %v5249 = vadd.f32 %v5109, %v5248
        %v5250 = vpop.f32.mrf.mxu0
        %5251 = vmatprep.mubr.bf16.mxu0 0
        %5252 = vmatmul.mubr.bf16.gmra.mxu0 %v5198
        %v5253 = vpop.f32.mrf.mxu0
        %v5254 = vadd.f32 %v5110, %v5253
        %v5255 = vpop.f32.mrf.mxu0
        %v5256 = vpop.f32.mrf.mxu0
        %v5257 = vadd.f32 %v5111, %v5256
        %v5258 = vpop.f32.mrf.mxu0
        %5259 = vmatprep.mubr.bf16.mxu0 0
        %5260 = vmatmul.mubr.bf16.gmra.mxu0 %v5201
        %v5261 = vpop.f32.mrf.mxu0
        %v5262 = vadd.f32 %v5112, %v5261
        %v5263 = vpop.f32.mrf.mxu0
        %v5264 = vpop.f32.mrf.mxu0
        %v5265 = vadd.f32 %v5113, %v5264
        %v5266 = vpop.f32.mrf.mxu0
        %5267 = vdwg.mxu0
        %v5268 = vsel %vm1238, %v5161, -inf
        %5269 = vmax.xlane.f32.xlu0 %v5268
        %v5270 = vpop.xlane.xlu0 %5269
        %v5271 = vsel %vm1238, %v5164, -inf
        %5272 = vmax.xlane.f32.xlu0 %v5271
        %v5273 = vpop.xlane.xlu0 %5272
        %v5274 = vsel %vm1238, %v5169, -inf
        %5275 = vmax.xlane.f32.xlu0 %v5274
        %v5276 = vpop.xlane.xlu0 %5275
        %v5277 = vsel %vm1238, %v5172, -inf
        %5278 = vmax.xlane.f32.xlu0 %v5277
        %v5279 = vpop.xlane.xlu0 %5278
        %v5280 = vsel %vm1238, %v5177, -inf
        %5281 = vmax.xlane.f32.xlu0 %v5280
        %v5282 = vpop.xlane.xlu0 %5281
        %v5283 = vsel %vm1238, %v5180, -inf
        %5284 = vmax.xlane.f32.xlu0 %v5283
        %v5285 = vpop.xlane.xlu0 %5284
        %v5286 = vsel %vm1238, %v5185, -inf
        %5287 = vmax.xlane.f32.xlu0 %v5286
        %v5288 = vpop.xlane.xlu0 %5287
        %v5289 = vsel %vm1238, %v5188, -inf
        %5290 = vmax.xlane.f32.xlu0 %v5289
        %v5291 = vpop.xlane.xlu0 %5290
        %v5292 = vsel %vm1238, %v5238, -inf
        %5293 = vmax.xlane.f32.xlu0 %v5292
        %v5294 = vpop.xlane.xlu0 %5293
        %v5295 = vsel %vm1238, %v5241, -inf
        %5296 = vmax.xlane.f32.xlu0 %v5295
        %v5297 = vpop.xlane.xlu0 %5296
        %v5298 = vsel %vm1238, %v5246, -inf
        %5299 = vmax.xlane.f32.xlu0 %v5298
        %v5300 = vpop.xlane.xlu0 %5299
        %v5301 = vsel %vm1238, %v5249, -inf
        %5302 = vmax.xlane.f32.xlu0 %v5301
        %v5303 = vpop.xlane.xlu0 %5302
        %v5304 = vsel %vm1238, %v5254, -inf
        %5305 = vmax.xlane.f32.xlu0 %v5304
        %v5306 = vpop.xlane.xlu0 %5305
        %v5307 = vsel %vm1238, %v5257, -inf
        %5308 = vmax.xlane.f32.xlu0 %v5307
        %v5309 = vpop.xlane.xlu0 %5308
        %v5310 = vsel %vm1238, %v5262, -inf
        %5311 = vmax.xlane.f32.xlu0 %v5310
        %v5312 = vpop.xlane.xlu0 %5311
        %v5313 = vsel %vm1238, %v5265, -inf
        %5314 = vmax.xlane.f32.xlu0 %v5313
        %v5315 = vpop.xlane.xlu0 %5314
        %v5316 = vsub.f32 %v5161, %v5270
        %v5317 = vsub.f32 %v5164, %v5273
        %v5318 = vsub.f32 %v5169, %v5276
        %v5319 = vsub.f32 %v5172, %v5279
        %v5320 = vsub.f32 %v5177, %v5282
        %v5321 = vsub.f32 %v5180, %v5285
        %v5322 = vsub.f32 %v5185, %v5288
        %v5323 = vsub.f32 %v5188, %v5291
        %v5324 = vsub.f32 %v5238, %v5294
        %v5325 = vsub.f32 %v5241, %v5297
        %v5326 = vsub.f32 %v5246, %v5300
        %v5327 = vsub.f32 %v5249, %v5303
        %v5328 = vsub.f32 %v5254, %v5306
        %v5329 = vsub.f32 %v5257, %v5309
        %v5330 = vsub.f32 %v5262, %v5312
        %v5331 = vsub.f32 %v5265, %v5315
        %v5332 = vmul.f32 %v5316, 1.442695
        %v5333 = vpow.pop %v5332
        %v5334 = vmul.f32 %v5317, 1.442695
        %v5335 = vpow.pop %v5334
        %v5336 = vmul.f32 %v5318, 1.442695
        %v5337 = vpow.pop %v5336
        %v5338 = vmul.f32 %v5319, 1.442695
        %v5339 = vpow.pop %v5338
        %v5340 = vmul.f32 %v5320, 1.442695
        %v5341 = vpow.pop %v5340
        %v5342 = vmul.f32 %v5321, 1.442695
        %v5343 = vpow.pop %v5342
        %v5344 = vmul.f32 %v5322, 1.442695
        %v5345 = vpow.pop %v5344
        %v5346 = vmul.f32 %v5323, 1.442695
        %v5347 = vpow.pop %v5346
        %v5348 = vmul.f32 %v5324, 1.442695
        %v5349 = vpow.pop %v5348
        %v5350 = vmul.f32 %v5325, 1.442695
        %v5351 = vpow.pop %v5350
        %v5352 = vmul.f32 %v5326, 1.442695
        %v5353 = vpow.pop %v5352
        %v5354 = vmul.f32 %v5327, 1.442695
        %v5355 = vpow.pop %v5354
        %v5356 = vmul.f32 %v5328, 1.442695
        %v5357 = vpow.pop %v5356
        %v5358 = vmul.f32 %v5329, 1.442695
        %v5359 = vpow.pop %v5358
        %v5360 = vmul.f32 %v5330, 1.442695
        %v5361 = vpow.pop %v5360
        %v5362 = vmul.f32 %v5331, 1.442695
        %v5363 = vpow.pop %v5362
        %v5364 = vsel %vm1238, %v5333, 0.0
        %5365 = vadd.xlane.f32.xlu0 %v5364
        %v5366 = vpop.xlane.xlu0 %5365
        %v5367 = vsel %vm1238, %v5335, 0.0
        %5368 = vadd.xlane.f32.xlu0 %v5367
        %v5369 = vpop.xlane.xlu0 %5368
        %v5370 = vsel %vm1238, %v5337, 0.0
        %5371 = vadd.xlane.f32.xlu0 %v5370
        %v5372 = vpop.xlane.xlu0 %5371
        %v5373 = vsel %vm1238, %v5339, 0.0
        %5374 = vadd.xlane.f32.xlu0 %v5373
        %v5375 = vpop.xlane.xlu0 %5374
        %v5376 = vsel %vm1238, %v5341, 0.0
        %5377 = vadd.xlane.f32.xlu0 %v5376
        %v5378 = vpop.xlane.xlu0 %5377
        %v5379 = vsel %vm1238, %v5343, 0.0
        %5380 = vadd.xlane.f32.xlu0 %v5379
        %v5381 = vpop.xlane.xlu0 %5380
        %v5382 = vsel %vm1238, %v5345, 0.0
        %5383 = vadd.xlane.f32.xlu0 %v5382
        %v5384 = vpop.xlane.xlu0 %5383
        %v5385 = vsel %vm1238, %v5347, 0.0
        %5386 = vadd.xlane.f32.xlu0 %v5385
        %v5387 = vpop.xlane.xlu0 %5386
        %v5388 = vsel %vm1238, %v5349, 0.0
        %5389 = vadd.xlane.f32.xlu0 %v5388
        %v5390 = vpop.xlane.xlu0 %5389
        %v5391 = vsel %vm1238, %v5351, 0.0
        %5392 = vadd.xlane.f32.xlu0 %v5391
        %v5393 = vpop.xlane.xlu0 %5392
        %v5394 = vsel %vm1238, %v5353, 0.0
        %5395 = vadd.xlane.f32.xlu0 %v5394
        %v5396 = vpop.xlane.xlu0 %5395
        %v5397 = vsel %vm1238, %v5355, 0.0
        %5398 = vadd.xlane.f32.xlu0 %v5397
        %v5399 = vpop.xlane.xlu0 %5398
        %v5400 = vsel %vm1238, %v5357, 0.0
        %5401 = vadd.xlane.f32.xlu0 %v5400
        %v5402 = vpop.xlane.xlu0 %5401
        %v5403 = vsel %vm1238, %v5359, 0.0
        %5404 = vadd.xlane.f32.xlu0 %v5403
        %v5405 = vpop.xlane.xlu0 %5404
        %v5406 = vsel %vm1238, %v5361, 0.0
        %5407 = vadd.xlane.f32.xlu0 %v5406
        %v5408 = vpop.xlane.xlu0 %5407
        %v5409 = vsel %vm1238, %v5363, 0.0
        %5410 = vadd.xlane.f32.xlu0 %v5409
        %v5411 = vpop.xlane.xlu0 %5410
        %v5412 = vrcp.pop %v5366
        %v5413 = vrcp.pop %v5369
        %v5414 = vrcp.pop %v5372
        %v5415 = vrcp.pop %v5375
        %v5416 = vrcp.pop %v5378
        %v5417 = vrcp.pop %v5381
        %v5418 = vrcp.pop %v5384
        %v5419 = vrcp.pop %v5387
        %v5420 = vrcp.pop %v5390
        %v5421 = vrcp.pop %v5393
        %v5422 = vrcp.pop %v5396
        %v5423 = vrcp.pop %v5399
        %v5424 = vrcp.pop %v5402
        %v5425 = vrcp.pop %v5405
        %v5426 = vrcp.pop %v5408
        %v5427 = vrcp.pop %v5411
        %v5428 = vmul.f32 %v5333, %v5412
        %v5429 = vmul.f32 %v5335, %v5413
        %v5430 = vmul.f32 %v5337, %v5414
        %v5431 = vmul.f32 %v5339, %v5415
        %v5432 = vmul.f32 %v5341, %v5416
        %v5433 = vmul.f32 %v5343, %v5417
        %v5434 = vmul.f32 %v5345, %v5418
        %v5435 = vmul.f32 %v5347, %v5419
        %v5436 = vmul.f32 %v5349, %v5420
        %v5437 = vmul.f32 %v5351, %v5421
        %v5438 = vmul.f32 %v5353, %v5422
        %v5439 = vmul.f32 %v5355, %v5423
        %v5440 = vmul.f32 %v5357, %v5424
        %v5441 = vmul.f32 %v5359, %v5425
        %v5442 = vmul.f32 %v5361, %v5426
        %v5443 = vmul.f32 %v5363, %v5427
        %v5444 = vpack.c.bf16 %v5429, %v5428
        %v5445 = vpack.c.bf16 %v5431, %v5430
        %v5446 = vpack.c.bf16 %v5433, %v5432
        %v5447 = vpack.c.bf16 %v5435, %v5434
        %v5448 = vpack.c.bf16 %v5437, %v5436
        %v5449 = vpack.c.bf16 %v5439, %v5438
        %v5450 = vpack.c.bf16 %v5441, %v5440
        %v5451 = vpack.c.bf16 %v5443, %v5442
        %v5453 = vsel %vm1238, %v5444, 0
        %v5456 = vsel %vm1238, %v5445, 0
        %v5459 = vsel %vm1238, %v5446, 0
        %v5462 = vsel %vm1238, %v5447, 0
        %5464 = vmatprep.subr.bf16.mxu0 0
        %5465 = vmatpush1.bf16.msra.mxu0 0
        %5466 = vmatprep.subr.bf16.mxu0 0
        %5467 = vmatpush1.bf16.msra.mxu0 0
        %5468 = vmatprep.subr.bf16.mxu0 0
        %5469 = vmatpush1.bf16.msra.mxu0 0
        %5470 = vmatprep.subr.bf16.mxu0 0
        %5471 = vmatpush1.bf16.msra.mxu0 0
        %5472 = vmatprep.subr.bf16.mxu0 0
        %5473 = vmatpush1.bf16.msra.mxu0 %v3349
        %5474 = vmatprep.subr.bf16.mxu0 0
        %5475 = vmatpush1.bf16.msra.mxu0 %v3348
        %5476 = vmatprep.subr.bf16.mxu0 0
        %5477 = vmatpush1.bf16.msra.mxu0 %v3347
        %5478 = vmatprep.subr.bf16.mxu0 0
        %5479 = vmatpush1.bf16.msra.mxu0 %v3346
        %5480 = vmatprep.subr.bf16.mxu0 0
        %5481 = vmatpush2.bf16.msra.mxu0 0
        %5482 = vmatprep.subr.bf16.mxu0 0
        %5483 = vmatpush2.bf16.msra.mxu0 0
        %5484 = vmatprep.subr.bf16.mxu0 0
        %5485 = vmatpush2.bf16.msra.mxu0 0
        %5486 = vmatprep.subr.bf16.mxu0 0
        %5487 = vmatpush2.bf16.msra.mxu0 0
        %5488 = vmatprep.subr.bf16.mxu0 0
        %5489 = vmatpush2.bf16.msra.mxu0 0
        %5490 = vmatprep.subr.bf16.mxu0 0
        %5491 = vmatpush2.bf16.msra.mxu0 0
        %5492 = vmatprep.subr.bf16.mxu0 0
        %5493 = vmatpush2.bf16.msra.mxu0 0
        %5494 = vmatprep.subr.bf16.mxu0 0
        %5495 = vmatpush2.bf16.msra.mxu0 0
        %5496 = vmatprep.mubr.bf16.mxu0 0
        %5497 = vmatmul.mubr.bf16.gmra.mxu0 %v5453
        %v5498 = vpop.f32.mrf.mxu0
        %v5499 = vadd.f32 0.0, %v5498
        %v5500 = vpop.f32.mrf.mxu0
        %v5501 = vpop.f32.mrf.mxu0
        %v5502 = vadd.f32 0.0, %v5501
        %v5503 = vpop.f32.mrf.mxu0
        %5504 = vmatprep.mubr.bf16.mxu0 0
        %5505 = vmatmul.mubr.bf16.gmra.mxu0 %v5456
        %v5506 = vpop.f32.mrf.mxu0
        %v5507 = vadd.f32 0.0, %v5506
        %v5508 = vpop.f32.mrf.mxu0
        %v5509 = vpop.f32.mrf.mxu0
        %v5510 = vadd.f32 0.0, %v5509
        %v5511 = vpop.f32.mrf.mxu0
        %5512 = vmatprep.mubr.bf16.mxu0 0
        %5513 = vmatmul.mubr.bf16.gmra.mxu0 %v5459
        %v5514 = vpop.f32.mrf.mxu0
        %v5515 = vadd.f32 0.0, %v5514
        %v5516 = vpop.f32.mrf.mxu0
        %v5517 = vpop.f32.mrf.mxu0
        %v5518 = vadd.f32 0.0, %v5517
        %v5519 = vpop.f32.mrf.mxu0
        %5520 = vmatprep.mubr.bf16.mxu0 0
        %5521 = vmatmul.mubr.bf16.gmra.mxu0 %v5462
        %v5522 = vpop.f32.mrf.mxu0
        %v5523 = vadd.f32 0.0, %v5522
        %v5524 = vpop.f32.mrf.mxu0
        %v5525 = vpop.f32.mrf.mxu0
        %v5526 = vadd.f32 0.0, %v5525
        %v5527 = vpop.f32.mrf.mxu0
        %5528 = vdwg.mxu0
        %v5530 = vsel %vm1238, %v5448, 0
        %v5533 = vsel %vm1238, %v5449, 0
        %v5536 = vsel %vm1238, %v5450, 0
        %v5539 = vsel %vm1238, %v5451, 0
        %5541 = vmatprep.subr.bf16.mxu0 0
        %5542 = vmatpush1.bf16.msra.mxu0 0
        %5543 = vmatprep.subr.bf16.mxu0 0
        %5544 = vmatpush1.bf16.msra.mxu0 0
        %5545 = vmatprep.subr.bf16.mxu0 0
        %5546 = vmatpush1.bf16.msra.mxu0 0
        %5547 = vmatprep.subr.bf16.mxu0 0
        %5548 = vmatpush1.bf16.msra.mxu0 0
        %5549 = vmatprep.subr.bf16.mxu0 0
        %5550 = vmatpush1.bf16.msra.mxu0 %v3353
        %5551 = vmatprep.subr.bf16.mxu0 0
        %5552 = vmatpush1.bf16.msra.mxu0 %v3352
        %5553 = vmatprep.subr.bf16.mxu0 0
        %5554 = vmatpush1.bf16.msra.mxu0 %v3351
        %5555 = vmatprep.subr.bf16.mxu0 0
        %5556 = vmatpush1.bf16.msra.mxu0 %v3350
        %5557 = vmatprep.subr.bf16.mxu0 0
        %5558 = vmatpush2.bf16.msra.mxu0 0
        %5559 = vmatprep.subr.bf16.mxu0 0
        %5560 = vmatpush2.bf16.msra.mxu0 0
        %5561 = vmatprep.subr.bf16.mxu0 0
        %5562 = vmatpush2.bf16.msra.mxu0 0
        %5563 = vmatprep.subr.bf16.mxu0 0
        %5564 = vmatpush2.bf16.msra.mxu0 0
        %5565 = vmatprep.subr.bf16.mxu0 0
        %5566 = vmatpush2.bf16.msra.mxu0 0
        %5567 = vmatprep.subr.bf16.mxu0 0
        %5568 = vmatpush2.bf16.msra.mxu0 0
        %5569 = vmatprep.subr.bf16.mxu0 0
        %5570 = vmatpush2.bf16.msra.mxu0 0
        %5571 = vmatprep.subr.bf16.mxu0 0
        %5572 = vmatpush2.bf16.msra.mxu0 0
        %5573 = vmatprep.mubr.bf16.mxu0 0
        %5574 = vmatmul.mubr.bf16.gmra.mxu0 %v5530
        %v5575 = vpop.f32.mrf.mxu0
        %v5576 = vadd.f32 0.0, %v5575
        %v5577 = vpop.f32.mrf.mxu0
        %v5578 = vpop.f32.mrf.mxu0
        %v5579 = vadd.f32 0.0, %v5578
        %v5580 = vpop.f32.mrf.mxu0
        %5581 = vmatprep.mubr.bf16.mxu0 0
        %5582 = vmatmul.mubr.bf16.gmra.mxu0 %v5533
        %v5583 = vpop.f32.mrf.mxu0
        %v5584 = vadd.f32 0.0, %v5583
        %v5585 = vpop.f32.mrf.mxu0
        %v5586 = vpop.f32.mrf.mxu0
        %v5587 = vadd.f32 0.0, %v5586
        %v5588 = vpop.f32.mrf.mxu0
        %5589 = vmatprep.mubr.bf16.mxu0 0
        %5590 = vmatmul.mubr.bf16.gmra.mxu0 %v5536
        %v5591 = vpop.f32.mrf.mxu0
        %v5592 = vadd.f32 0.0, %v5591
        %v5593 = vpop.f32.mrf.mxu0
        %v5594 = vpop.f32.mrf.mxu0
        %v5595 = vadd.f32 0.0, %v5594
        %v5596 = vpop.f32.mrf.mxu0
        %5597 = vmatprep.mubr.bf16.mxu0 0
        %5598 = vmatmul.mubr.bf16.gmra.mxu0 %v5539
        %v5599 = vpop.f32.mrf.mxu0
        %v5600 = vadd.f32 0.0, %v5599
        %v5601 = vpop.f32.mrf.mxu0
        %v5602 = vpop.f32.mrf.mxu0
        %v5603 = vadd.f32 0.0, %v5602
        %v5604 = vpop.f32.mrf.mxu0
        %5605 = vdwg.mxu0
        %v5606 = vmul.f32 %v5499, %v2755
        %v5607 = vmul.f32 %v5502, %v2755
        %v5608 = vmul.f32 %v5507, %v2755
        %v5609 = vmul.f32 %v5510, %v2755
        %v5610 = vmul.f32 %v5515, %v2755
        %v5611 = vmul.f32 %v5518, %v2755
        %v5612 = vmul.f32 %v5523, %v2755
        %v5613 = vmul.f32 %v5526, %v2755
        %v5614 = vmul.f32 %v5576, %v2755
        %v5615 = vmul.f32 %v5579, %v2755
        %v5616 = vmul.f32 %v5584, %v2755
        %v5617 = vmul.f32 %v5587, %v2755
        %v5618 = vmul.f32 %v5592, %v2755
        %v5619 = vmul.f32 %v5595, %v2755
        %v5620 = vmul.f32 %v5600, %v2755
        %v5621 = vmul.f32 %v5603, %v2755
        %v5622 = vadd.f32 %v5057, %v5606
        %v5623 = vadd.f32 %v5058, %v5607
        %v5624 = vadd.f32 %v5059, %v5608
        %v5625 = vadd.f32 %v5060, %v5609
        %v5626 = vadd.f32 %v5061, %v5610
        %v5627 = vadd.f32 %v5062, %v5611
        %v5628 = vadd.f32 %v5063, %v5612
        %v5629 = vadd.f32 %v5064, %v5613
        %v5630 = vadd.f32 %v5065, %v5614
        %v5631 = vadd.f32 %v5066, %v5615
        %v5632 = vadd.f32 %v5067, %v5616
        %v5633 = vadd.f32 %v5068, %v5617
        %v5634 = vadd.f32 %v5069, %v5618
        %v5635 = vadd.f32 %v5070, %v5619
        %v5636 = vadd.f32 %v5071, %v5620
        %v5637 = vadd.f32 %v5072, %v5621
        %5638 = vst.msk [vmem:[%s337 + $0x8] sm:$0xff] %vm412, %v5622
        %5639 = vst.msk [vmem:[%s337 + $0x18] sm:$0xff] %vm412, %v5623
        %5640 = vst.msk [vmem:[%s337 + $0x28] sm:$0xff] %vm412, %v5624
        %5641 = vst.msk [vmem:[%s337 + $0x38] sm:$0xff] %vm412, %v5625
        %5642 = vst.msk [vmem:[%s337 + $0x48] sm:$0xff] %vm412, %v5626
        %5643 = vst.msk [vmem:[%s337 + $0x58] sm:$0xff] %vm412, %v5627
        %5644 = vst.msk [vmem:[%s337 + $0x68] sm:$0xff] %vm412, %v5628
        %5645 = vst.msk [vmem:[%s337 + $0x78] sm:$0xff] %vm412, %v5629
        %5646 = vst.msk [vmem:[%s337 + $0x88] sm:$0xff] %vm412, %v5630
        %5647 = vst.msk [vmem:[%s337 + $0x98] sm:$0xff] %vm412, %v5631
        %5648 = vst.msk [vmem:[%s337 + $0xa8] sm:$0xff] %vm412, %v5632
        %5649 = vst.msk [vmem:[%s337 + $0xb8] sm:$0xff] %vm412, %v5633
        %5650 = vst.msk [vmem:[%s337 + $0xc8] sm:$0xff] %vm412, %v5634
        %5651 = vst.msk [vmem:[%s337 + $0xd8] sm:$0xff] %vm412, %v5635
        %5652 = vst.msk [vmem:[%s337 + $0xe8] sm:$0xff] %vm412, %v5636
        %5653 = vst.msk [vmem:[%s337 + $0xf8] sm:$0xff] %vm412, %v5637
        %s5654 = sand.u32 %s149, 1
        %s5655 = scalar_lea.sflag [#allocation4], %s5654
        %s5656 = sand.u32 %s149, 1
        %s5657 = smul.addr %s5656, 256
        %s5658 = scalar_lea.vmem [#allocation10], %s5657
        // Predicated region
        $region57: #{tpu_custom_call.1} parent=39 // pred_check
          %p5659 = pneg %p159
        $region58: #{tpu_custom_call.1} parent=39 // pred_check_branch
          %5661 = sbr.rel (%p5659) target = $region60
        $region59: #{tpu_custom_call.1} parent=39 // pred_region
          #allocation14 [shape = 'u32[6]{0}', space=smem, size = 0x18, scoped, tag = 'DMA stride descriptor']
          %s5662 = smul.u32 8, %s26
          %s5664 = ssub.s32 4096, 4096
          %5665 = vsyncadd %s5655, %s5664
          %s5666 = smul.addr %s5662, 2
          %s5667 = smul.addr %s5666, 128
          %s5668 = scalar_lea.hbm %s5, %s5667
          %s5670 = sshll.u32 1, 14
          %s5671 = sxor.u32 4294967295, %s5670
          %s5674 = sshll.u32 7, 18
          %s5675 = sxor.u32 4294967295, %s5674
          %s5676 = sand.u32 0, %s5675
          %s5678 = sor.u32 %s5676, 0
          %s5679 = sshll.u32 %s5658, 4
          %s5680 = int_to_ptr.vmem [resolvable:$true] %s5679
          %5686 = sst [smem:[#allocation14]] 2048
          %s5687 = scalar_lea.smem [#allocation14], 1
          %5688 = sst [smem:[%s5687]] 4096
          %s5689 = scalar_lea.smem [#allocation14], 2
          %5690 = sst [smem:[%s5689]] 16
          %s5691 = scalar_lea.smem [#allocation14], 3
          %5692 = sst [smem:[%s5691]] 128
          %s5693 = scalar_lea.smem [#allocation14], 4
          %5694 = sst [smem:[%s5693]] 128
          %s5695 = scalar_lea.smem [#allocation14], 5
          %5696 = sst [smem:[%s5695]] 8
          %5698 = dma.general %s5680, 4096, %s5668, %s5655, 131072, [#allocation14], %s5678, 0
        $region60: #{tpu_custom_call.1} parent=39 // pred_fallthru
          _
      $region40: #{tpu_custom_call.1} parent=5 // pred_fallthru
        _
      %p5699 = scmp.le.s32.totalorder 2, %s21
      // Predicated region
      $region61: #{tpu_custom_call.1} parent=5 // pred_check
        %p5700 = pneg %p5699
      $region62: #{tpu_custom_call.1} parent=5 // pred_check_branch
        %5702 = sbr.rel (%p5700) target = $region64
      $region63: #{tpu_custom_call.1} parent=5 // pred_region
        %s5703 = ssub.s32 %s21, 2
        // Predicated region
        $region65: #{tpu_custom_call.1} parent=63 // pred_check
          %p5704 = pneg %p165
        $region66: #{tpu_custom_call.1} parent=63 // pred_check_branch
          %5706 = sbr.rel (%p5704) target = $region68
        $region67: #{tpu_custom_call.1} parent=63 // pred_region
          %s5707 = sand.u32 %s150, 1
          %s5708 = scalar_lea.sflag [#allocation4], %s5707
          %s5709 = sand.u32 %s150, 1
          %s5710 = smul.addr %s5709, 256
          %s5711 = scalar_lea.vmem [#allocation10], %s5710
          %5712 = dma.done %s5708, 4096
        $region68: #{tpu_custom_call.1} parent=63 // pred_fallthru
          _
      $region64: #{tpu_custom_call.1} parent=5 // pred_fallthru
        _
    $region6: #{tpu_custom_call.1} parent=1 // loop_footer
      %s25 = sadd.s32 1, %s21
    $region7: #{tpu_custom_call.1} parent=1 // loop_footer_branch
      %20 = sbr.rel target = $region3
    $region8: #{tpu_custom_call.1} parent=1 // loop_exit
      _
    %5713 = vsyncpa [#allocation3], 1
    %s5714 = scalar_lea.sflag [#allocation3], 1
    %5715 = vsyncpa %s5714, 1
    %5716 = vsyncpa [#allocation6], 1
    %5717 = vsyncpa [#allocation9], 1
    %s5718 = scalar_lea.sflag [#allocation9], 1
    %5719 = vsyncpa %s5718, 1
    %5720 = vsyncpa [#allocation4], 1
    %s5721 = scalar_lea.sflag [#allocation4], 1
    %5722 = vsyncpa %s5721, 1

</llo_original>
